<compile_context>
chip_gen: v7x
topology: tpu7x:2x2x1
jax: 0.10.0
libtpu: 0.0.40
codegen_flags: <defaults>
</compile_context>

<pallas_src>
import functools

import numpy as np
import jax
import jax.numpy as jnp
from jax.experimental import pallas as pl
from jax.experimental.pallas import tpu as pltpu

BN_EPS = 1e-5


# ------------------------------ Pallas kernel ------------------------------

def _seq_gtcn_kernel(x_ref, atil_ref, wg_ref, bg_ref, w1_ref, b1_ref,
                     w3_ref, b3_ref, wt_ref, bt_ref, s_ref, o_ref,
                     *, n_subsets, bc, dilations, kt_uni, shift_offset):
    """Fused SeqGTCN forward on a (C, L) channel-major activation slab.

    L = NM*T*V lanes; all intermediates stay in VMEM / vregs.
    """
    f32, bf16 = jnp.float32, jnp.bfloat16
    x = x_ref[...]                                  # (C, L) f32
    x_bf = x.astype(bf16)

    # ---- step_gcn:  y = relu( sum_k Wg_k @ (x @ Atil_k) + bias_g + x )
    # (conv1x1 C->K*C, graph conv over V, BN folded, residual, ReLU)
    acc = bg_ref[...]                               # folded graph-conv bias (C, L)
    for k in range(n_subsets):
        g = jnp.dot(x_bf, atil_ref[k], preferred_element_type=f32)       # (C, L)
        acc = acc + jnp.dot(wg_ref[k], g.astype(bf16),
                            preferred_element_type=f32)                  # (C, L)
    y = jnp.maximum(acc + x, 0.0)

    # ---- step_tcn: stacked 1x1 reduce (+BN+ReLU), per-branch dilated 3-tap
    # temporal conv (in-kernel taps via lane-shift operators), concat via
    # row-padded tap weights, BN folded, residual, ReLU.
    y_bf = y.astype(bf16)
    h = jnp.maximum(
        jnp.dot(w1_ref[...], y_bf, preferred_element_type=f32) + b1_ref[...],
        0.0)                                        # (C, L); rows [bi*bc:(bi+1)*bc] = branch bi
    h_bf = h.astype(bf16)

    acc = y + b3_ref[...]                           # residual + folded branch bias
    for bi, d in enumerate(dilations):
        h_i = h_bf[bi * bc:(bi + 1) * bc, :]        # (bc, L)
        for j in range(3):
            delta = (j - 1) * d                     # temporal offset of this tap
            s = jnp.dot(h_i, s_ref[shift_offset + delta],
                        preferred_element_type=f32)                      # shifted h_i
            acc = acc + jnp.dot(w3_ref[bi * 3 + j], s.astype(bf16),
                                preferred_element_type=f32)              # (C, L)
    z = jnp.maximum(acc, 0.0)

    # ---- uni_tcn: (9,1) 'same' temporal conv + BN folded
    z_bf = z.astype(bf16)
    acc = jnp.zeros_like(z)
    for j in range(kt_uni):
        delta = j - (kt_uni - 1) // 2
        s = jnp.dot(z_bf, s_ref[shift_offset + delta],
                    preferred_element_type=f32)
        acc = acc + jnp.dot(wt_ref[j], s.astype(bf16),
                            preferred_element_type=f32)
    o_ref[...] = acc + bt_ref[...]


# ------------------------------ JAX wrapper --------------------------------

def seq_gtcn_forward(x, ops, meta):
    """x: (N, M, C, T, V) -> (N, M, C, T, V), single fused pallas_call."""
    N, M, C, T, V = x.shape
    NM = N * M
    L = NM * T * V

    # channel-major, lane-dense layout: lane index = n*T*V + t*V + v
    x_cm = jnp.transpose(x.reshape(NM, C, T, V), (1, 0, 2, 3)).reshape(C, L)
    x_cm = x_cm.astype(jnp.float32)

    kern = functools.partial(
        _seq_gtcn_kernel,
        n_subsets=meta['n_subsets'], bc=meta['bc'],
        dilations=meta['dilations'], kt_uni=meta['kt_uni'],
        shift_offset=meta['shift_offset'])

    def full_spec(arr):
        shp = tuple(arr.shape)
        return pl.BlockSpec(shp, lambda *_: (0,) * len(shp))

    inputs = (x_cm, ops['atil'], ops['wg'], ops['bg'], ops['w1s'], ops['b1s'],
              ops['w3p'], ops['b3s'], ops['wt'], ops['bt'], ops['smat'])

    # Single grid step: whole working set (< 1 MiB) is VMEM resident.
    # (On v7x with larger NM*T*V, split NM across a "parallel" axis for 2 TCs.)
    o_cm = pl.pallas_call(
        kern,
        out_shape=jax.ShapeDtypeStruct((C, L), jnp.float32),
        grid=(1,),
        in_specs=[full_spec(a) for a in inputs],
        out_specs=pl.BlockSpec((C, L), lambda i: (0, 0)),
        compiler_params=pltpu.CompilerParams(
            dimension_semantics=("arbitrary",),
            vmem_limit_bytes=32 * 1024 * 1024),
    )(*inputs)

    o = jnp.transpose(o_cm.reshape(C, NM, T, V), (1, 0, 2, 3))
    return o.reshape(N, M, C, T, V)


# -------------------------- parameters & packing ---------------------------

def init_params(key, C=32, K=5, V=8, dilations=(1, 2), tcn_kernel=9):
    """Master f32 parameters (same semantics/magnitudes as the torch module)."""
    bn_scale = float(1.0 / np.sqrt(1.0 + BN_EPS))  # eval-mode BN, default init
    ks = jax.random.split(key, 20)
    std = 0.05
    p = {}

    # TODO(synk): GraphMulti(layout='cocolr', mode='spatial_lr3a').A5 construction
    # unavailable; deterministic synthetic row-normalized adjacency stack instead.
    a = jax.random.uniform(ks[0], (K, V, V), jnp.float32) + 0.1
    p['A'] = a / a.sum(-1, keepdims=True)

    # step_gcn (GCNBlock, adaptive=False): 1x1 conv C -> K*C, BN folded as scale.
    p['gcn_w'] = jax.random.normal(ks[1], (K * C, C), jnp.float32) * std * bn_scale
    p['gcn_b'] = jax.random.normal(ks[2], (K * C,), jnp.float32) * 0.01 * bn_scale

    # step_tcn (CNNBlock, dilations=[1, 2]).
    # TODO(synk): exact CNNBlock internals unavailable; implemented as
    # [1x1+BN+ReLU -> 3x1 dilated conv] branches, concat, BN, residual, ReLU.
    bc = C // len(dilations)
    p['tcn_branches'] = []
    for i, d in enumerate(dilations):
        w1 = jax.random.normal(ks[3 + 4 * i], (bc, C), jnp.float32) * std * bn_scale
        b1 = jax.random.normal(ks[4 + 4 * i], (bc,), jnp.float32) * 0.01 * bn_scale
        w3 = jax.random.normal(ks[5 + 4 * i], (bc, bc, 3), jnp.float32) * std * bn_scale
        b3 = jax.random.normal(ks[6 + 4 * i], (bc,), jnp.float32) * 0.01 * bn_scale
        p['tcn_branches'].append((w1, b1, w3, b3, int(d)))

    # uni_tcn (unit_tcn2): (9,1) 'same' temporal conv + BN folded.
    # TODO(synk): unit_tcn2(seg=25, mode='TV') exact semantics unavailable;
    # implemented as the standard pyskl unit_tcn (kernel (9,1), stride 1).
    p['uni_w'] = jax.random.normal(ks[12], (C, C, tcn_kernel), jnp.float32) * std * bn_scale
    p['uni_b'] = jax.random.normal(ks[13], (C,), jnp.float32) * 0.01 * bn_scale
    return p


def pack_operands(p, NM, T, V):
    """Build the kernel-ready (mostly bf16) operands for a given (NM, T, V)."""
    A = np.asarray(p['A'], np.float32)
    K = A.shape[0]
    Wg = np.asarray(p['gcn_w'], np.float32)
    C = Wg.shape[1]
    L = NM * T * V
    ops = {}

    # Graph-conv operator: block-diagonal kron(I_{NM*T}, A_k) acting on lanes (n,t,v).
    ops['atil'] = jnp.asarray(
        np.stack([np.kron(np.eye(NM * T), A[k]) for k in range(K)]), jnp.bfloat16)
    ops['wg'] = jnp.asarray(Wg.reshape(K, C, C), jnp.bfloat16)   # subset-major rows
    bg = np.asarray(p['gcn_b'], np.float32).reshape(K, C)
    bias_gw = np.einsum('kc,kw->cw', bg, A.sum(axis=1))          # (C, V)
    ops['bg'] = jnp.asarray(np.tile(bias_gw, (1, NM * T)), jnp.float32)  # (C, L)

    # Stacked branch 1x1 reduce.
    nb = len(p['tcn_branches'])
    bc = C // nb
    w1s = np.concatenate([np.asarray(b[0], np.float32) for b in p['tcn_branches']], 0)
    b1s = np.concatenate([np.asarray(b[1], np.float32) for b in p['tcn_branches']], 0)
    ops['w1s'] = jnp.asarray(w1s, jnp.bfloat16)
    ops['b1s'] = jnp.asarray(b1s.reshape(-1, 1), jnp.float32)

    # Per-branch, per-tap weights zero-padded to C output rows (branch-major rows).
    w3p = np.zeros((nb * 3, C, bc), np.float32)
    b3s = np.zeros((C,), np.float32)
    dilations = []
    for i, (_, _, w3, b3, d) in enumerate(p['tcn_branches']):
        dilations.append(int(d))
        b3s[i * bc:(i + 1) * bc] = np.asarray(b3, np.float32)
        for j in range(3):
            w3p[i * 3 + j, i * bc:(i + 1) * bc, :] = np.asarray(w3, np.float32)[:, :, j]
    ops['w3p'] = jnp.asarray(w3p, jnp.bfloat16)
    ops['b3s'] = jnp.asarray(b3s.reshape(-1, 1), jnp.float32)

    # uni_tcn taps.
    wt = np.asarray(p['uni_w'], np.float32)
    kt = wt.shape[-1]
    ops['wt'] = jnp.asarray(np.transpose(wt, (2, 0, 1)), jnp.bfloat16)   # (kt, C, C)
    ops['bt'] = jnp.asarray(np.asarray(p['uni_b'], np.float32).reshape(-1, 1), jnp.float32)

    # Lane-shift operators S_delta, delta in [-max_d, max_d]; 'same' zero padding.
    max_d = (kt - 1) // 2
    assert max(dilations) <= max_d
    eye_v, eye_nm = np.eye(V), np.eye(NM)
    smats = [np.kron(eye_nm, np.kron(np.eye(T, k=-delta), eye_v))
             for delta in range(-max_d, max_d + 1)]
    ops['smat'] = jnp.asarray(np.stack(smats), jnp.bfloat16)             # (2*max_d+1, L, L)

    meta = dict(n_subsets=K, bc=bc, dilations=tuple(dilations),
                kt_uni=kt, shift_offset=max_d)
    return ops, meta


# --------------------------- pure-JAX reference ----------------------------

def reference_forward(x, p):
    """Straightforward XLA reference of the same (BN-folded) forward."""
    N, M, C, T, V = x.shape
    NM = N * M
    x4 = x.reshape(NM, C, T, V).astype(jnp.float32)
    A = p['A']
    K = A.shape[0]

    f = jnp.einsum('oc,nctv->notv', p['gcn_w'], x4) + p['gcn_b'][None, :, None, None]
    y = jnp.einsum('nkctv,kvw->nctw', f.reshape(NM, K, C, T, V), A)
    y = jnp.maximum(y + x4, 0.0)

    outs = []
    for (w1, b1, w3, b3, d) in p['tcn_branches']:
        h = jnp.maximum(jnp.einsum('oc,nctv->notv', w1, y) + b1[None, :, None, None], 0.0)
        hp = jnp.pad(h, ((0, 0), (0, 0), (d, d), (0, 0)))
        o_i = sum(jnp.einsum('oc,nctv->notv', w3[:, :, j], hp[:, :, j * d:j * d + T, :])
                  for j in range(3))
        outs.append(o_i + b3[None, :, None, None])
    z = jnp.maximum(jnp.concatenate(outs, axis=1) + y, 0.0)

    kt = p['uni_w'].shape[-1]
    pad = (kt - 1) // 2
    zp = jnp.pad(z, ((0, 0), (0, 0), (pad, pad), (0, 0)))
    o = sum(jnp.einsum('oc,nctv->notv', p['uni_w'][:, :, j], zp[:, :, j:j + T, :])
            for j in range(kt))
    o = o + p['uni_b'][None, :, None, None]
    return o.reshape(N, M, C, T, V)


# ----------------------------------- main -----------------------------------

if __name__ == "__main__":
    key = jax.random.PRNGKey(0)
    kx, kp = jax.random.split(key)

    # Small shapes consistent with the module's (N, M, C, T, V) input.
    N, M, C, T, V, K = 2, 1, 32, 8, 8, 5
    x = jax.random.normal(kx, (N, M, C, T, V), jnp.float32)
    params = init_params(kp, C=C, K=K, V=V)
    ops, meta = pack_operands(params, N * M, T, V)

    fwd = jax.jit(functools.partial(seq_gtcn_forward, meta=meta))
    out = jax.block_until_ready(fwd(x, ops))

    assert out.shape == (N, M, C, T, V), out.shape
    assert bool(jnp.all(jnp.isfinite(out)))

    # Numerical check against the pure-JAX reference (bf16 MXU feed in the kernel).
    ref = reference_forward(x, params)
    err = float(jnp.max(jnp.abs(out - ref)))
    assert err < 0.1, f"max abs error vs reference: {err}"

    print("KERNEL_OK")
</pallas_src>

<mosaic_0001>
module attributes {stable_mosaic.version = 11 : i64} {
  func.func @_seq_gtcn_kernel(%arg0: i32, %arg1: memref<32x128xf32, #tpu.memory_space<vmem>>, %arg2: memref<5x128x128xbf16, #tpu.memory_space<vmem>>, %arg3: memref<5x32x32xbf16, #tpu.memory_space<vmem>>, %arg4: memref<32x128xf32, #tpu.memory_space<vmem>>, %arg5: memref<32x32xbf16, #tpu.memory_space<vmem>>, %arg6: memref<32x1xf32, #tpu.memory_space<vmem>>, %arg7: memref<6x32x16xbf16, #tpu.memory_space<vmem>>, %arg8: memref<32x1xf32, #tpu.memory_space<vmem>>, %arg9: memref<9x32x32xbf16, #tpu.memory_space<vmem>>, %arg10: memref<32x1xf32, #tpu.memory_space<vmem>>, %arg11: memref<9x128x128xbf16, #tpu.memory_space<vmem>>, %arg12: memref<32x128xf32, #tpu.memory_space<vmem>>) attributes {dimension_semantics = [#tpu.dimension_semantics<arbitrary>], iteration_bounds = array<i64: 1>, scalar_prefetch = 0 : i64, scratch_operands = 0 : i64, tpu.core_type = #tpu.core_type<tc>, window_params = [{pipeline_mode = #tpu.pipeline_mode<synchronous>, transform_indices = @transform_0, window_bounds = array<i64: 32, 128>}, {pipeline_mode = #tpu.pipeline_mode<synchronous>, transform_indices = @transform_1, window_bounds = array<i64: 5, 128, 128>}, {pipeline_mode = #tpu.pipeline_mode<synchronous>, transform_indices = @transform_2, window_bounds = array<i64: 5, 32, 32>}, {pipeline_mode = #tpu.pipeline_mode<synchronous>, transform_indices = @transform_3, window_bounds = array<i64: 32, 128>}, {pipeline_mode = #tpu.pipeline_mode<synchronous>, transform_indices = @transform_4, window_bounds = array<i64: 32, 32>}, {pipeline_mode = #tpu.pipeline_mode<synchronous>, transform_indices = @transform_5, window_bounds = array<i64: 32, 1>}, {pipeline_mode = #tpu.pipeline_mode<synchronous>, transform_indices = @transform_6, window_bounds = array<i64: 6, 32, 16>}, {pipeline_mode = #tpu.pipeline_mode<synchronous>, transform_indices = @transform_7, window_bounds = array<i64: 32, 1>}, {pipeline_mode = #tpu.pipeline_mode<synchronous>, transform_indices = @transform_8, window_bounds = array<i64: 9, 32, 32>}, {pipeline_mode = #tpu.pipeline_mode<synchronous>, transform_indices = @transform_9, window_bounds = array<i64: 32, 1>}, {pipeline_mode = #tpu.pipeline_mode<synchronous>, transform_indices = @transform_10, window_bounds = array<i64: 9, 128, 128>}, {pipeline_mode = #tpu.pipeline_mode<synchronous>, transform_indices = @transform_11, window_bounds = array<i64: 32, 128>}]} {
    %c0 = arith.constant 0 : index
    %c0_0 = arith.constant 0 : index
    %0 = vector.load %arg1[%c0, %c0_0] : memref<32x128xf32, #tpu.memory_space<vmem>>, vector<32x128xf32>
    %1 = arith.truncf %0 : vector<32x128xf32> to vector<32x128xbf16>
    %c0_1 = arith.constant 0 : index
    %c0_2 = arith.constant 0 : index
    %2 = vector.load %arg4[%c0_1, %c0_2] : memref<32x128xf32, #tpu.memory_space<vmem>>, vector<32x128xf32>
    %c0_3 = arith.constant 0 : index
    %c0_4 = arith.constant 0 : index
    %c0_5 = arith.constant 0 : index
    %3 = vector.load %arg2[%c0_3, %c0_4, %c0_5] : memref<5x128x128xbf16, #tpu.memory_space<vmem>>, vector<1x128x128xbf16>
    %4 = vector.shape_cast %3 : vector<1x128x128xbf16> to vector<128x128xbf16>
    %cst = arith.constant dense<0.000000e+00> : vector<32x128xf32>
    %5 = tpu.matmul %1, %4, %cst {dimension_numbers = #tpu.dot_dimension_numbers<[1], [0], [0], [1], [0, 0, 1, 1], [], []>} : vector<32x128xbf16>, vector<128x128xbf16>, vector<32x128xf32> -> vector<32x128xf32>
    %c0_6 = arith.constant 0 : index
    %c0_7 = arith.constant 0 : index
    %c0_8 = arith.constant 0 : index
    %6 = vector.load %arg3[%c0_6, %c0_7, %c0_8] : memref<5x32x32xbf16, #tpu.memory_space<vmem>>, vector<1x32x32xbf16>
    %7 = vector.shape_cast %6 : vector<1x32x32xbf16> to vector<32x32xbf16>
    %8 = arith.truncf %5 : vector<32x128xf32> to vector<32x128xbf16>
    %cst_9 = arith.constant dense<0.000000e+00> : vector<32x128xf32>
    %9 = tpu.matmul %7, %8, %cst_9 {dimension_numbers = #tpu.dot_dimension_numbers<[1], [0], [0], [1], [0, 0, 1, 1], [], []>} : vector<32x32xbf16>, vector<32x128xbf16>, vector<32x128xf32> -> vector<32x128xf32>
    %10 = arith.addf %2, %9 : vector<32x128xf32>
    %c1 = arith.constant 1 : index
    %c0_10 = arith.constant 0 : index
    %c0_11 = arith.constant 0 : index
    %11 = vector.load %arg2[%c1, %c0_10, %c0_11] : memref<5x128x128xbf16, #tpu.memory_space<vmem>>, vector<1x128x128xbf16>
    %12 = vector.shape_cast %11 : vector<1x128x128xbf16> to vector<128x128xbf16>
    %cst_12 = arith.constant dense<0.000000e+00> : vector<32x128xf32>
    %13 = tpu.matmul %1, %12, %cst_12 {dimension_numbers = #tpu.dot_dimension_numbers<[1], [0], [0], [1], [0, 0, 1, 1], [], []>} : vector<32x128xbf16>, vector<128x128xbf16>, vector<32x128xf32> -> vector<32x128xf32>
    %c1_13 = arith.constant 1 : index
    %c0_14 = arith.constant 0 : index
    %c0_15 = arith.constant 0 : index
    %14 = vector.load %arg3[%c1_13, %c0_14, %c0_15] : memref<5x32x32xbf16, #tpu.memory_space<vmem>>, vector<1x32x32xbf16>
    %15 = vector.shape_cast %14 : vector<1x32x32xbf16> to vector<32x32xbf16>
    %16 = arith.truncf %13 : vector<32x128xf32> to vector<32x128xbf16>
    %cst_16 = arith.constant dense<0.000000e+00> : vector<32x128xf32>
    %17 = tpu.matmul %15, %16, %cst_16 {dimension_numbers = #tpu.dot_dimension_numbers<[1], [0], [0], [1], [0, 0, 1, 1], [], []>} : vector<32x32xbf16>, vector<32x128xbf16>, vector<32x128xf32> -> vector<32x128xf32>
    %18 = arith.addf %10, %17 : vector<32x128xf32>
    %c2 = arith.constant 2 : index
    %c0_17 = arith.constant 0 : index
    %c0_18 = arith.constant 0 : index
    %19 = vector.load %arg2[%c2, %c0_17, %c0_18] : memref<5x128x128xbf16, #tpu.memory_space<vmem>>, vector<1x128x128xbf16>
    %20 = vector.shape_cast %19 : vector<1x128x128xbf16> to vector<128x128xbf16>
    %cst_19 = arith.constant dense<0.000000e+00> : vector<32x128xf32>
    %21 = tpu.matmul %1, %20, %cst_19 {dimension_numbers = #tpu.dot_dimension_numbers<[1], [0], [0], [1], [0, 0, 1, 1], [], []>} : vector<32x128xbf16>, vector<128x128xbf16>, vector<32x128xf32> -> vector<32x128xf32>
    %c2_20 = arith.constant 2 : index
    %c0_21 = arith.constant 0 : index
    %c0_22 = arith.constant 0 : index
    %22 = vector.load %arg3[%c2_20, %c0_21, %c0_22] : memref<5x32x32xbf16, #tpu.memory_space<vmem>>, vector<1x32x32xbf16>
    %23 = vector.shape_cast %22 : vector<1x32x32xbf16> to vector<32x32xbf16>
    %24 = arith.truncf %21 : vector<32x128xf32> to vector<32x128xbf16>
    %cst_23 = arith.constant dense<0.000000e+00> : vector<32x128xf32>
    %25 = tpu.matmul %23, %24, %cst_23 {dimension_numbers = #tpu.dot_dimension_numbers<[1], [0], [0], [1], [0, 0, 1, 1], [], []>} : vector<32x32xbf16>, vector<32x128xbf16>, vector<32x128xf32> -> vector<32x128xf32>
    %26 = arith.addf %18, %25 : vector<32x128xf32>
    %c3 = arith.constant 3 : index
    %c0_24 = arith.constant 0 : index
    %c0_25 = arith.constant 0 : index
    %27 = vector.load %arg2[%c3, %c0_24, %c0_25] : memref<5x128x128xbf16, #tpu.memory_space<vmem>>, vector<1x128x128xbf16>
    %28 = vector.shape_cast %27 : vector<1x128x128xbf16> to vector<128x128xbf16>
    %cst_26 = arith.constant dense<0.000000e+00> : vector<32x128xf32>
    %29 = tpu.matmul %1, %28, %cst_26 {dimension_numbers = #tpu.dot_dimension_numbers<[1], [0], [0], [1], [0, 0, 1, 1], [], []>} : vector<32x128xbf16>, vector<128x128xbf16>, vector<32x128xf32> -> vector<32x128xf32>
    %c3_27 = arith.constant 3 : index
    %c0_28 = arith.constant 0 : index
    %c0_29 = arith.constant 0 : index
    %30 = vector.load %arg3[%c3_27, %c0_28, %c0_29] : memref<5x32x32xbf16, #tpu.memory_space<vmem>>, vector<1x32x32xbf16>
    %31 = vector.shape_cast %30 : vector<1x32x32xbf16> to vector<32x32xbf16>
    %32 = arith.truncf %29 : vector<32x128xf32> to vector<32x128xbf16>
    %cst_30 = arith.constant dense<0.000000e+00> : vector<32x128xf32>
    %33 = tpu.matmul %31, %32, %cst_30 {dimension_numbers = #tpu.dot_dimension_numbers<[1], [0], [0], [1], [0, 0, 1, 1], [], []>} : vector<32x32xbf16>, vector<32x128xbf16>, vector<32x128xf32> -> vector<32x128xf32>
    %34 = arith.addf %26, %33 : vector<32x128xf32>
    %c4 = arith.constant 4 : index
    %c0_31 = arith.constant 0 : index
    %c0_32 = arith.constant 0 : index
    %35 = vector.load %arg2[%c4, %c0_31, %c0_32] : memref<5x128x128xbf16, #tpu.memory_space<vmem>>, vector<1x128x128xbf16>
    %36 = vector.shape_cast %35 : vector<1x128x128xbf16> to vector<128x128xbf16>
    %cst_33 = arith.constant dense<0.000000e+00> : vector<32x128xf32>
    %37 = tpu.matmul %1, %36, %cst_33 {dimension_numbers = #tpu.dot_dimension_numbers<[1], [0], [0], [1], [0, 0, 1, 1], [], []>} : vector<32x128xbf16>, vector<128x128xbf16>, vector<32x128xf32> -> vector<32x128xf32>
    %c4_34 = arith.constant 4 : index
    %c0_35 = arith.constant 0 : index
    %c0_36 = arith.constant 0 : index
    %38 = vector.load %arg3[%c4_34, %c0_35, %c0_36] : memref<5x32x32xbf16, #tpu.memory_space<vmem>>, vector<1x32x32xbf16>
    %39 = vector.shape_cast %38 : vector<1x32x32xbf16> to vector<32x32xbf16>
    %40 = arith.truncf %37 : vector<32x128xf32> to vector<32x128xbf16>
    %cst_37 = arith.constant dense<0.000000e+00> : vector<32x128xf32>
    %41 = tpu.matmul %39, %40, %cst_37 {dimension_numbers = #tpu.dot_dimension_numbers<[1], [0], [0], [1], [0, 0, 1, 1], [], []>} : vector<32x32xbf16>, vector<32x128xbf16>, vector<32x128xf32> -> vector<32x128xf32>
    %42 = arith.addf %34, %41 : vector<32x128xf32>
    %43 = arith.addf %42, %0 : vector<32x128xf32>
    %cst_38 = arith.constant 0.000000e+00 : f32
    %44 = vector.broadcast %cst_38 : f32 to vector<32x128xf32>
    %45 = arith.maximumf %43, %44 : vector<32x128xf32>
    %46 = arith.truncf %45 : vector<32x128xf32> to vector<32x128xbf16>
    %c0_39 = arith.constant 0 : index
    %c0_40 = arith.constant 0 : index
    %47 = vector.load %arg5[%c0_39, %c0_40] : memref<32x32xbf16, #tpu.memory_space<vmem>>, vector<32x32xbf16>
    %cst_41 = arith.constant dense<0.000000e+00> : vector<32x128xf32>
    %48 = tpu.matmul %47, %46, %cst_41 {dimension_numbers = #tpu.dot_dimension_numbers<[1], [0], [0], [1], [0, 0, 1, 1], [], []>} : vector<32x32xbf16>, vector<32x128xbf16>, vector<32x128xf32> -> vector<32x128xf32>
    %c0_42 = arith.constant 0 : index
    %c0_43 = arith.constant 0 : index
    %49 = vector.load %arg6[%c0_42, %c0_43] : memref<32x1xf32, #tpu.memory_space<vmem>>, vector<32x1xf32>
    %50 = vector.broadcast %49 : vector<32x1xf32> to vector<32x128xf32>
    %51 = arith.addf %48, %50 : vector<32x128xf32>
    %cst_44 = arith.constant 0.000000e+00 : f32
    %52 = vector.broadcast %cst_44 : f32 to vector<32x128xf32>
    %53 = arith.maximumf %51, %52 : vector<32x128xf32>
    %54 = arith.truncf %53 : vector<32x128xf32> to vector<32x128xbf16>
    %c0_45 = arith.constant 0 : index
    %c0_46 = arith.constant 0 : index
    %55 = vector.load %arg8[%c0_45, %c0_46] : memref<32x1xf32, #tpu.memory_space<vmem>>, vector<32x1xf32>
    %56 = vector.broadcast %55 : vector<32x1xf32> to vector<32x128xf32>
    %57 = arith.addf %45, %56 : vector<32x128xf32>
    %58 = vector.extract_strided_slice %54 {offsets = [0, 0], sizes = [16, 128], strides = [1, 1]} : vector<32x128xbf16> to vector<16x128xbf16>
    %c3_47 = arith.constant 3 : index
    %c0_48 = arith.constant 0 : index
    %c0_49 = arith.constant 0 : index
    %59 = vector.load %arg11[%c3_47, %c0_48, %c0_49] : memref<9x128x128xbf16, #tpu.memory_space<vmem>>, vector<1x128x128xbf16>
    %60 = vector.shape_cast %59 : vector<1x128x128xbf16> to vector<128x128xbf16>
    %cst_50 = arith.constant dense<0.000000e+00> : vector<16x128xf32>
    %61 = tpu.matmul %58, %60, %cst_50 {dimension_numbers = #tpu.dot_dimension_numbers<[1], [0], [0], [1], [0, 0, 1, 1], [], []>} : vector<16x128xbf16>, vector<128x128xbf16>, vector<16x128xf32> -> vector<16x128xf32>
    %c0_51 = arith.constant 0 : index
    %c0_52 = arith.constant 0 : index
    %c0_53 = arith.constant 0 : index
    %62 = vector.load %arg7[%c0_51, %c0_52, %c0_53] : memref<6x32x16xbf16, #tpu.memory_space<vmem>>, vector<1x32x16xbf16>
    %63 = vector.shape_cast %62 : vector<1x32x16xbf16> to vector<32x16xbf16>
    %64 = arith.truncf %61 : vector<16x128xf32> to vector<16x128xbf16>
    %cst_54 = arith.constant dense<0.000000e+00> : vector<32x128xf32>
    %65 = tpu.matmul %63, %64, %cst_54 {dimension_numbers = #tpu.dot_dimension_numbers<[1], [0], [0], [1], [0, 0, 1, 1], [], []>} : vector<32x16xbf16>, vector<16x128xbf16>, vector<32x128xf32> -> vector<32x128xf32>
    %66 = arith.addf %57, %65 : vector<32x128xf32>
    %c4_55 = arith.constant 4 : index
    %c0_56 = arith.constant 0 : index
    %c0_57 = arith.constant 0 : index
    %67 = vector.load %arg11[%c4_55, %c0_56, %c0_57] : memref<9x128x128xbf16, #tpu.memory_space<vmem>>, vector<1x128x128xbf16>
    %68 = vector.shape_cast %67 : vector<1x128x128xbf16> to vector<128x128xbf16>
    %cst_58 = arith.constant dense<0.000000e+00> : vector<16x128xf32>
    %69 = tpu.matmul %58, %68, %cst_58 {dimension_numbers = #tpu.dot_dimension_numbers<[1], [0], [0], [1], [0, 0, 1, 1], [], []>} : vector<16x128xbf16>, vector<128x128xbf16>, vector<16x128xf32> -> vector<16x128xf32>
    %c1_59 = arith.constant 1 : index
    %c0_60 = arith.constant 0 : index
    %c0_61 = arith.constant 0 : index
    %70 = vector.load %arg7[%c1_59, %c0_60, %c0_61] : memref<6x32x16xbf16, #tpu.memory_space<vmem>>, vector<1x32x16xbf16>
    %71 = vector.shape_cast %70 : vector<1x32x16xbf16> to vector<32x16xbf16>
    %72 = arith.truncf %69 : vector<16x128xf32> to vector<16x128xbf16>
    %cst_62 = arith.constant dense<0.000000e+00> : vector<32x128xf32>
    %73 = tpu.matmul %71, %72, %cst_62 {dimension_numbers = #tpu.dot_dimension_numbers<[1], [0], [0], [1], [0, 0, 1, 1], [], []>} : vector<32x16xbf16>, vector<16x128xbf16>, vector<32x128xf32> -> vector<32x128xf32>
    %74 = arith.addf %66, %73 : vector<32x128xf32>
    %c5 = arith.constant 5 : index
    %c0_63 = arith.constant 0 : index
    %c0_64 = arith.constant 0 : index
    %75 = vector.load %arg11[%c5, %c0_63, %c0_64] : memref<9x128x128xbf16, #tpu.memory_space<vmem>>, vector<1x128x128xbf16>
    %76 = vector.shape_cast %75 : vector<1x128x128xbf16> to vector<128x128xbf16>
    %cst_65 = arith.constant dense<0.000000e+00> : vector<16x128xf32>
    %77 = tpu.matmul %58, %76, %cst_65 {dimension_numbers = #tpu.dot_dimension_numbers<[1], [0], [0], [1], [0, 0, 1, 1], [], []>} : vector<16x128xbf16>, vector<128x128xbf16>, vector<16x128xf32> -> vector<16x128xf32>
    %c2_66 = arith.constant 2 : index
    %c0_67 = arith.constant 0 : index
    %c0_68 = arith.constant 0 : index
    %78 = vector.load %arg7[%c2_66, %c0_67, %c0_68] : memref<6x32x16xbf16, #tpu.memory_space<vmem>>, vector<1x32x16xbf16>
    %79 = vector.shape_cast %78 : vector<1x32x16xbf16> to vector<32x16xbf16>
    %80 = arith.truncf %77 : vector<16x128xf32> to vector<16x128xbf16>
    %cst_69 = arith.constant dense<0.000000e+00> : vector<32x128xf32>
    %81 = tpu.matmul %79, %80, %cst_69 {dimension_numbers = #tpu.dot_dimension_numbers<[1], [0], [0], [1], [0, 0, 1, 1], [], []>} : vector<32x16xbf16>, vector<16x128xbf16>, vector<32x128xf32> -> vector<32x128xf32>
    %82 = arith.addf %74, %81 : vector<32x128xf32>
    %83 = vector.extract_strided_slice %54 {offsets = [16, 0], sizes = [16, 128], strides = [1, 1]} : vector<32x128xbf16> to vector<16x128xbf16>
    %c2_70 = arith.constant 2 : index
    %c0_71 = arith.constant 0 : index
    %c0_72 = arith.constant 0 : index
    %84 = vector.load %arg11[%c2_70, %c0_71, %c0_72] : memref<9x128x128xbf16, #tpu.memory_space<vmem>>, vector<1x128x128xbf16>
    %85 = vector.shape_cast %84 : vector<1x128x128xbf16> to vector<128x128xbf16>
    %cst_73 = arith.constant dense<0.000000e+00> : vector<16x128xf32>
    %86 = tpu.matmul %83, %85, %cst_73 {dimension_numbers = #tpu.dot_dimension_numbers<[1], [0], [0], [1], [0, 0, 1, 1], [], []>} : vector<16x128xbf16>, vector<128x128xbf16>, vector<16x128xf32> -> vector<16x128xf32>
    %c3_74 = arith.constant 3 : index
    %c0_75 = arith.constant 0 : index
    %c0_76 = arith.constant 0 : index
    %87 = vector.load %arg7[%c3_74, %c0_75, %c0_76] : memref<6x32x16xbf16, #tpu.memory_space<vmem>>, vector<1x32x16xbf16>
    %88 = vector.shape_cast %87 : vector<1x32x16xbf16> to vector<32x16xbf16>
    %89 = arith.truncf %86 : vector<16x128xf32> to vector<16x128xbf16>
    %cst_77 = arith.constant dense<0.000000e+00> : vector<32x128xf32>
    %90 = tpu.matmul %88, %89, %cst_77 {dimension_numbers = #tpu.dot_dimension_numbers<[1], [0], [0], [1], [0, 0, 1, 1], [], []>} : vector<32x16xbf16>, vector<16x128xbf16>, vector<32x128xf32> -> vector<32x128xf32>
    %91 = arith.addf %82, %90 : vector<32x128xf32>
    %c4_78 = arith.constant 4 : index
    %c0_79 = arith.constant 0 : index
    %c0_80 = arith.constant 0 : index
    %92 = vector.load %arg11[%c4_78, %c0_79, %c0_80] : memref<9x128x128xbf16, #tpu.memory_space<vmem>>, vector<1x128x128xbf16>
    %93 = vector.shape_cast %92 : vector<1x128x128xbf16> to vector<128x128xbf16>
    %cst_81 = arith.constant dense<0.000000e+00> : vector<16x128xf32>
    %94 = tpu.matmul %83, %93, %cst_81 {dimension_numbers = #tpu.dot_dimension_numbers<[1], [0], [0], [1], [0, 0, 1, 1], [], []>} : vector<16x128xbf16>, vector<128x128xbf16>, vector<16x128xf32> -> vector<16x128xf32>
    %c4_82 = arith.constant 4 : index
    %c0_83 = arith.constant 0 : index
    %c0_84 = arith.constant 0 : index
    %95 = vector.load %arg7[%c4_82, %c0_83, %c0_84] : memref<6x32x16xbf16, #tpu.memory_space<vmem>>, vector<1x32x16xbf16>
    %96 = vector.shape_cast %95 : vector<1x32x16xbf16> to vector<32x16xbf16>
    %97 = arith.truncf %94 : vector<16x128xf32> to vector<16x128xbf16>
    %cst_85 = arith.constant dense<0.000000e+00> : vector<32x128xf32>
    %98 = tpu.matmul %96, %97, %cst_85 {dimension_numbers = #tpu.dot_dimension_numbers<[1], [0], [0], [1], [0, 0, 1, 1], [], []>} : vector<32x16xbf16>, vector<16x128xbf16>, vector<32x128xf32> -> vector<32x128xf32>
    %99 = arith.addf %91, %98 : vector<32x128xf32>
    %c6 = arith.constant 6 : index
    %c0_86 = arith.constant 0 : index
    %c0_87 = arith.constant 0 : index
    %100 = vector.load %arg11[%c6, %c0_86, %c0_87] : memref<9x128x128xbf16, #tpu.memory_space<vmem>>, vector<1x128x128xbf16>
    %101 = vector.shape_cast %100 : vector<1x128x128xbf16> to vector<128x128xbf16>
    %cst_88 = arith.constant dense<0.000000e+00> : vector<16x128xf32>
    %102 = tpu.matmul %83, %101, %cst_88 {dimension_numbers = #tpu.dot_dimension_numbers<[1], [0], [0], [1], [0, 0, 1, 1], [], []>} : vector<16x128xbf16>, vector<128x128xbf16>, vector<16x128xf32> -> vector<16x128xf32>
    %c5_89 = arith.constant 5 : index
    %c0_90 = arith.constant 0 : index
    %c0_91 = arith.constant 0 : index
    %103 = vector.load %arg7[%c5_89, %c0_90, %c0_91] : memref<6x32x16xbf16, #tpu.memory_space<vmem>>, vector<1x32x16xbf16>
    %104 = vector.shape_cast %103 : vector<1x32x16xbf16> to vector<32x16xbf16>
    %105 = arith.truncf %102 : vector<16x128xf32> to vector<16x128xbf16>
    %cst_92 = arith.constant dense<0.000000e+00> : vector<32x128xf32>
    %106 = tpu.matmul %104, %105, %cst_92 {dimension_numbers = #tpu.dot_dimension_numbers<[1], [0], [0], [1], [0, 0, 1, 1], [], []>} : vector<32x16xbf16>, vector<16x128xbf16>, vector<32x128xf32> -> vector<32x128xf32>
    %107 = arith.addf %99, %106 : vector<32x128xf32>
    %cst_93 = arith.constant 0.000000e+00 : f32
    %108 = vector.broadcast %cst_93 : f32 to vector<32x128xf32>
    %109 = arith.maximumf %107, %108 : vector<32x128xf32>
    %110 = arith.truncf %109 : vector<32x128xf32> to vector<32x128xbf16>
    %cst_94 = arith.constant 0.000000e+00 : f32
    %111 = vector.broadcast %cst_94 : f32 to vector<32x128xf32>
    %c0_95 = arith.constant 0 : index
    %c0_96 = arith.constant 0 : index
    %c0_97 = arith.constant 0 : index
    %112 = vector.load %arg11[%c0_95, %c0_96, %c0_97] : memref<9x128x128xbf16, #tpu.memory_space<vmem>>, vector<1x128x128xbf16>
    %113 = vector.shape_cast %112 : vector<1x128x128xbf16> to vector<128x128xbf16>
    %cst_98 = arith.constant dense<0.000000e+00> : vector<32x128xf32>
    %114 = tpu.matmul %110, %113, %cst_98 {dimension_numbers = #tpu.dot_dimension_numbers<[1], [0], [0], [1], [0, 0, 1, 1], [], []>} : vector<32x128xbf16>, vector<128x128xbf16>, vector<32x128xf32> -> vector<32x128xf32>
    %c0_99 = arith.constant 0 : index
    %c0_100 = arith.constant 0 : index
    %c0_101 = arith.constant 0 : index
    %115 = vector.load %arg9[%c0_99, %c0_100, %c0_101] : memref<9x32x32xbf16, #tpu.memory_space<vmem>>, vector<1x32x32xbf16>
    %116 = vector.shape_cast %115 : vector<1x32x32xbf16> to vector<32x32xbf16>
    %117 = arith.truncf %114 : vector<32x128xf32> to vector<32x128xbf16>
    %cst_102 = arith.constant dense<0.000000e+00> : vector<32x128xf32>
    %118 = tpu.matmul %116, %117, %cst_102 {dimension_numbers = #tpu.dot_dimension_numbers<[1], [0], [0], [1], [0, 0, 1, 1], [], []>} : vector<32x32xbf16>, vector<32x128xbf16>, vector<32x128xf32> -> vector<32x128xf32>
    %119 = arith.addf %111, %118 : vector<32x128xf32>
    %c1_103 = arith.constant 1 : index
    %c0_104 = arith.constant 0 : index
    %c0_105 = arith.constant 0 : index
    %120 = vector.load %arg11[%c1_103, %c0_104, %c0_105] : memref<9x128x128xbf16, #tpu.memory_space<vmem>>, vector<1x128x128xbf16>
    %121 = vector.shape_cast %120 : vector<1x128x128xbf16> to vector<128x128xbf16>
    %cst_106 = arith.constant dense<0.000000e+00> : vector<32x128xf32>
    %122 = tpu.matmul %110, %121, %cst_106 {dimension_numbers = #tpu.dot_dimension_numbers<[1], [0], [0], [1], [0, 0, 1, 1], [], []>} : vector<32x128xbf16>, vector<128x128xbf16>, vector<32x128xf32> -> vector<32x128xf32>
    %c1_107 = arith.constant 1 : index
    %c0_108 = arith.constant 0 : index
    %c0_109 = arith.constant 0 : index
    %123 = vector.load %arg9[%c1_107, %c0_108, %c0_109] : memref<9x32x32xbf16, #tpu.memory_space<vmem>>, vector<1x32x32xbf16>
    %124 = vector.shape_cast %123 : vector<1x32x32xbf16> to vector<32x32xbf16>
    %125 = arith.truncf %122 : vector<32x128xf32> to vector<32x128xbf16>
    %cst_110 = arith.constant dense<0.000000e+00> : vector<32x128xf32>
    %126 = tpu.matmul %124, %125, %cst_110 {dimension_numbers = #tpu.dot_dimension_numbers<[1], [0], [0], [1], [0, 0, 1, 1], [], []>} : vector<32x32xbf16>, vector<32x128xbf16>, vector<32x128xf32> -> vector<32x128xf32>
    %127 = arith.addf %119, %126 : vector<32x128xf32>
    %c2_111 = arith.constant 2 : index
    %c0_112 = arith.constant 0 : index
    %c0_113 = arith.constant 0 : index
    %128 = vector.load %arg11[%c2_111, %c0_112, %c0_113] : memref<9x128x128xbf16, #tpu.memory_space<vmem>>, vector<1x128x128xbf16>
    %129 = vector.shape_cast %128 : vector<1x128x128xbf16> to vector<128x128xbf16>
    %cst_114 = arith.constant dense<0.000000e+00> : vector<32x128xf32>
    %130 = tpu.matmul %110, %129, %cst_114 {dimension_numbers = #tpu.dot_dimension_numbers<[1], [0], [0], [1], [0, 0, 1, 1], [], []>} : vector<32x128xbf16>, vector<128x128xbf16>, vector<32x128xf32> -> vector<32x128xf32>
    %c2_115 = arith.constant 2 : index
    %c0_116 = arith.constant 0 : index
    %c0_117 = arith.constant 0 : index
    %131 = vector.load %arg9[%c2_115, %c0_116, %c0_117] : memref<9x32x32xbf16, #tpu.memory_space<vmem>>, vector<1x32x32xbf16>
    %132 = vector.shape_cast %131 : vector<1x32x32xbf16> to vector<32x32xbf16>
    %133 = arith.truncf %130 : vector<32x128xf32> to vector<32x128xbf16>
    %cst_118 = arith.constant dense<0.000000e+00> : vector<32x128xf32>
    %134 = tpu.matmul %132, %133, %cst_118 {dimension_numbers = #tpu.dot_dimension_numbers<[1], [0], [0], [1], [0, 0, 1, 1], [], []>} : vector<32x32xbf16>, vector<32x128xbf16>, vector<32x128xf32> -> vector<32x128xf32>
    %135 = arith.addf %127, %134 : vector<32x128xf32>
    %c3_119 = arith.constant 3 : index
    %c0_120 = arith.constant 0 : index
    %c0_121 = arith.constant 0 : index
    %136 = vector.load %arg11[%c3_119, %c0_120, %c0_121] : memref<9x128x128xbf16, #tpu.memory_space<vmem>>, vector<1x128x128xbf16>
    %137 = vector.shape_cast %136 : vector<1x128x128xbf16> to vector<128x128xbf16>
    %cst_122 = arith.constant dense<0.000000e+00> : vector<32x128xf32>
    %138 = tpu.matmul %110, %137, %cst_122 {dimension_numbers = #tpu.dot_dimension_numbers<[1], [0], [0], [1], [0, 0, 1, 1], [], []>} : vector<32x128xbf16>, vector<128x128xbf16>, vector<32x128xf32> -> vector<32x128xf32>
    %c3_123 = arith.constant 3 : index
    %c0_124 = arith.constant 0 : index
    %c0_125 = arith.constant 0 : index
    %139 = vector.load %arg9[%c3_123, %c0_124, %c0_125] : memref<9x32x32xbf16, #tpu.memory_space<vmem>>, vector<1x32x32xbf16>
    %140 = vector.shape_cast %139 : vector<1x32x32xbf16> to vector<32x32xbf16>
    %141 = arith.truncf %138 : vector<32x128xf32> to vector<32x128xbf16>
    %cst_126 = arith.constant dense<0.000000e+00> : vector<32x128xf32>
    %142 = tpu.matmul %140, %141, %cst_126 {dimension_numbers = #tpu.dot_dimension_numbers<[1], [0], [0], [1], [0, 0, 1, 1], [], []>} : vector<32x32xbf16>, vector<32x128xbf16>, vector<32x128xf32> -> vector<32x128xf32>
    %143 = arith.addf %135, %142 : vector<32x128xf32>
    %c4_127 = arith.constant 4 : index
    %c0_128 = arith.constant 0 : index
    %c0_129 = arith.constant 0 : index
    %144 = vector.load %arg11[%c4_127, %c0_128, %c0_129] : memref<9x128x128xbf16, #tpu.memory_space<vmem>>, vector<1x128x128xbf16>
    %145 = vector.shape_cast %144 : vector<1x128x128xbf16> to vector<128x128xbf16>
    %cst_130 = arith.constant dense<0.000000e+00> : vector<32x128xf32>
    %146 = tpu.matmul %110, %145, %cst_130 {dimension_numbers = #tpu.dot_dimension_numbers<[1], [0], [0], [1], [0, 0, 1, 1], [], []>} : vector<32x128xbf16>, vector<128x128xbf16>, vector<32x128xf32> -> vector<32x128xf32>
    %c4_131 = arith.constant 4 : index
    %c0_132 = arith.constant 0 : index
    %c0_133 = arith.constant 0 : index
    %147 = vector.load %arg9[%c4_131, %c0_132, %c0_133] : memref<9x32x32xbf16, #tpu.memory_space<vmem>>, vector<1x32x32xbf16>
    %148 = vector.shape_cast %147 : vector<1x32x32xbf16> to vector<32x32xbf16>
    %149 = arith.truncf %146 : vector<32x128xf32> to vector<32x128xbf16>
    %cst_134 = arith.constant dense<0.000000e+00> : vector<32x128xf32>
    %150 = tpu.matmul %148, %149, %cst_134 {dimension_numbers = #tpu.dot_dimension_numbers<[1], [0], [0], [1], [0, 0, 1, 1], [], []>} : vector<32x32xbf16>, vector<32x128xbf16>, vector<32x128xf32> -> vector<32x128xf32>
    %151 = arith.addf %143, %150 : vector<32x128xf32>
    %c5_135 = arith.constant 5 : index
    %c0_136 = arith.constant 0 : index
    %c0_137 = arith.constant 0 : index
    %152 = vector.load %arg11[%c5_135, %c0_136, %c0_137] : memref<9x128x128xbf16, #tpu.memory_space<vmem>>, vector<1x128x128xbf16>
    %153 = vector.shape_cast %152 : vector<1x128x128xbf16> to vector<128x128xbf16>
    %cst_138 = arith.constant dense<0.000000e+00> : vector<32x128xf32>
    %154 = tpu.matmul %110, %153, %cst_138 {dimension_numbers = #tpu.dot_dimension_numbers<[1], [0], [0], [1], [0, 0, 1, 1], [], []>} : vector<32x128xbf16>, vector<128x128xbf16>, vector<32x128xf32> -> vector<32x128xf32>
    %c5_139 = arith.constant 5 : index
    %c0_140 = arith.constant 0 : index
    %c0_141 = arith.constant 0 : index
    %155 = vector.load %arg9[%c5_139, %c0_140, %c0_141] : memref<9x32x32xbf16, #tpu.memory_space<vmem>>, vector<1x32x32xbf16>
    %156 = vector.shape_cast %155 : vector<1x32x32xbf16> to vector<32x32xbf16>
    %157 = arith.truncf %154 : vector<32x128xf32> to vector<32x128xbf16>
    %cst_142 = arith.constant dense<0.000000e+00> : vector<32x128xf32>
    %158 = tpu.matmul %156, %157, %cst_142 {dimension_numbers = #tpu.dot_dimension_numbers<[1], [0], [0], [1], [0, 0, 1, 1], [], []>} : vector<32x32xbf16>, vector<32x128xbf16>, vector<32x128xf32> -> vector<32x128xf32>
    %159 = arith.addf %151, %158 : vector<32x128xf32>
    %c6_143 = arith.constant 6 : index
    %c0_144 = arith.constant 0 : index
    %c0_145 = arith.constant 0 : index
    %160 = vector.load %arg11[%c6_143, %c0_144, %c0_145] : memref<9x128x128xbf16, #tpu.memory_space<vmem>>, vector<1x128x128xbf16>
    %161 = vector.shape_cast %160 : vector<1x128x128xbf16> to vector<128x128xbf16>
    %cst_146 = arith.constant dense<0.000000e+00> : vector<32x128xf32>
    %162 = tpu.matmul %110, %161, %cst_146 {dimension_numbers = #tpu.dot_dimension_numbers<[1], [0], [0], [1], [0, 0, 1, 1], [], []>} : vector<32x128xbf16>, vector<128x128xbf16>, vector<32x128xf32> -> vector<32x128xf32>
    %c6_147 = arith.constant 6 : index
    %c0_148 = arith.constant 0 : index
    %c0_149 = arith.constant 0 : index
    %163 = vector.load %arg9[%c6_147, %c0_148, %c0_149] : memref<9x32x32xbf16, #tpu.memory_space<vmem>>, vector<1x32x32xbf16>
    %164 = vector.shape_cast %163 : vector<1x32x32xbf16> to vector<32x32xbf16>
    %165 = arith.truncf %162 : vector<32x128xf32> to vector<32x128xbf16>
    %cst_150 = arith.constant dense<0.000000e+00> : vector<32x128xf32>
    %166 = tpu.matmul %164, %165, %cst_150 {dimension_numbers = #tpu.dot_dimension_numbers<[1], [0], [0], [1], [0, 0, 1, 1], [], []>} : vector<32x32xbf16>, vector<32x128xbf16>, vector<32x128xf32> -> vector<32x128xf32>
    %167 = arith.addf %159, %166 : vector<32x128xf32>
    %c7 = arith.constant 7 : index
    %c0_151 = arith.constant 0 : index
    %c0_152 = arith.constant 0 : index
    %168 = vector.load %arg11[%c7, %c0_151, %c0_152] : memref<9x128x128xbf16, #tpu.memory_space<vmem>>, vector<1x128x128xbf16>
    %169 = vector.shape_cast %168 : vector<1x128x128xbf16> to vector<128x128xbf16>
    %cst_153 = arith.constant dense<0.000000e+00> : vector<32x128xf32>
    %170 = tpu.matmul %110, %169, %cst_153 {dimension_numbers = #tpu.dot_dimension_numbers<[1], [0], [0], [1], [0, 0, 1, 1], [], []>} : vector<32x128xbf16>, vector<128x128xbf16>, vector<32x128xf32> -> vector<32x128xf32>
    %c7_154 = arith.constant 7 : index
    %c0_155 = arith.constant 0 : index
    %c0_156 = arith.constant 0 : index
    %171 = vector.load %arg9[%c7_154, %c0_155, %c0_156] : memref<9x32x32xbf16, #tpu.memory_space<vmem>>, vector<1x32x32xbf16>
    %172 = vector.shape_cast %171 : vector<1x32x32xbf16> to vector<32x32xbf16>
    %173 = arith.truncf %170 : vector<32x128xf32> to vector<32x128xbf16>
    %cst_157 = arith.constant dense<0.000000e+00> : vector<32x128xf32>
    %174 = tpu.matmul %172, %173, %cst_157 {dimension_numbers = #tpu.dot_dimension_numbers<[1], [0], [0], [1], [0, 0, 1, 1], [], []>} : vector<32x32xbf16>, vector<32x128xbf16>, vector<32x128xf32> -> vector<32x128xf32>
    %175 = arith.addf %167, %174 : vector<32x128xf32>
    %c8 = arith.constant 8 : index
    %c0_158 = arith.constant 0 : index
    %c0_159 = arith.constant 0 : index
    %176 = vector.load %arg11[%c8, %c0_158, %c0_159] : memref<9x128x128xbf16, #tpu.memory_space<vmem>>, vector<1x128x128xbf16>
    %177 = vector.shape_cast %176 : vector<1x128x128xbf16> to vector<128x128xbf16>
    %cst_160 = arith.constant dense<0.000000e+00> : vector<32x128xf32>
    %178 = tpu.matmul %110, %177, %cst_160 {dimension_numbers = #tpu.dot_dimension_numbers<[1], [0], [0], [1], [0, 0, 1, 1], [], []>} : vector<32x128xbf16>, vector<128x128xbf16>, vector<32x128xf32> -> vector<32x128xf32>
    %c8_161 = arith.constant 8 : index
    %c0_162 = arith.constant 0 : index
    %c0_163 = arith.constant 0 : index
    %179 = vector.load %arg9[%c8_161, %c0_162, %c0_163] : memref<9x32x32xbf16, #tpu.memory_space<vmem>>, vector<1x32x32xbf16>
    %180 = vector.shape_cast %179 : vector<1x32x32xbf16> to vector<32x32xbf16>
    %181 = arith.truncf %178 : vector<32x128xf32> to vector<32x128xbf16>
    %cst_164 = arith.constant dense<0.000000e+00> : vector<32x128xf32>
    %182 = tpu.matmul %180, %181, %cst_164 {dimension_numbers = #tpu.dot_dimension_numbers<[1], [0], [0], [1], [0, 0, 1, 1], [], []>} : vector<32x32xbf16>, vector<32x128xbf16>, vector<32x128xf32> -> vector<32x128xf32>
    %183 = arith.addf %175, %182 : vector<32x128xf32>
    %c0_165 = arith.constant 0 : index
    %c0_166 = arith.constant 0 : index
    %184 = vector.load %arg10[%c0_165, %c0_166] : memref<32x1xf32, #tpu.memory_space<vmem>>, vector<32x1xf32>
    %185 = vector.broadcast %184 : vector<32x1xf32> to vector<32x128xf32>
    %186 = arith.addf %183, %185 : vector<32x128xf32>
    %c0_167 = arith.constant 0 : index
    %c0_168 = arith.constant 0 : index
    %187 = vector.load %arg12[%c0_167, %c0_168] : memref<32x128xf32, #tpu.memory_space<vmem>>, vector<32x128xf32>
    tpu.vector_store %arg12[%c0_167, %c0_168], %186 {strides = array<i32>} : memref<32x128xf32, #tpu.memory_space<vmem>>, vector<32x128xf32>,
    return
  }
  func.func @transform_0(%arg0: i32) -> (i32, i32) {
    %c0_i32 = arith.constant 0 : i32
    %c0_i32_0 = arith.constant 0 : i32
    %c0_i32_1 = arith.constant 0 : i32
    return %c0_i32, %c0_i32_0 : i32, i32
  }
  func.func @transform_1(%arg0: i32) -> (i32, i32, i32) {
    %c0_i32 = arith.constant 0 : i32
    %c0_i32_0 = arith.constant 0 : i32
    %c0_i32_1 = arith.constant 0 : i32
    %c0_i32_2 = arith.constant 0 : i32
    return %c0_i32, %c0_i32_0, %c0_i32_1 : i32, i32, i32
  }
  func.func @transform_2(%arg0: i32) -> (i32, i32, i32) {
    %c0_i32 = arith.constant 0 : i32
    %c0_i32_0 = arith.constant 0 : i32
    %c0_i32_1 = arith.constant 0 : i32
    %c0_i32_2 = arith.constant 0 : i32
    return %c0_i32, %c0_i32_0, %c0_i32_1 : i32, i32, i32
  }
  func.func @transform_3(%arg0: i32) -> (i32, i32) {
    %c0_i32 = arith.constant 0 : i32
    %c0_i32_0 = arith.constant 0 : i32
    %c0_i32_1 = arith.constant 0 : i32
    return %c0_i32, %c0_i32_0 : i32, i32
  }
  func.func @transform_4(%arg0: i32) -> (i32, i32) {
    %c0_i32 = arith.constant 0 : i32
    %c0_i32_0 = arith.constant 0 : i32
    %c0_i32_1 = arith.constant 0 : i32
    return %c0_i32, %c0_i32_0 : i32, i32
  }
  func.func @transform_5(%arg0: i32) -> (i32, i32) {
    %c0_i32 = arith.constant 0 : i32
    %c0_i32_0 = arith.constant 0 : i32
    %c0_i32_1 = arith.constant 0 : i32
    return %c0_i32, %c0_i32_0 : i32, i32
  }
  func.func @transform_6(%arg0: i32) -> (i32, i32, i32) {
    %c0_i32 = arith.constant 0 : i32
    %c0_i32_0 = arith.constant 0 : i32
    %c0_i32_1 = arith.constant 0 : i32
    %c0_i32_2 = arith.constant 0 : i32
    return %c0_i32, %c0_i32_0, %c0_i32_1 : i32, i32, i32
  }
  func.func @transform_7(%arg0: i32) -> (i32, i32) {
    %c0_i32 = arith.constant 0 : i32
    %c0_i32_0 = arith.constant 0 : i32
    %c0_i32_1 = arith.constant 0 : i32
    return %c0_i32, %c0_i32_0 : i32, i32
  }
  func.func @transform_8(%arg0: i32) -> (i32, i32, i32) {
    %c0_i32 = arith.constant 0 : i32
    %c0_i32_0 = arith.constant 0 : i32
    %c0_i32_1 = arith.constant 0 : i32
    %c0_i32_2 = arith.constant 0 : i32
    return %c0_i32, %c0_i32_0, %c0_i32_1 : i32, i32, i32
  }
  func.func @transform_9(%arg0: i32) -> (i32, i32) {
    %c0_i32 = arith.constant 0 : i32
    %c0_i32_0 = arith.constant 0 : i32
    %c0_i32_1 = arith.constant 0 : i32
    return %c0_i32, %c0_i32_0 : i32, i32
  }
  func.func @transform_10(%arg0: i32) -> (i32, i32, i32) {
    %c0_i32 = arith.constant 0 : i32
    %c0_i32_0 = arith.constant 0 : i32
    %c0_i32_1 = arith.constant 0 : i32
    %c0_i32_2 = arith.constant 0 : i32
    return %c0_i32, %c0_i32_0, %c0_i32_1 : i32, i32, i32
  }
  func.func @transform_11(%arg0: i32) -> (i32, i32) {
    %c0_i32 = arith.constant 0 : i32
    %c0_i32_0 = arith.constant 0 : i32
    %c0_i32_1 = arith.constant 0 : i32
    return %c0_i32, %c0_i32_0 : i32, i32
  }
}

</mosaic_0001>

<llo_original>
// kernel: seq_gtcn_forward.1
$region0: #{seq_gtcn_forward.1}
  #allocation0 [shape = 'u32[]', space=smem, size = 0x4, offset = 0x4, fixed_abs, tag = 'smem constant byte address 0x4 - core index']
  #allocation1 [shape = 'u32[144,128]{1,0:T(1,128)}', space=vmem, size = 0x12000, scoped, tag = 'internal scratch']
  %s0 = inlined_call_operand.vmem [shape: f32[32,128], index: 0, kind: input, shape index: {}]
  %s1 = inlined_call_operand.vmem [shape: bf16[5,128,128], index: 1, kind: input, shape index: {}]
  %s2 = inlined_call_operand.vmem [shape: bf16[5,32,32], index: 2, kind: input, shape index: {}]
  %s3 = inlined_call_operand.hbm [shape: f32[32,128], index: 3, kind: input, shape index: {}]
  %s4 = inlined_call_operand.vmem [shape: bf16[32,32], index: 4, kind: input, shape index: {}]
  %s5 = inlined_call_operand.vmem [shape: f32[32,1], index: 5, kind: input, shape index: {}]
  %s6 = inlined_call_operand.vmem [shape: bf16[6,32,16], index: 6, kind: input, shape index: {}]
  %s7 = inlined_call_operand.vmem [shape: f32[32,1], index: 7, kind: input, shape index: {}]
  %s8 = inlined_call_operand.hbm [shape: bf16[9,32,32], index: 8, kind: input, shape index: {}]
  %s9 = inlined_call_operand.vmem [shape: f32[32,1], index: 9, kind: input, shape index: {}]
  %s10 = inlined_call_operand.hbm [shape: bf16[9,128,128], index: 10, kind: input, shape index: {}]
  %s11 = inlined_call_operand.vmem [shape: f32[32,128], index: 11, kind: output, shape index: {}]
  %s12 = sld [smem:[#allocation0]]
  $region66: #{seq_gtcn_forward.1} parent=0
    _
  %s14 = ssub.s32 1, %s12
  %s15 = scalar_select 0, %s14, %s12
  $region1: #{seq_gtcn_forward.1} parent=0
    #allocation2 [shape = 'u8[16384]{0}', space=vmem, size = 0x4000, scoped, tag = 'input window, operand 3, single buffered']
    #allocation3 [shape = 's32[1]{0}', space=sflag, size = 0x4, scoped, tag = 'scoped memory for seq_gtcn_forward.1']
    #allocation4 [shape = 'u8[73728]{0}', space=vmem, size = 0x12000, scoped, tag = 'input window, operand 8, single buffered']
    #allocation5 [shape = 's32[1]{0}', space=sflag, size = 0x4, scoped, tag = 'scoped memory for seq_gtcn_forward.1']
    #allocation6 [shape = 'u8[294912]{0}', space=vmem, size = 0x48000, scoped, tag = 'input window, operand 10, single buffered']
    %16 = vsyncpa [#allocation3], 0
    %17 = vsyncpa [#allocation5], 0
    // Predicated region
    $region2: #{seq_gtcn_forward.1} parent=1 // pred_check
      _
    $region3: #{seq_gtcn_forward.1} parent=1 // pred_check_branch
      %19 = sbr.rel (0) target = $region5
    $region4: #{seq_gtcn_forward.1} parent=1 // pred_region
      _
    $region5: #{seq_gtcn_forward.1} parent=1 // pred_fallthru
      _
    // Predicated region
    $region6: #{seq_gtcn_forward.1} parent=1 // pred_check
      _
    $region7: #{seq_gtcn_forward.1} parent=1 // pred_check_branch
      %21 = sbr.rel (0) target = $region9
    $region8: #{seq_gtcn_forward.1} parent=1 // pred_region
      _
    $region9: #{seq_gtcn_forward.1} parent=1 // pred_fallthru
      _
    // Predicated region
    $region10: #{seq_gtcn_forward.1} parent=1 // pred_check
      _
    $region11: #{seq_gtcn_forward.1} parent=1 // pred_check_branch
      %23 = sbr.rel (0) target = $region13
    $region12: #{seq_gtcn_forward.1} parent=1 // pred_region
      _
    $region13: #{seq_gtcn_forward.1} parent=1 // pred_fallthru
      _
    // Predicated region
    $region14: #{seq_gtcn_forward.1} parent=1 // pred_check
      _
    $region15: #{seq_gtcn_forward.1} parent=1 // pred_check_branch
      %25 = sbr.rel (0) target = $region17
    $region16: #{seq_gtcn_forward.1} parent=1 // pred_region
      %s27 = ssub.s32 512, 512
      %28 = vsyncadd [#allocation3], %s27
      %s29 = sshll.u32 [#allocation2], 4
      %s30 = int_to_ptr.vmem [resolvable:$true] %s29
      %35 = dma.hbm_to_vmem [thread:$0]  %s3, 512, %s30, [#allocation3], 128, 128, 8
    $region17: #{seq_gtcn_forward.1} parent=1 // pred_fallthru
      _
    // Predicated region
    $region18: #{seq_gtcn_forward.1} parent=1 // pred_check
      _
    $region19: #{seq_gtcn_forward.1} parent=1 // pred_check_branch
      %37 = sbr.rel (0) target = $region21
    $region20: #{seq_gtcn_forward.1} parent=1 // pred_region
      _
    $region21: #{seq_gtcn_forward.1} parent=1 // pred_fallthru
      _
    // Predicated region
    $region22: #{seq_gtcn_forward.1} parent=1 // pred_check
      _
    $region23: #{seq_gtcn_forward.1} parent=1 // pred_check_branch
      %39 = sbr.rel (0) target = $region25
    $region24: #{seq_gtcn_forward.1} parent=1 // pred_region
      _
    $region25: #{seq_gtcn_forward.1} parent=1 // pred_fallthru
      _
    // Predicated region
    $region26: #{seq_gtcn_forward.1} parent=1 // pred_check
      _
    $region27: #{seq_gtcn_forward.1} parent=1 // pred_check_branch
      %41 = sbr.rel (0) target = $region29
    $region28: #{seq_gtcn_forward.1} parent=1 // pred_region
      _
    $region29: #{seq_gtcn_forward.1} parent=1 // pred_fallthru
      _
    // Predicated region
    $region30: #{seq_gtcn_forward.1} parent=1 // pred_check
      _
    $region31: #{seq_gtcn_forward.1} parent=1 // pred_check_branch
      %43 = sbr.rel (0) target = $region33
    $region32: #{seq_gtcn_forward.1} parent=1 // pred_region
      _
    $region33: #{seq_gtcn_forward.1} parent=1 // pred_fallthru
      _
    // Predicated region
    $region34: #{seq_gtcn_forward.1} parent=1 // pred_check
      _
    $region35: #{seq_gtcn_forward.1} parent=1 // pred_check_branch
      %45 = sbr.rel (0) target = $region37
    $region36: #{seq_gtcn_forward.1} parent=1 // pred_region
      %s47 = ssub.s32 2304, 2304
      %48 = vsyncadd [#allocation5], %s47
      %s49 = sshll.u32 [#allocation4], 4
      %s50 = int_to_ptr.vmem [resolvable:$true] %s49
      %55 = dma.hbm_to_vmem [thread:$0]  %s8, 2304, %s50, [#allocation5], 64, 64, 4
    $region37: #{seq_gtcn_forward.1} parent=1 // pred_fallthru
      _
    // Predicated region
    $region38: #{seq_gtcn_forward.1} parent=1 // pred_check
      _
    $region39: #{seq_gtcn_forward.1} parent=1 // pred_check_branch
      %57 = sbr.rel (0) target = $region41
    $region40: #{seq_gtcn_forward.1} parent=1 // pred_region
      _
    $region41: #{seq_gtcn_forward.1} parent=1 // pred_fallthru
      _
    // Predicated region
    $region42: #{seq_gtcn_forward.1} parent=1 // pred_check
      _
    $region43: #{seq_gtcn_forward.1} parent=1 // pred_check_branch
      %59 = sbr.rel (0) target = $region45
    $region44: #{seq_gtcn_forward.1} parent=1 // pred_region
      %s61 = ssub.s32 9216, 9216
      %62 = vsyncadd [#allocation5], %s61
      %s63 = sshll.u32 [#allocation6], 4
      %s64 = int_to_ptr.vmem [resolvable:$true] %s63
      %69 = dma.hbm_to_vmem [thread:$0]  %s10, 9216, %s64, [#allocation5], 64, 64, 4
    $region45: #{seq_gtcn_forward.1} parent=1 // pred_fallthru
      _
    // Predicated region
    $region46: #{seq_gtcn_forward.1} parent=1 // pred_check
      _
    $region47: #{seq_gtcn_forward.1} parent=1 // pred_check_branch
      %71 = sbr.rel (0) target = $region49
    $region48: #{seq_gtcn_forward.1} parent=1 // pred_region
      %72 = dma.done [#allocation3], 512
    $region49: #{seq_gtcn_forward.1} parent=1 // pred_fallthru
      _
    // Predicated region
    $region50: #{seq_gtcn_forward.1} parent=1 // pred_check
      _
    $region51: #{seq_gtcn_forward.1} parent=1 // pred_check_branch
      %74 = sbr.rel (0) target = $region53
    $region52: #{seq_gtcn_forward.1} parent=1 // pred_region
      %75 = dma.done [#allocation5], 2304
    $region53: #{seq_gtcn_forward.1} parent=1 // pred_fallthru
      _
    // Predicated region
    $region54: #{seq_gtcn_forward.1} parent=1 // pred_check
      _
    $region55: #{seq_gtcn_forward.1} parent=1 // pred_check_branch
      %77 = sbr.rel (0) target = $region57
    $region56: #{seq_gtcn_forward.1} parent=1 // pred_region
      %78 = dma.done [#allocation5], 9216
    $region57: #{seq_gtcn_forward.1} parent=1 // pred_fallthru
      _
    %v80 = vld [vmem:[%s0] sm:$0xff]
    %v81 = vld [vmem:[%s0 + $0x8] sm:$0xff]
    %v82 = vld [vmem:[%s0 + $0x10] sm:$0xff]
    %v83 = vld [vmem:[%s0 + $0x18] sm:$0xff]
    %v84 = vpack.c.bf16 %v81, %v80
    %v85 = vpack.c.bf16 %v83, %v82
    %v86 = vld [vmem:[#allocation2] sm:$0xff]
    %v87 = vld [vmem:[#allocation2 + $0x8] sm:$0xff]
    %v88 = vld [vmem:[#allocation2 + $0x10] sm:$0xff]
    %v89 = vld [vmem:[#allocation2 + $0x18] sm:$0xff]
    %v90 = vld [vmem:[%s1] sm:$0xf]
    %v91 = vld [vmem:[%s1 + $0x4] sm:$0xf]
    %v92 = vld [vmem:[%s1 + $0x8] sm:$0xf]
    %v93 = vld [vmem:[%s1 + $0xc] sm:$0xf]
    %v94 = vld [vmem:[%s1 + $0x10] sm:$0xf]
    %v95 = vld [vmem:[%s1 + $0x14] sm:$0xf]
    %v96 = vld [vmem:[%s1 + $0x18] sm:$0xf]
    %v97 = vld [vmem:[%s1 + $0x1c] sm:$0xf]
    %v98 = vld [vmem:[%s1 + $0x20] sm:$0xf]
    %v99 = vld [vmem:[%s1 + $0x24] sm:$0xf]
    %v100 = vld [vmem:[%s1 + $0x28] sm:$0xf]
    %v101 = vld [vmem:[%s1 + $0x2c] sm:$0xf]
    %v102 = vld [vmem:[%s1 + $0x30] sm:$0xf]
    %v103 = vld [vmem:[%s1 + $0x34] sm:$0xf]
    %v104 = vld [vmem:[%s1 + $0x38] sm:$0xf]
    %v105 = vld [vmem:[%s1 + $0x3c] sm:$0xf]
    %v122 = vunpack.c.l.b16 %v90
    %v123 = vunpack.c.l.b16 %v91
    %v124 = vunpack.c.l.b16 %v92
    %v125 = vunpack.c.l.b16 %v93
    %v126 = vunpack.c.l.b16 %v94
    %v127 = vunpack.c.l.b16 %v95
    %v128 = vunpack.c.l.b16 %v96
    %v129 = vunpack.c.l.b16 %v97
    %v130 = vunpack.c.l.b16 %v98
    %v131 = vunpack.c.l.b16 %v99
    %v132 = vunpack.c.l.b16 %v100
    %v133 = vunpack.c.l.b16 %v101
    %v134 = vunpack.c.l.b16 %v102
    %v135 = vunpack.c.l.b16 %v103
    %v136 = vunpack.c.l.b16 %v104
    %v137 = vunpack.c.l.b16 %v105
    %v138 = vpack.c.b16 %v123, %v122
    %v139 = vpack.c.b16 %v125, %v124
    %v140 = vpack.c.b16 %v127, %v126
    %v141 = vpack.c.b16 %v129, %v128
    %v142 = vpack.c.b16 %v131, %v130
    %v143 = vpack.c.b16 %v133, %v132
    %v144 = vpack.c.b16 %v135, %v134
    %v145 = vpack.c.b16 %v137, %v136
    %154 = vmatprep.subr.bf16.mxu0 0
    %155 = vmatpush1.bf16.msra.mxu0 %v138
    %156 = vmatprep.subr.bf16.mxu0 0
    %157 = vmatpush1.bf16.msra.mxu0 %v139
    %158 = vmatprep.subr.bf16.mxu0 0
    %159 = vmatpush1.bf16.msra.mxu0 %v140
    %160 = vmatprep.subr.bf16.mxu0 0
    %161 = vmatpush1.bf16.msra.mxu0 %v141
    %162 = vmatprep.subr.bf16.mxu0 0
    %163 = vmatpush1.bf16.msra.mxu0 %v142
    %164 = vmatprep.subr.bf16.mxu0 0
    %165 = vmatpush1.bf16.msra.mxu0 %v143
    %166 = vmatprep.subr.bf16.mxu0 0
    %167 = vmatpush1.bf16.msra.mxu0 %v144
    %168 = vmatprep.subr.bf16.mxu0 0
    %169 = vmatpush1.bf16.msra.mxu0 %v145
    %170 = vmatprep.subr.bf16.mxu0 0
    %171 = vmatpush1.bf16.msra.mxu0 0
    %172 = vmatprep.subr.bf16.mxu0 0
    %173 = vmatpush1.bf16.msra.mxu0 0
    %174 = vmatprep.subr.bf16.mxu0 0
    %175 = vmatpush1.bf16.msra.mxu0 0
    %176 = vmatprep.subr.bf16.mxu0 0
    %177 = vmatpush1.bf16.msra.mxu0 0
    %178 = vmatprep.subr.bf16.mxu0 0
    %179 = vmatpush1.bf16.msra.mxu0 0
    %180 = vmatprep.subr.bf16.mxu0 0
    %181 = vmatpush1.bf16.msra.mxu0 0
    %182 = vmatprep.subr.bf16.mxu0 0
    %183 = vmatpush1.bf16.msra.mxu0 0
    %184 = vmatprep.subr.bf16.mxu0 0
    %185 = vmatpush1.bf16.msra.mxu0 0
    %186 = vmatprep.mubr.bf16.mxu0 0
    %187 = vmatmul.mubr.bf16.gmra.mrb[0].mxu0 %v84
    %v188 = vpop.f32.mrb[0].mxu0
    %v189 = vadd.f32 0.0, %v188
    %v190 = vpop.f32.mrb[0].mxu0
    %v191 = vpop.f32.mrb[0].mxu0
    %v192 = vadd.f32 0.0, %v191
    %v193 = vpop.f32.mrb[0].mxu0
    %194 = vmatprep.mubr.bf16.mxu0 0
    %195 = vmatmul.mubr.bf16.gmra.mrb[0].mxu0 %v85
    %v196 = vpop.f32.mrb[0].mxu0
    %v197 = vadd.f32 0.0, %v196
    %v198 = vpop.f32.mrb[0].mxu0
    %v199 = vpop.f32.mrb[0].mxu0
    %v200 = vadd.f32 0.0, %v199
    %v201 = vpop.f32.mrb[0].mxu0
    %202 = vdwg.mxu0
    %v203 = vld [vmem:[%s2] sm:$0xf]
    %v204 = vld [vmem:[%s2 + $0x4] sm:$0xf]
    %v205 = vld [vmem:[%s2 + $0x8] sm:$0xf]
    %v206 = vld [vmem:[%s2 + $0xc] sm:$0xf]
    %v207 = vpack.c.bf16 %v192, %v189
    %v208 = vpack.c.bf16 %v200, %v197
    %v213 = vunpack.c.l.b16 %v203
    %v214 = vunpack.c.l.b16 %v204
    %v215 = vunpack.c.l.b16 %v205
    %v216 = vunpack.c.l.b16 %v206
    %v217 = vpack.c.b16 %v214, %v213
    %v218 = vpack.c.b16 %v216, %v215
    %vm219 = vcmask 261120
    %v221 = vsel %vm219, %v217, 0
    %v224 = vsel %vm219, %v218, 0
    %226 = vmatprep.subr.bf16.mxu0 0
    %227 = vmatpush1.bf16.msra.mxu0 %v207
    %228 = vmatprep.subr.bf16.mxu0 0
    %229 = vmatpush1.bf16.msra.mxu0 %v208
    %230 = vmatprep.subr.bf16.mxu0 0
    %231 = vmatpush1.bf16.msra.mxu0 0
    %232 = vmatprep.subr.bf16.mxu0 0
    %233 = vmatpush1.bf16.msra.mxu0 0
    %234 = vmatprep.subr.bf16.mxu0 0
    %235 = vmatpush1.bf16.msra.mxu0 0
    %236 = vmatprep.subr.bf16.mxu0 0
    %237 = vmatpush1.bf16.msra.mxu0 0
    %238 = vmatprep.subr.bf16.mxu0 0
    %239 = vmatpush1.bf16.msra.mxu0 0
    %240 = vmatprep.subr.bf16.mxu0 0
    %241 = vmatpush1.bf16.msra.mxu0 0
    %242 = vmatprep.subr.bf16.mxu0 0
    %243 = vmatpush1.bf16.msra.mxu0 0
    %244 = vmatprep.subr.bf16.mxu0 0
    %245 = vmatpush1.bf16.msra.mxu0 0
    %246 = vmatprep.subr.bf16.mxu0 0
    %247 = vmatpush1.bf16.msra.mxu0 0
    %248 = vmatprep.subr.bf16.mxu0 0
    %249 = vmatpush1.bf16.msra.mxu0 0
    %250 = vmatprep.subr.bf16.mxu0 0
    %251 = vmatpush1.bf16.msra.mxu0 0
    %252 = vmatprep.subr.bf16.mxu0 0
    %253 = vmatpush1.bf16.msra.mxu0 0
    %254 = vmatprep.subr.bf16.mxu0 0
    %255 = vmatpush1.bf16.msra.mxu0 0
    %256 = vmatprep.subr.bf16.mxu0 0
    %257 = vmatpush1.bf16.msra.mxu0 0
    %258 = vmatprep.mubr.bf16.mxu0 0
    %259 = vmatmul.mubr.bf16.gmra.mrb[0].mxu0 %v221
    %v260 = vpop.f32.mrb[0].mxu0
    %v261 = vadd.f32 0.0, %v260
    %v262 = vpop.f32.mrb[0].mxu0
    %v263 = vpop.f32.mrb[0].mxu0
    %v264 = vadd.f32 0.0, %v263
    %v265 = vpop.f32.mrb[0].mxu0
    %266 = vmatprep.mubr.bf16.mxu0 0
    %267 = vmatmul.mubr.bf16.gmra.mrb[0].mxu0 %v224
    %v268 = vpop.f32.mrb[0].mxu0
    %v269 = vadd.f32 0.0, %v268
    %v270 = vpop.f32.mrb[0].mxu0
    %v271 = vpop.f32.mrb[0].mxu0
    %v272 = vadd.f32 0.0, %v271
    %v273 = vpop.f32.mrb[0].mxu0
    %274 = vdwg.mxu0
    %v275 = vadd.f32 %v86, %v261
    %v276 = vadd.f32 %v87, %v264
    %v277 = vadd.f32 %v88, %v269
    %v278 = vadd.f32 %v89, %v272
    %s279 = scalar_lea.vmem %s1, 64
    %v280 = vld [vmem:[%s279] sm:$0xf]
    %v281 = vld [vmem:[%s279 + $0x4] sm:$0xf]
    %v282 = vld [vmem:[%s279 + $0x8] sm:$0xf]
    %v283 = vld [vmem:[%s279 + $0xc] sm:$0xf]
    %v284 = vld [vmem:[%s279 + $0x10] sm:$0xf]
    %v285 = vld [vmem:[%s279 + $0x14] sm:$0xf]
    %v286 = vld [vmem:[%s279 + $0x18] sm:$0xf]
    %v287 = vld [vmem:[%s279 + $0x1c] sm:$0xf]
    %v288 = vld [vmem:[%s279 + $0x20] sm:$0xf]
    %v289 = vld [vmem:[%s279 + $0x24] sm:$0xf]
    %v290 = vld [vmem:[%s279 + $0x28] sm:$0xf]
    %v291 = vld [vmem:[%s279 + $0x2c] sm:$0xf]
    %v292 = vld [vmem:[%s279 + $0x30] sm:$0xf]
    %v293 = vld [vmem:[%s279 + $0x34] sm:$0xf]
    %v294 = vld [vmem:[%s279 + $0x38] sm:$0xf]
    %v295 = vld [vmem:[%s279 + $0x3c] sm:$0xf]
    %v312 = vunpack.c.l.b16 %v280
    %v313 = vunpack.c.l.b16 %v281
    %v314 = vunpack.c.l.b16 %v282
    %v315 = vunpack.c.l.b16 %v283
    %v316 = vunpack.c.l.b16 %v284
    %v317 = vunpack.c.l.b16 %v285
    %v318 = vunpack.c.l.b16 %v286
    %v319 = vunpack.c.l.b16 %v287
    %v320 = vunpack.c.l.b16 %v288
    %v321 = vunpack.c.l.b16 %v289
    %v322 = vunpack.c.l.b16 %v290
    %v323 = vunpack.c.l.b16 %v291
    %v324 = vunpack.c.l.b16 %v292
    %v325 = vunpack.c.l.b16 %v293
    %v326 = vunpack.c.l.b16 %v294
    %v327 = vunpack.c.l.b16 %v295
    %v328 = vpack.c.b16 %v313, %v312
    %v329 = vpack.c.b16 %v315, %v314
    %v330 = vpack.c.b16 %v317, %v316
    %v331 = vpack.c.b16 %v319, %v318
    %v332 = vpack.c.b16 %v321, %v320
    %v333 = vpack.c.b16 %v323, %v322
    %v334 = vpack.c.b16 %v325, %v324
    %v335 = vpack.c.b16 %v327, %v326
    %344 = vmatprep.subr.bf16.mxu0 0
    %345 = vmatpush1.bf16.msra.mxu0 %v328
    %346 = vmatprep.subr.bf16.mxu0 0
    %347 = vmatpush1.bf16.msra.mxu0 %v329
    %348 = vmatprep.subr.bf16.mxu0 0
    %349 = vmatpush1.bf16.msra.mxu0 %v330
    %350 = vmatprep.subr.bf16.mxu0 0
    %351 = vmatpush1.bf16.msra.mxu0 %v331
    %352 = vmatprep.subr.bf16.mxu0 0
    %353 = vmatpush1.bf16.msra.mxu0 %v332
    %354 = vmatprep.subr.bf16.mxu0 0
    %355 = vmatpush1.bf16.msra.mxu0 %v333
    %356 = vmatprep.subr.bf16.mxu0 0
    %357 = vmatpush1.bf16.msra.mxu0 %v334
    %358 = vmatprep.subr.bf16.mxu0 0
    %359 = vmatpush1.bf16.msra.mxu0 %v335
    %360 = vmatprep.subr.bf16.mxu0 0
    %361 = vmatpush1.bf16.msra.mxu0 0
    %362 = vmatprep.subr.bf16.mxu0 0
    %363 = vmatpush1.bf16.msra.mxu0 0
    %364 = vmatprep.subr.bf16.mxu0 0
    %365 = vmatpush1.bf16.msra.mxu0 0
    %366 = vmatprep.subr.bf16.mxu0 0
    %367 = vmatpush1.bf16.msra.mxu0 0
    %368 = vmatprep.subr.bf16.mxu0 0
    %369 = vmatpush1.bf16.msra.mxu0 0
    %370 = vmatprep.subr.bf16.mxu0 0
    %371 = vmatpush1.bf16.msra.mxu0 0
    %372 = vmatprep.subr.bf16.mxu0 0
    %373 = vmatpush1.bf16.msra.mxu0 0
    %374 = vmatprep.subr.bf16.mxu0 0
    %375 = vmatpush1.bf16.msra.mxu0 0
    %376 = vmatprep.mubr.bf16.mxu0 0
    %377 = vmatmul.mubr.bf16.gmra.mrb[0].mxu0 %v84
    %v378 = vpop.f32.mrb[0].mxu0
    %v379 = vadd.f32 0.0, %v378
    %v380 = vpop.f32.mrb[0].mxu0
    %v381 = vpop.f32.mrb[0].mxu0
    %v382 = vadd.f32 0.0, %v381
    %v383 = vpop.f32.mrb[0].mxu0
    %384 = vmatprep.mubr.bf16.mxu0 0
    %385 = vmatmul.mubr.bf16.gmra.mrb[0].mxu0 %v85
    %v386 = vpop.f32.mrb[0].mxu0
    %v387 = vadd.f32 0.0, %v386
    %v388 = vpop.f32.mrb[0].mxu0
    %v389 = vpop.f32.mrb[0].mxu0
    %v390 = vadd.f32 0.0, %v389
    %v391 = vpop.f32.mrb[0].mxu0
    %392 = vdwg.mxu0
    %s393 = scalar_lea.vmem %s2, 16
    %v394 = vld [vmem:[%s393] sm:$0xf]
    %v395 = vld [vmem:[%s393 + $0x4] sm:$0xf]
    %v396 = vld [vmem:[%s393 + $0x8] sm:$0xf]
    %v397 = vld [vmem:[%s393 + $0xc] sm:$0xf]
    %v398 = vpack.c.bf16 %v382, %v379
    %v399 = vpack.c.bf16 %v390, %v387
    %v404 = vunpack.c.l.b16 %v394
    %v405 = vunpack.c.l.b16 %v395
    %v406 = vunpack.c.l.b16 %v396
    %v407 = vunpack.c.l.b16 %v397
    %v408 = vpack.c.b16 %v405, %v404
    %v409 = vpack.c.b16 %v407, %v406
    %v411 = vsel %vm219, %v408, 0
    %v414 = vsel %vm219, %v409, 0
    %416 = vmatprep.subr.bf16.mxu0 0
    %417 = vmatpush1.bf16.msra.mxu0 %v398
    %418 = vmatprep.subr.bf16.mxu0 0
    %419 = vmatpush1.bf16.msra.mxu0 %v399
    %420 = vmatprep.subr.bf16.mxu0 0
    %421 = vmatpush1.bf16.msra.mxu0 0
    %422 = vmatprep.subr.bf16.mxu0 0
    %423 = vmatpush1.bf16.msra.mxu0 0
    %424 = vmatprep.subr.bf16.mxu0 0
    %425 = vmatpush1.bf16.msra.mxu0 0
    %426 = vmatprep.subr.bf16.mxu0 0
    %427 = vmatpush1.bf16.msra.mxu0 0
    %428 = vmatprep.subr.bf16.mxu0 0
    %429 = vmatpush1.bf16.msra.mxu0 0
    %430 = vmatprep.subr.bf16.mxu0 0
    %431 = vmatpush1.bf16.msra.mxu0 0
    %432 = vmatprep.subr.bf16.mxu0 0
    %433 = vmatpush1.bf16.msra.mxu0 0
    %434 = vmatprep.subr.bf16.mxu0 0
    %435 = vmatpush1.bf16.msra.mxu0 0
    %436 = vmatprep.subr.bf16.mxu0 0
    %437 = vmatpush1.bf16.msra.mxu0 0
    %438 = vmatprep.subr.bf16.mxu0 0
    %439 = vmatpush1.bf16.msra.mxu0 0
    %440 = vmatprep.subr.bf16.mxu0 0
    %441 = vmatpush1.bf16.msra.mxu0 0
    %442 = vmatprep.subr.bf16.mxu0 0
    %443 = vmatpush1.bf16.msra.mxu0 0
    %444 = vmatprep.subr.bf16.mxu0 0
    %445 = vmatpush1.bf16.msra.mxu0 0
    %446 = vmatprep.subr.bf16.mxu0 0
    %447 = vmatpush1.bf16.msra.mxu0 0
    %448 = vmatprep.mubr.bf16.mxu0 0
    %449 = vmatmul.mubr.bf16.gmra.mrb[0].mxu0 %v411
    %v450 = vpop.f32.mrb[0].mxu0
    %v451 = vadd.f32 0.0, %v450
    %v452 = vpop.f32.mrb[0].mxu0
    %v453 = vpop.f32.mrb[0].mxu0
    %v454 = vadd.f32 0.0, %v453
    %v455 = vpop.f32.mrb[0].mxu0
    %456 = vmatprep.mubr.bf16.mxu0 0
    %457 = vmatmul.mubr.bf16.gmra.mrb[0].mxu0 %v414
    %v458 = vpop.f32.mrb[0].mxu0
    %v459 = vadd.f32 0.0, %v458
    %v460 = vpop.f32.mrb[0].mxu0
    %v461 = vpop.f32.mrb[0].mxu0
    %v462 = vadd.f32 0.0, %v461
    %v463 = vpop.f32.mrb[0].mxu0
    %464 = vdwg.mxu0
    %v465 = vadd.f32 %v275, %v451
    %v466 = vadd.f32 %v276, %v454
    %v467 = vadd.f32 %v277, %v459
    %v468 = vadd.f32 %v278, %v462
    %s469 = scalar_lea.vmem %s1, 128
    %v470 = vld [vmem:[%s469] sm:$0xf]
    %v471 = vld [vmem:[%s469 + $0x4] sm:$0xf]
    %v472 = vld [vmem:[%s469 + $0x8] sm:$0xf]
    %v473 = vld [vmem:[%s469 + $0xc] sm:$0xf]
    %v474 = vld [vmem:[%s469 + $0x10] sm:$0xf]
    %v475 = vld [vmem:[%s469 + $0x14] sm:$0xf]
    %v476 = vld [vmem:[%s469 + $0x18] sm:$0xf]
    %v477 = vld [vmem:[%s469 + $0x1c] sm:$0xf]
    %v478 = vld [vmem:[%s469 + $0x20] sm:$0xf]
    %v479 = vld [vmem:[%s469 + $0x24] sm:$0xf]
    %v480 = vld [vmem:[%s469 + $0x28] sm:$0xf]
    %v481 = vld [vmem:[%s469 + $0x2c] sm:$0xf]
    %v482 = vld [vmem:[%s469 + $0x30] sm:$0xf]
    %v483 = vld [vmem:[%s469 + $0x34] sm:$0xf]
    %v484 = vld [vmem:[%s469 + $0x38] sm:$0xf]
    %v485 = vld [vmem:[%s469 + $0x3c] sm:$0xf]
    %v502 = vunpack.c.l.b16 %v470
    %v503 = vunpack.c.l.b16 %v471
    %v504 = vunpack.c.l.b16 %v472
    %v505 = vunpack.c.l.b16 %v473
    %v506 = vunpack.c.l.b16 %v474
    %v507 = vunpack.c.l.b16 %v475
    %v508 = vunpack.c.l.b16 %v476
    %v509 = vunpack.c.l.b16 %v477
    %v510 = vunpack.c.l.b16 %v478
    %v511 = vunpack.c.l.b16 %v479
    %v512 = vunpack.c.l.b16 %v480
    %v513 = vunpack.c.l.b16 %v481
    %v514 = vunpack.c.l.b16 %v482
    %v515 = vunpack.c.l.b16 %v483
    %v516 = vunpack.c.l.b16 %v484
    %v517 = vunpack.c.l.b16 %v485
    %v518 = vpack.c.b16 %v503, %v502
    %v519 = vpack.c.b16 %v505, %v504
    %v520 = vpack.c.b16 %v507, %v506
    %v521 = vpack.c.b16 %v509, %v508
    %v522 = vpack.c.b16 %v511, %v510
    %v523 = vpack.c.b16 %v513, %v512
    %v524 = vpack.c.b16 %v515, %v514
    %v525 = vpack.c.b16 %v517, %v516
    %534 = vmatprep.subr.bf16.mxu0 0
    %535 = vmatpush1.bf16.msra.mxu0 %v518
    %536 = vmatprep.subr.bf16.mxu0 0
    %537 = vmatpush1.bf16.msra.mxu0 %v519
    %538 = vmatprep.subr.bf16.mxu0 0
    %539 = vmatpush1.bf16.msra.mxu0 %v520
    %540 = vmatprep.subr.bf16.mxu0 0
    %541 = vmatpush1.bf16.msra.mxu0 %v521
    %542 = vmatprep.subr.bf16.mxu0 0
    %543 = vmatpush1.bf16.msra.mxu0 %v522
    %544 = vmatprep.subr.bf16.mxu0 0
    %545 = vmatpush1.bf16.msra.mxu0 %v523
    %546 = vmatprep.subr.bf16.mxu0 0
    %547 = vmatpush1.bf16.msra.mxu0 %v524
    %548 = vmatprep.subr.bf16.mxu0 0
    %549 = vmatpush1.bf16.msra.mxu0 %v525
    %550 = vmatprep.subr.bf16.mxu0 0
    %551 = vmatpush1.bf16.msra.mxu0 0
    %552 = vmatprep.subr.bf16.mxu0 0
    %553 = vmatpush1.bf16.msra.mxu0 0
    %554 = vmatprep.subr.bf16.mxu0 0
    %555 = vmatpush1.bf16.msra.mxu0 0
    %556 = vmatprep.subr.bf16.mxu0 0
    %557 = vmatpush1.bf16.msra.mxu0 0
    %558 = vmatprep.subr.bf16.mxu0 0
    %559 = vmatpush1.bf16.msra.mxu0 0
    %560 = vmatprep.subr.bf16.mxu0 0
    %561 = vmatpush1.bf16.msra.mxu0 0
    %562 = vmatprep.subr.bf16.mxu0 0
    %563 = vmatpush1.bf16.msra.mxu0 0
    %564 = vmatprep.subr.bf16.mxu0 0
    %565 = vmatpush1.bf16.msra.mxu0 0
    %566 = vmatprep.mubr.bf16.mxu0 0
    %567 = vmatmul.mubr.bf16.gmra.mrb[0].mxu0 %v84
    %v568 = vpop.f32.mrb[0].mxu0
    %v569 = vadd.f32 0.0, %v568
    %v570 = vpop.f32.mrb[0].mxu0
    %v571 = vpop.f32.mrb[0].mxu0
    %v572 = vadd.f32 0.0, %v571
    %v573 = vpop.f32.mrb[0].mxu0
    %574 = vmatprep.mubr.bf16.mxu0 0
    %575 = vmatmul.mubr.bf16.gmra.mrb[0].mxu0 %v85
    %v576 = vpop.f32.mrb[0].mxu0
    %v577 = vadd.f32 0.0, %v576
    %v578 = vpop.f32.mrb[0].mxu0
    %v579 = vpop.f32.mrb[0].mxu0
    %v580 = vadd.f32 0.0, %v579
    %v581 = vpop.f32.mrb[0].mxu0
    %582 = vdwg.mxu0
    %s583 = scalar_lea.vmem %s2, 32
    %v584 = vld [vmem:[%s583] sm:$0xf]
    %v585 = vld [vmem:[%s583 + $0x4] sm:$0xf]
    %v586 = vld [vmem:[%s583 + $0x8] sm:$0xf]
    %v587 = vld [vmem:[%s583 + $0xc] sm:$0xf]
    %v588 = vpack.c.bf16 %v572, %v569
    %v589 = vpack.c.bf16 %v580, %v577
    %v594 = vunpack.c.l.b16 %v584
    %v595 = vunpack.c.l.b16 %v585
    %v596 = vunpack.c.l.b16 %v586
    %v597 = vunpack.c.l.b16 %v587
    %v598 = vpack.c.b16 %v595, %v594
    %v599 = vpack.c.b16 %v597, %v596
    %v601 = vsel %vm219, %v598, 0
    %v604 = vsel %vm219, %v599, 0
    %606 = vmatprep.subr.bf16.mxu0 0
    %607 = vmatpush1.bf16.msra.mxu0 %v588
    %608 = vmatprep.subr.bf16.mxu0 0
    %609 = vmatpush1.bf16.msra.mxu0 %v589
    %610 = vmatprep.subr.bf16.mxu0 0
    %611 = vmatpush1.bf16.msra.mxu0 0
    %612 = vmatprep.subr.bf16.mxu0 0
    %613 = vmatpush1.bf16.msra.mxu0 0
    %614 = vmatprep.subr.bf16.mxu0 0
    %615 = vmatpush1.bf16.msra.mxu0 0
    %616 = vmatprep.subr.bf16.mxu0 0
    %617 = vmatpush1.bf16.msra.mxu0 0
    %618 = vmatprep.subr.bf16.mxu0 0
    %619 = vmatpush1.bf16.msra.mxu0 0
    %620 = vmatprep.subr.bf16.mxu0 0
    %621 = vmatpush1.bf16.msra.mxu0 0
    %622 = vmatprep.subr.bf16.mxu0 0
    %623 = vmatpush1.bf16.msra.mxu0 0
    %624 = vmatprep.subr.bf16.mxu0 0
    %625 = vmatpush1.bf16.msra.mxu0 0
    %626 = vmatprep.subr.bf16.mxu0 0
    %627 = vmatpush1.bf16.msra.mxu0 0
    %628 = vmatprep.subr.bf16.mxu0 0
    %629 = vmatpush1.bf16.msra.mxu0 0
    %630 = vmatprep.subr.bf16.mxu0 0
    %631 = vmatpush1.bf16.msra.mxu0 0
    %632 = vmatprep.subr.bf16.mxu0 0
    %633 = vmatpush1.bf16.msra.mxu0 0
    %634 = vmatprep.subr.bf16.mxu0 0
    %635 = vmatpush1.bf16.msra.mxu0 0
    %636 = vmatprep.subr.bf16.mxu0 0
    %637 = vmatpush1.bf16.msra.mxu0 0
    %638 = vmatprep.mubr.bf16.mxu0 0
    %639 = vmatmul.mubr.bf16.gmra.mrb[0].mxu0 %v601
    %v640 = vpop.f32.mrb[0].mxu0
    %v641 = vadd.f32 0.0, %v640
    %v642 = vpop.f32.mrb[0].mxu0
    %v643 = vpop.f32.mrb[0].mxu0
    %v644 = vadd.f32 0.0, %v643
    %v645 = vpop.f32.mrb[0].mxu0
    %646 = vmatprep.mubr.bf16.mxu0 0
    %647 = vmatmul.mubr.bf16.gmra.mrb[0].mxu0 %v604
    %v648 = vpop.f32.mrb[0].mxu0
    %v649 = vadd.f32 0.0, %v648
    %v650 = vpop.f32.mrb[0].mxu0
    %v651 = vpop.f32.mrb[0].mxu0
    %v652 = vadd.f32 0.0, %v651
    %v653 = vpop.f32.mrb[0].mxu0
    %654 = vdwg.mxu0
    %v655 = vadd.f32 %v465, %v641
    %v656 = vadd.f32 %v466, %v644
    %v657 = vadd.f32 %v467, %v649
    %v658 = vadd.f32 %v468, %v652
    %s659 = scalar_lea.vmem %s1, 192
    %v660 = vld [vmem:[%s659] sm:$0xf]
    %v661 = vld [vmem:[%s659 + $0x4] sm:$0xf]
    %v662 = vld [vmem:[%s659 + $0x8] sm:$0xf]
    %v663 = vld [vmem:[%s659 + $0xc] sm:$0xf]
    %v664 = vld [vmem:[%s659 + $0x10] sm:$0xf]
    %v665 = vld [vmem:[%s659 + $0x14] sm:$0xf]
    %v666 = vld [vmem:[%s659 + $0x18] sm:$0xf]
    %v667 = vld [vmem:[%s659 + $0x1c] sm:$0xf]
    %v668 = vld [vmem:[%s659 + $0x20] sm:$0xf]
    %v669 = vld [vmem:[%s659 + $0x24] sm:$0xf]
    %v670 = vld [vmem:[%s659 + $0x28] sm:$0xf]
    %v671 = vld [vmem:[%s659 + $0x2c] sm:$0xf]
    %v672 = vld [vmem:[%s659 + $0x30] sm:$0xf]
    %v673 = vld [vmem:[%s659 + $0x34] sm:$0xf]
    %v674 = vld [vmem:[%s659 + $0x38] sm:$0xf]
    %v675 = vld [vmem:[%s659 + $0x3c] sm:$0xf]
    %v692 = vunpack.c.l.b16 %v660
    %v693 = vunpack.c.l.b16 %v661
    %v694 = vunpack.c.l.b16 %v662
    %v695 = vunpack.c.l.b16 %v663
    %v696 = vunpack.c.l.b16 %v664
    %v697 = vunpack.c.l.b16 %v665
    %v698 = vunpack.c.l.b16 %v666
    %v699 = vunpack.c.l.b16 %v667
    %v700 = vunpack.c.l.b16 %v668
    %v701 = vunpack.c.l.b16 %v669
    %v702 = vunpack.c.l.b16 %v670
    %v703 = vunpack.c.l.b16 %v671
    %v704 = vunpack.c.l.b16 %v672
    %v705 = vunpack.c.l.b16 %v673
    %v706 = vunpack.c.l.b16 %v674
    %v707 = vunpack.c.l.b16 %v675
    %v708 = vpack.c.b16 %v693, %v692
    %v709 = vpack.c.b16 %v695, %v694
    %v710 = vpack.c.b16 %v697, %v696
    %v711 = vpack.c.b16 %v699, %v698
    %v712 = vpack.c.b16 %v701, %v700
    %v713 = vpack.c.b16 %v703, %v702
    %v714 = vpack.c.b16 %v705, %v704
    %v715 = vpack.c.b16 %v707, %v706
    %724 = vmatprep.subr.bf16.mxu0 0
    %725 = vmatpush1.bf16.msra.mxu0 %v708
    %726 = vmatprep.subr.bf16.mxu0 0
    %727 = vmatpush1.bf16.msra.mxu0 %v709
    %728 = vmatprep.subr.bf16.mxu0 0
    %729 = vmatpush1.bf16.msra.mxu0 %v710
    %730 = vmatprep.subr.bf16.mxu0 0
    %731 = vmatpush1.bf16.msra.mxu0 %v711
    %732 = vmatprep.subr.bf16.mxu0 0
    %733 = vmatpush1.bf16.msra.mxu0 %v712
    %734 = vmatprep.subr.bf16.mxu0 0
    %735 = vmatpush1.bf16.msra.mxu0 %v713
    %736 = vmatprep.subr.bf16.mxu0 0
    %737 = vmatpush1.bf16.msra.mxu0 %v714
    %738 = vmatprep.subr.bf16.mxu0 0
    %739 = vmatpush1.bf16.msra.mxu0 %v715
    %740 = vmatprep.subr.bf16.mxu0 0
    %741 = vmatpush1.bf16.msra.mxu0 0
    %742 = vmatprep.subr.bf16.mxu0 0
    %743 = vmatpush1.bf16.msra.mxu0 0
    %744 = vmatprep.subr.bf16.mxu0 0
    %745 = vmatpush1.bf16.msra.mxu0 0
    %746 = vmatprep.subr.bf16.mxu0 0
    %747 = vmatpush1.bf16.msra.mxu0 0
    %748 = vmatprep.subr.bf16.mxu0 0
    %749 = vmatpush1.bf16.msra.mxu0 0
    %750 = vmatprep.subr.bf16.mxu0 0
    %751 = vmatpush1.bf16.msra.mxu0 0
    %752 = vmatprep.subr.bf16.mxu0 0
    %753 = vmatpush1.bf16.msra.mxu0 0
    %754 = vmatprep.subr.bf16.mxu0 0
    %755 = vmatpush1.bf16.msra.mxu0 0
    %756 = vmatprep.mubr.bf16.mxu0 0
    %757 = vmatmul.mubr.bf16.gmra.mrb[0].mxu0 %v84
    %v758 = vpop.f32.mrb[0].mxu0
    %v759 = vadd.f32 0.0, %v758
    %v760 = vpop.f32.mrb[0].mxu0
    %v761 = vpop.f32.mrb[0].mxu0
    %v762 = vadd.f32 0.0, %v761
    %v763 = vpop.f32.mrb[0].mxu0
    %764 = vmatprep.mubr.bf16.mxu0 0
    %765 = vmatmul.mubr.bf16.gmra.mrb[0].mxu0 %v85
    %v766 = vpop.f32.mrb[0].mxu0
    %v767 = vadd.f32 0.0, %v766
    %v768 = vpop.f32.mrb[0].mxu0
    %v769 = vpop.f32.mrb[0].mxu0
    %v770 = vadd.f32 0.0, %v769
    %v771 = vpop.f32.mrb[0].mxu0
    %772 = vdwg.mxu0
    %s773 = scalar_lea.vmem %s2, 48
    %v774 = vld [vmem:[%s773] sm:$0xf]
    %v775 = vld [vmem:[%s773 + $0x4] sm:$0xf]
    %v776 = vld [vmem:[%s773 + $0x8] sm:$0xf]
    %v777 = vld [vmem:[%s773 + $0xc] sm:$0xf]
    %v778 = vpack.c.bf16 %v762, %v759
    %v779 = vpack.c.bf16 %v770, %v767
    %v784 = vunpack.c.l.b16 %v774
    %v785 = vunpack.c.l.b16 %v775
    %v786 = vunpack.c.l.b16 %v776
    %v787 = vunpack.c.l.b16 %v777
    %v788 = vpack.c.b16 %v785, %v784
    %v789 = vpack.c.b16 %v787, %v786
    %v791 = vsel %vm219, %v788, 0
    %v794 = vsel %vm219, %v789, 0
    %796 = vmatprep.subr.bf16.mxu0 0
    %797 = vmatpush1.bf16.msra.mxu0 %v778
    %798 = vmatprep.subr.bf16.mxu0 0
    %799 = vmatpush1.bf16.msra.mxu0 %v779
    %800 = vmatprep.subr.bf16.mxu0 0
    %801 = vmatpush1.bf16.msra.mxu0 0
    %802 = vmatprep.subr.bf16.mxu0 0
    %803 = vmatpush1.bf16.msra.mxu0 0
    %804 = vmatprep.subr.bf16.mxu0 0
    %805 = vmatpush1.bf16.msra.mxu0 0
    %806 = vmatprep.subr.bf16.mxu0 0
    %807 = vmatpush1.bf16.msra.mxu0 0
    %808 = vmatprep.subr.bf16.mxu0 0
    %809 = vmatpush1.bf16.msra.mxu0 0
    %810 = vmatprep.subr.bf16.mxu0 0
    %811 = vmatpush1.bf16.msra.mxu0 0
    %812 = vmatprep.subr.bf16.mxu0 0
    %813 = vmatpush1.bf16.msra.mxu0 0
    %814 = vmatprep.subr.bf16.mxu0 0
    %815 = vmatpush1.bf16.msra.mxu0 0
    %816 = vmatprep.subr.bf16.mxu0 0
    %817 = vmatpush1.bf16.msra.mxu0 0
    %818 = vmatprep.subr.bf16.mxu0 0
    %819 = vmatpush1.bf16.msra.mxu0 0
    %820 = vmatprep.subr.bf16.mxu0 0
    %821 = vmatpush1.bf16.msra.mxu0 0
    %822 = vmatprep.subr.bf16.mxu0 0
    %823 = vmatpush1.bf16.msra.mxu0 0
    %824 = vmatprep.subr.bf16.mxu0 0
    %825 = vmatpush1.bf16.msra.mxu0 0
    %826 = vmatprep.subr.bf16.mxu0 0
    %827 = vmatpush1.bf16.msra.mxu0 0
    %828 = vmatprep.mubr.bf16.mxu0 0
    %829 = vmatmul.mubr.bf16.gmra.mrb[0].mxu0 %v791
    %v830 = vpop.f32.mrb[0].mxu0
    %v831 = vadd.f32 0.0, %v830
    %v832 = vpop.f32.mrb[0].mxu0
    %v833 = vpop.f32.mrb[0].mxu0
    %v834 = vadd.f32 0.0, %v833
    %v835 = vpop.f32.mrb[0].mxu0
    %836 = vmatprep.mubr.bf16.mxu0 0
    %837 = vmatmul.mubr.bf16.gmra.mrb[0].mxu0 %v794
    %v838 = vpop.f32.mrb[0].mxu0
    %v839 = vadd.f32 0.0, %v838
    %v840 = vpop.f32.mrb[0].mxu0
    %v841 = vpop.f32.mrb[0].mxu0
    %v842 = vadd.f32 0.0, %v841
    %v843 = vpop.f32.mrb[0].mxu0
    %844 = vdwg.mxu0
    %v845 = vadd.f32 %v655, %v831
    %v846 = vadd.f32 %v656, %v834
    %v847 = vadd.f32 %v657, %v839
    %v848 = vadd.f32 %v658, %v842
    %s849 = scalar_lea.vmem %s1, 256
    %v850 = vld [vmem:[%s849] sm:$0xf]
    %v851 = vld [vmem:[%s849 + $0x4] sm:$0xf]
    %v852 = vld [vmem:[%s849 + $0x8] sm:$0xf]
    %v853 = vld [vmem:[%s849 + $0xc] sm:$0xf]
    %v854 = vld [vmem:[%s849 + $0x10] sm:$0xf]
    %v855 = vld [vmem:[%s849 + $0x14] sm:$0xf]
    %v856 = vld [vmem:[%s849 + $0x18] sm:$0xf]
    %v857 = vld [vmem:[%s849 + $0x1c] sm:$0xf]
    %v858 = vld [vmem:[%s849 + $0x20] sm:$0xf]
    %v859 = vld [vmem:[%s849 + $0x24] sm:$0xf]
    %v860 = vld [vmem:[%s849 + $0x28] sm:$0xf]
    %v861 = vld [vmem:[%s849 + $0x2c] sm:$0xf]
    %v862 = vld [vmem:[%s849 + $0x30] sm:$0xf]
    %v863 = vld [vmem:[%s849 + $0x34] sm:$0xf]
    %v864 = vld [vmem:[%s849 + $0x38] sm:$0xf]
    %v865 = vld [vmem:[%s849 + $0x3c] sm:$0xf]
    %v882 = vunpack.c.l.b16 %v850
    %v883 = vunpack.c.l.b16 %v851
    %v884 = vunpack.c.l.b16 %v852
    %v885 = vunpack.c.l.b16 %v853
    %v886 = vunpack.c.l.b16 %v854
    %v887 = vunpack.c.l.b16 %v855
    %v888 = vunpack.c.l.b16 %v856
    %v889 = vunpack.c.l.b16 %v857
    %v890 = vunpack.c.l.b16 %v858
    %v891 = vunpack.c.l.b16 %v859
    %v892 = vunpack.c.l.b16 %v860
    %v893 = vunpack.c.l.b16 %v861
    %v894 = vunpack.c.l.b16 %v862
    %v895 = vunpack.c.l.b16 %v863
    %v896 = vunpack.c.l.b16 %v864
    %v897 = vunpack.c.l.b16 %v865
    %v898 = vpack.c.b16 %v883, %v882
    %v899 = vpack.c.b16 %v885, %v884
    %v900 = vpack.c.b16 %v887, %v886
    %v901 = vpack.c.b16 %v889, %v888
    %v902 = vpack.c.b16 %v891, %v890
    %v903 = vpack.c.b16 %v893, %v892
    %v904 = vpack.c.b16 %v895, %v894
    %v905 = vpack.c.b16 %v897, %v896
    %914 = vmatprep.subr.bf16.mxu0 0
    %915 = vmatpush1.bf16.msra.mxu0 %v898
    %916 = vmatprep.subr.bf16.mxu0 0
    %917 = vmatpush1.bf16.msra.mxu0 %v899
    %918 = vmatprep.subr.bf16.mxu0 0
    %919 = vmatpush1.bf16.msra.mxu0 %v900
    %920 = vmatprep.subr.bf16.mxu0 0
    %921 = vmatpush1.bf16.msra.mxu0 %v901
    %922 = vmatprep.subr.bf16.mxu0 0
    %923 = vmatpush1.bf16.msra.mxu0 %v902
    %924 = vmatprep.subr.bf16.mxu0 0
    %925 = vmatpush1.bf16.msra.mxu0 %v903
    %926 = vmatprep.subr.bf16.mxu0 0
    %927 = vmatpush1.bf16.msra.mxu0 %v904
    %928 = vmatprep.subr.bf16.mxu0 0
    %929 = vmatpush1.bf16.msra.mxu0 %v905
    %930 = vmatprep.subr.bf16.mxu0 0
    %931 = vmatpush1.bf16.msra.mxu0 0
    %932 = vmatprep.subr.bf16.mxu0 0
    %933 = vmatpush1.bf16.msra.mxu0 0
    %934 = vmatprep.subr.bf16.mxu0 0
    %935 = vmatpush1.bf16.msra.mxu0 0
    %936 = vmatprep.subr.bf16.mxu0 0
    %937 = vmatpush1.bf16.msra.mxu0 0
    %938 = vmatprep.subr.bf16.mxu0 0
    %939 = vmatpush1.bf16.msra.mxu0 0
    %940 = vmatprep.subr.bf16.mxu0 0
    %941 = vmatpush1.bf16.msra.mxu0 0
    %942 = vmatprep.subr.bf16.mxu0 0
    %943 = vmatpush1.bf16.msra.mxu0 0
    %944 = vmatprep.subr.bf16.mxu0 0
    %945 = vmatpush1.bf16.msra.mxu0 0
    %946 = vmatprep.mubr.bf16.mxu0 0
    %947 = vmatmul.mubr.bf16.gmra.mrb[0].mxu0 %v84
    %v948 = vpop.f32.mrb[0].mxu0
    %v949 = vadd.f32 0.0, %v948
    %v950 = vpop.f32.mrb[0].mxu0
    %v951 = vpop.f32.mrb[0].mxu0
    %v952 = vadd.f32 0.0, %v951
    %v953 = vpop.f32.mrb[0].mxu0
    %954 = vmatprep.mubr.bf16.mxu0 0
    %955 = vmatmul.mubr.bf16.gmra.mrb[0].mxu0 %v85
    %v956 = vpop.f32.mrb[0].mxu0
    %v957 = vadd.f32 0.0, %v956
    %v958 = vpop.f32.mrb[0].mxu0
    %v959 = vpop.f32.mrb[0].mxu0
    %v960 = vadd.f32 0.0, %v959
    %v961 = vpop.f32.mrb[0].mxu0
    %962 = vdwg.mxu0
    %s963 = scalar_lea.vmem %s2, 64
    %v964 = vld [vmem:[%s963] sm:$0xf]
    %v965 = vld [vmem:[%s963 + $0x4] sm:$0xf]
    %v966 = vld [vmem:[%s963 + $0x8] sm:$0xf]
    %v967 = vld [vmem:[%s963 + $0xc] sm:$0xf]
    %v968 = vpack.c.bf16 %v952, %v949
    %v969 = vpack.c.bf16 %v960, %v957
    %v974 = vunpack.c.l.b16 %v964
    %v975 = vunpack.c.l.b16 %v965
    %v976 = vunpack.c.l.b16 %v966
    %v977 = vunpack.c.l.b16 %v967
    %v978 = vpack.c.b16 %v975, %v974
    %v979 = vpack.c.b16 %v977, %v976
    %v981 = vsel %vm219, %v978, 0
    %v984 = vsel %vm219, %v979, 0
    %986 = vmatprep.subr.bf16.mxu0 0
    %987 = vmatpush1.bf16.msra.mxu0 %v968
    %988 = vmatprep.subr.bf16.mxu0 0
    %989 = vmatpush1.bf16.msra.mxu0 %v969
    %990 = vmatprep.subr.bf16.mxu0 0
    %991 = vmatpush1.bf16.msra.mxu0 0
    %992 = vmatprep.subr.bf16.mxu0 0
    %993 = vmatpush1.bf16.msra.mxu0 0
    %994 = vmatprep.subr.bf16.mxu0 0
    %995 = vmatpush1.bf16.msra.mxu0 0
    %996 = vmatprep.subr.bf16.mxu0 0
    %997 = vmatpush1.bf16.msra.mxu0 0
    %998 = vmatprep.subr.bf16.mxu0 0
    %999 = vmatpush1.bf16.msra.mxu0 0
    %1000 = vmatprep.subr.bf16.mxu0 0
    %1001 = vmatpush1.bf16.msra.mxu0 0
    %1002 = vmatprep.subr.bf16.mxu0 0
    %1003 = vmatpush1.bf16.msra.mxu0 0
    %1004 = vmatprep.subr.bf16.mxu0 0
    %1005 = vmatpush1.bf16.msra.mxu0 0
    %1006 = vmatprep.subr.bf16.mxu0 0
    %1007 = vmatpush1.bf16.msra.mxu0 0
    %1008 = vmatprep.subr.bf16.mxu0 0
    %1009 = vmatpush1.bf16.msra.mxu0 0
    %1010 = vmatprep.subr.bf16.mxu0 0
    %1011 = vmatpush1.bf16.msra.mxu0 0
    %1012 = vmatprep.subr.bf16.mxu0 0
    %1013 = vmatpush1.bf16.msra.mxu0 0
    %1014 = vmatprep.subr.bf16.mxu0 0
    %1015 = vmatpush1.bf16.msra.mxu0 0
    %1016 = vmatprep.subr.bf16.mxu0 0
    %1017 = vmatpush1.bf16.msra.mxu0 0
    %1018 = vmatprep.mubr.bf16.mxu0 0
    %1019 = vmatmul.mubr.bf16.gmra.mrb[0].mxu0 %v981
    %v1020 = vpop.f32.mrb[0].mxu0
    %v1021 = vadd.f32 0.0, %v1020
    %v1022 = vpop.f32.mrb[0].mxu0
    %v1023 = vpop.f32.mrb[0].mxu0
    %v1024 = vadd.f32 0.0, %v1023
    %v1025 = vpop.f32.mrb[0].mxu0
    %1026 = vmatprep.mubr.bf16.mxu0 0
    %1027 = vmatmul.mubr.bf16.gmra.mrb[0].mxu0 %v984
    %v1028 = vpop.f32.mrb[0].mxu0
    %v1029 = vadd.f32 0.0, %v1028
    %v1030 = vpop.f32.mrb[0].mxu0
    %v1031 = vpop.f32.mrb[0].mxu0
    %v1032 = vadd.f32 0.0, %v1031
    %v1033 = vpop.f32.mrb[0].mxu0
    %1034 = vdwg.mxu0
    %v1035 = vadd.f32 %v845, %v1021
    %v1036 = vadd.f32 %v846, %v1024
    %v1037 = vadd.f32 %v847, %v1029
    %v1038 = vadd.f32 %v848, %v1032
    %v1039 = vadd.f32 %v1035, %v80
    %v1040 = vadd.f32 %v1036, %v81
    %v1041 = vadd.f32 %v1037, %v82
    %v1042 = vadd.f32 %v1038, %v83
    %v1043 = vmax.f32 %v1039, 0.0
    %v1044 = vmax.f32 %v1040, 0.0
    %v1045 = vmax.f32 %v1041, 0.0
    %v1046 = vmax.f32 %v1042, 0.0
    %v1047 = vpack.c.bf16 %v1044, %v1043
    %v1048 = vpack.c.bf16 %v1046, %v1045
    %v1049 = vld [vmem:[%s4] sm:$0xf]
    %v1050 = vld [vmem:[%s4 + $0x4] sm:$0xf]
    %v1051 = vld [vmem:[%s4 + $0x8] sm:$0xf]
    %v1052 = vld [vmem:[%s4 + $0xc] sm:$0xf]
    %v1053 = vld [vmem:[%s5] sm:$0xff]
    %v1054 = vld [vmem:[%s5 + $0x8] sm:$0xff]
    %v1055 = vld [vmem:[%s5 + $0x10] sm:$0xff]
    %v1056 = vld [vmem:[%s5 + $0x18] sm:$0xff]
    %1058 = vset.pattern.permute.xlu0 0
    %1059 = vperm.xlu0 %1058, %v1053
    %v1060 = vpop.permute.xlu0 %1059
    %1063 = vset.pattern.permute.xlu0 0
    %1064 = vperm.xlu0 %1063, %v1054
    %v1065 = vpop.permute.xlu0 %1064
    %1068 = vset.pattern.permute.xlu0 0
    %1069 = vperm.xlu0 %1068, %v1055
    %v1070 = vpop.permute.xlu0 %1069
    %1073 = vset.pattern.permute.xlu0 0
    %1074 = vperm.xlu0 %1073, %v1056
    %v1075 = vpop.permute.xlu0 %1074
    %v1081 = vunpack.c.l.b16 %v1049
    %v1082 = vunpack.c.l.b16 %v1050
    %v1083 = vunpack.c.l.b16 %v1051
    %v1084 = vunpack.c.l.b16 %v1052
    %v1085 = vpack.c.b16 %v1082, %v1081
    %v1086 = vpack.c.b16 %v1084, %v1083
    %v1088 = vsel %vm219, %v1085, 0
    %v1091 = vsel %vm219, %v1086, 0
    %1093 = vmatprep.subr.bf16.mxu0 0
    %1094 = vmatpush1.bf16.msra.mxu0 %v1047
    %1095 = vmatprep.subr.bf16.mxu0 0
    %1096 = vmatpush1.bf16.msra.mxu0 %v1048
    %1097 = vmatprep.subr.bf16.mxu0 0
    %1098 = vmatpush1.bf16.msra.mxu0 0
    %1099 = vmatprep.subr.bf16.mxu0 0
    %1100 = vmatpush1.bf16.msra.mxu0 0
    %1101 = vmatprep.subr.bf16.mxu0 0
    %1102 = vmatpush1.bf16.msra.mxu0 0
    %1103 = vmatprep.subr.bf16.mxu0 0
    %1104 = vmatpush1.bf16.msra.mxu0 0
    %1105 = vmatprep.subr.bf16.mxu0 0
    %1106 = vmatpush1.bf16.msra.mxu0 0
    %1107 = vmatprep.subr.bf16.mxu0 0
    %1108 = vmatpush1.bf16.msra.mxu0 0
    %1109 = vmatprep.subr.bf16.mxu0 0
    %1110 = vmatpush1.bf16.msra.mxu0 0
    %1111 = vmatprep.subr.bf16.mxu0 0
    %1112 = vmatpush1.bf16.msra.mxu0 0
    %1113 = vmatprep.subr.bf16.mxu0 0
    %1114 = vmatpush1.bf16.msra.mxu0 0
    %1115 = vmatprep.subr.bf16.mxu0 0
    %1116 = vmatpush1.bf16.msra.mxu0 0
    %1117 = vmatprep.subr.bf16.mxu0 0
    %1118 = vmatpush1.bf16.msra.mxu0 0
    %1119 = vmatprep.subr.bf16.mxu0 0
    %1120 = vmatpush1.bf16.msra.mxu0 0
    %1121 = vmatprep.subr.bf16.mxu0 0
    %1122 = vmatpush1.bf16.msra.mxu0 0
    %1123 = vmatprep.subr.bf16.mxu0 0
    %1124 = vmatpush1.bf16.msra.mxu0 0
    %1125 = vmatprep.mubr.bf16.mxu0 0
    %1126 = vmatmul.mubr.bf16.gmra.mrb[0].mxu0 %v1088
    %v1127 = vpop.f32.mrb[0].mxu0
    %v1128 = vadd.f32 %v1060, %v1127
    %v1129 = vpop.f32.mrb[0].mxu0
    %v1130 = vpop.f32.mrb[0].mxu0
    %v1131 = vadd.f32 %v1065, %v1130
    %v1132 = vpop.f32.mrb[0].mxu0
    %1133 = vmatprep.mubr.bf16.mxu0 0
    %1134 = vmatmul.mubr.bf16.gmra.mrb[0].mxu0 %v1091
    %v1135 = vpop.f32.mrb[0].mxu0
    %v1136 = vadd.f32 %v1070, %v1135
    %v1137 = vpop.f32.mrb[0].mxu0
    %v1138 = vpop.f32.mrb[0].mxu0
    %v1139 = vadd.f32 %v1075, %v1138
    %v1140 = vpop.f32.mrb[0].mxu0
    %1141 = vdwg.mxu0
    %v1142 = vmax.f32 %v1128, 0.0
    %v1143 = vmax.f32 %v1131, 0.0
    %v1144 = vmax.f32 %v1136, 0.0
    %v1145 = vmax.f32 %v1139, 0.0
    %v1146 = vpack.c.bf16 %v1143, %v1142
    %v1147 = vpack.c.bf16 %v1145, %v1144
    %v1148 = vld [vmem:[%s7] sm:$0xff]
    %v1149 = vld [vmem:[%s7 + $0x8] sm:$0xff]
    %v1150 = vld [vmem:[%s7 + $0x10] sm:$0xff]
    %v1151 = vld [vmem:[%s7 + $0x18] sm:$0xff]
    %1153 = vset.pattern.permute.xlu0 0
    %1154 = vperm.xlu0 %1153, %v1148
    %v1155 = vpop.permute.xlu0 %1154
    %1158 = vset.pattern.permute.xlu0 0
    %1159 = vperm.xlu0 %1158, %v1149
    %v1160 = vpop.permute.xlu0 %1159
    %1163 = vset.pattern.permute.xlu0 0
    %1164 = vperm.xlu0 %1163, %v1150
    %v1165 = vpop.permute.xlu0 %1164
    %1168 = vset.pattern.permute.xlu0 0
    %1169 = vperm.xlu0 %1168, %v1151
    %v1170 = vpop.permute.xlu0 %1169
    %v1172 = vadd.f32 %v1043, %v1155
    %v1173 = vadd.f32 %v1044, %v1160
    %v1174 = vadd.f32 %v1045, %v1165
    %v1175 = vadd.f32 %v1046, %v1170
    %s1176 = scalar_lea.vmem [#allocation6], 192
    %v1177 = vld [vmem:[%s1176] sm:$0xf]
    %v1178 = vld [vmem:[%s1176 + $0x4] sm:$0xf]
    %v1179 = vld [vmem:[%s1176 + $0x8] sm:$0xf]
    %v1180 = vld [vmem:[%s1176 + $0xc] sm:$0xf]
    %v1181 = vld [vmem:[%s1176 + $0x10] sm:$0xf]
    %v1182 = vld [vmem:[%s1176 + $0x14] sm:$0xf]
    %v1183 = vld [vmem:[%s1176 + $0x18] sm:$0xf]
    %v1184 = vld [vmem:[%s1176 + $0x1c] sm:$0xf]
    %v1185 = vld [vmem:[%s1176 + $0x20] sm:$0xf]
    %v1186 = vld [vmem:[%s1176 + $0x24] sm:$0xf]
    %v1187 = vld [vmem:[%s1176 + $0x28] sm:$0xf]
    %v1188 = vld [vmem:[%s1176 + $0x2c] sm:$0xf]
    %v1189 = vld [vmem:[%s1176 + $0x30] sm:$0xf]
    %v1190 = vld [vmem:[%s1176 + $0x34] sm:$0xf]
    %v1191 = vld [vmem:[%s1176 + $0x38] sm:$0xf]
    %v1192 = vld [vmem:[%s1176 + $0x3c] sm:$0xf]
    %v1209 = vunpack.c.l.b16 %v1177
    %v1210 = vunpack.c.l.b16 %v1178
    %v1211 = vunpack.c.l.b16 %v1179
    %v1212 = vunpack.c.l.b16 %v1180
    %v1213 = vunpack.c.l.b16 %v1181
    %v1214 = vunpack.c.l.b16 %v1182
    %v1215 = vunpack.c.l.b16 %v1183
    %v1216 = vunpack.c.l.b16 %v1184
    %v1217 = vunpack.c.l.b16 %v1185
    %v1218 = vunpack.c.l.b16 %v1186
    %v1219 = vunpack.c.l.b16 %v1187
    %v1220 = vunpack.c.l.b16 %v1188
    %v1221 = vunpack.c.l.b16 %v1189
    %v1222 = vunpack.c.l.b16 %v1190
    %v1223 = vunpack.c.l.b16 %v1191
    %v1224 = vunpack.c.l.b16 %v1192
    %v1225 = vpack.c.b16 %v1210, %v1209
    %v1226 = vpack.c.b16 %v1212, %v1211
    %v1227 = vpack.c.b16 %v1214, %v1213
    %v1228 = vpack.c.b16 %v1216, %v1215
    %v1229 = vpack.c.b16 %v1218, %v1217
    %v1230 = vpack.c.b16 %v1220, %v1219
    %v1231 = vpack.c.b16 %v1222, %v1221
    %v1232 = vpack.c.b16 %v1224, %v1223
    %1241 = vmatprep.subr.bf16.mxu0 0
    %1242 = vmatpush1.bf16.msra.mxu0 %v1225
    %1243 = vmatprep.subr.bf16.mxu0 0
    %1244 = vmatpush1.bf16.msra.mxu0 %v1226
    %1245 = vmatprep.subr.bf16.mxu0 0
    %1246 = vmatpush1.bf16.msra.mxu0 %v1227
    %1247 = vmatprep.subr.bf16.mxu0 0
    %1248 = vmatpush1.bf16.msra.mxu0 %v1228
    %1249 = vmatprep.subr.bf16.mxu0 0
    %1250 = vmatpush1.bf16.msra.mxu0 %v1229
    %1251 = vmatprep.subr.bf16.mxu0 0
    %1252 = vmatpush1.bf16.msra.mxu0 %v1230
    %1253 = vmatprep.subr.bf16.mxu0 0
    %1254 = vmatpush1.bf16.msra.mxu0 %v1231
    %1255 = vmatprep.subr.bf16.mxu0 0
    %1256 = vmatpush1.bf16.msra.mxu0 %v1232
    %1257 = vmatprep.subr.bf16.mxu0 0
    %1258 = vmatpush1.bf16.msra.mxu0 0
    %1259 = vmatprep.subr.bf16.mxu0 0
    %1260 = vmatpush1.bf16.msra.mxu0 0
    %1261 = vmatprep.subr.bf16.mxu0 0
    %1262 = vmatpush1.bf16.msra.mxu0 0
    %1263 = vmatprep.subr.bf16.mxu0 0
    %1264 = vmatpush1.bf16.msra.mxu0 0
    %1265 = vmatprep.subr.bf16.mxu0 0
    %1266 = vmatpush1.bf16.msra.mxu0 0
    %1267 = vmatprep.subr.bf16.mxu0 0
    %1268 = vmatpush1.bf16.msra.mxu0 0
    %1269 = vmatprep.subr.bf16.mxu0 0
    %1270 = vmatpush1.bf16.msra.mxu0 0
    %1271 = vmatprep.subr.bf16.mxu0 0
    %1272 = vmatpush1.bf16.msra.mxu0 0
    %1273 = vmatprep.mubr.bf16.mxu0 0
    %1274 = vmatmul.mubr.bf16.gmra.mrb[0].mxu0 %v1146
    %v1275 = vpop.f32.mrb[0].mxu0
    %v1276 = vadd.f32 0.0, %v1275
    %v1277 = vpop.f32.mrb[0].mxu0
    %v1278 = vpop.f32.mrb[0].mxu0
    %v1279 = vadd.f32 0.0, %v1278
    %v1280 = vpop.f32.mrb[0].mxu0
    %1281 = vdwg.mxu0
    %v1282 = vld [vmem:[%s6] sm:$0xf]
    %v1283 = vld [vmem:[%s6 + $0x4] sm:$0xf]
    %v1284 = vld [vmem:[%s6 + $0x8] sm:$0xf]
    %v1285 = vld [vmem:[%s6 + $0xc] sm:$0xf]
    %v1286 = vpack.c.bf16 %v1279, %v1276
    %v1291 = vunpack.c.l.b16 %v1282
    %v1292 = vunpack.c.l.b16 %v1283
    %v1293 = vunpack.c.l.b16 %v1284
    %v1294 = vunpack.c.l.b16 %v1285
    %v1295 = vpack.c.b16 %v1292, %v1291
    %v1296 = vpack.c.b16 %v1294, %v1293
    %vm1297 = vcmask 130048
    %v1299 = vsel %vm1297, %v1295, 0
    %v1302 = vsel %vm1297, %v1296, 0
    %1304 = vmatprep.subr.bf16.mxu0 0
    %1305 = vmatpush1.bf16.msra.mxu0 %v1286
    %1306 = vmatprep.subr.bf16.mxu0 0
    %1307 = vmatpush1.bf16.msra.mxu0 0
    %1308 = vmatprep.subr.bf16.mxu0 0
    %1309 = vmatpush1.bf16.msra.mxu0 0
    %1310 = vmatprep.subr.bf16.mxu0 0
    %1311 = vmatpush1.bf16.msra.mxu0 0
    %1312 = vmatprep.subr.bf16.mxu0 0
    %1313 = vmatpush1.bf16.msra.mxu0 0
    %1314 = vmatprep.subr.bf16.mxu0 0
    %1315 = vmatpush1.bf16.msra.mxu0 0
    %1316 = vmatprep.subr.bf16.mxu0 0
    %1317 = vmatpush1.bf16.msra.mxu0 0
    %1318 = vmatprep.subr.bf16.mxu0 0
    %1319 = vmatpush1.bf16.msra.mxu0 0
    %1320 = vmatprep.subr.bf16.mxu0 0
    %1321 = vmatpush1.bf16.msra.mxu0 0
    %1322 = vmatprep.subr.bf16.mxu0 0
    %1323 = vmatpush1.bf16.msra.mxu0 0
    %1324 = vmatprep.subr.bf16.mxu0 0
    %1325 = vmatpush1.bf16.msra.mxu0 0
    %1326 = vmatprep.subr.bf16.mxu0 0
    %1327 = vmatpush1.bf16.msra.mxu0 0
    %1328 = vmatprep.subr.bf16.mxu0 0
    %1329 = vmatpush1.bf16.msra.mxu0 0
    %1330 = vmatprep.subr.bf16.mxu0 0
    %1331 = vmatpush1.bf16.msra.mxu0 0
    %1332 = vmatprep.subr.bf16.mxu0 0
    %1333 = vmatpush1.bf16.msra.mxu0 0
    %1334 = vmatprep.subr.bf16.mxu0 0
    %1335 = vmatpush1.bf16.msra.mxu0 0
    %1336 = vmatprep.mubr.bf16.mxu0 0
    %1337 = vmatmul.mubr.bf16.gmra.mrb[0].mxu0 %v1299
    %v1338 = vpop.f32.mrb[0].mxu0
    %v1339 = vadd.f32 0.0, %v1338
    %v1340 = vpop.f32.mrb[0].mxu0
    %v1341 = vpop.f32.mrb[0].mxu0
    %v1342 = vadd.f32 0.0, %v1341
    %v1343 = vpop.f32.mrb[0].mxu0
    %1344 = vmatprep.mubr.bf16.mxu0 0
    %1345 = vmatmul.mubr.bf16.gmra.mrb[0].mxu0 %v1302
    %v1346 = vpop.f32.mrb[0].mxu0
    %v1347 = vadd.f32 0.0, %v1346
    %v1348 = vpop.f32.mrb[0].mxu0
    %v1349 = vpop.f32.mrb[0].mxu0
    %v1350 = vadd.f32 0.0, %v1349
    %v1351 = vpop.f32.mrb[0].mxu0
    %1352 = vdwg.mxu0
    %v1353 = vadd.f32 %v1172, %v1339
    %v1354 = vadd.f32 %v1173, %v1342
    %v1355 = vadd.f32 %v1174, %v1347
    %v1356 = vadd.f32 %v1175, %v1350
    %s1357 = scalar_lea.vmem [#allocation6], 256
    %v1358 = vld [vmem:[%s1357] sm:$0xf]
    %v1359 = vld [vmem:[%s1357 + $0x4] sm:$0xf]
    %v1360 = vld [vmem:[%s1357 + $0x8] sm:$0xf]
    %v1361 = vld [vmem:[%s1357 + $0xc] sm:$0xf]
    %v1362 = vld [vmem:[%s1357 + $0x10] sm:$0xf]
    %v1363 = vld [vmem:[%s1357 + $0x14] sm:$0xf]
    %v1364 = vld [vmem:[%s1357 + $0x18] sm:$0xf]
    %v1365 = vld [vmem:[%s1357 + $0x1c] sm:$0xf]
    %v1366 = vld [vmem:[%s1357 + $0x20] sm:$0xf]
    %v1367 = vld [vmem:[%s1357 + $0x24] sm:$0xf]
    %v1368 = vld [vmem:[%s1357 + $0x28] sm:$0xf]
    %v1369 = vld [vmem:[%s1357 + $0x2c] sm:$0xf]
    %v1370 = vld [vmem:[%s1357 + $0x30] sm:$0xf]
    %v1371 = vld [vmem:[%s1357 + $0x34] sm:$0xf]
    %v1372 = vld [vmem:[%s1357 + $0x38] sm:$0xf]
    %v1373 = vld [vmem:[%s1357 + $0x3c] sm:$0xf]
    %v1390 = vunpack.c.l.b16 %v1358
    %v1391 = vunpack.c.l.b16 %v1359
    %v1392 = vunpack.c.l.b16 %v1360
    %v1393 = vunpack.c.l.b16 %v1361
    %v1394 = vunpack.c.l.b16 %v1362
    %v1395 = vunpack.c.l.b16 %v1363
    %v1396 = vunpack.c.l.b16 %v1364
    %v1397 = vunpack.c.l.b16 %v1365
    %v1398 = vunpack.c.l.b16 %v1366
    %v1399 = vunpack.c.l.b16 %v1367
    %v1400 = vunpack.c.l.b16 %v1368
    %v1401 = vunpack.c.l.b16 %v1369
    %v1402 = vunpack.c.l.b16 %v1370
    %v1403 = vunpack.c.l.b16 %v1371
    %v1404 = vunpack.c.l.b16 %v1372
    %v1405 = vunpack.c.l.b16 %v1373
    %v1406 = vpack.c.b16 %v1391, %v1390
    %v1407 = vpack.c.b16 %v1393, %v1392
    %v1408 = vpack.c.b16 %v1395, %v1394
    %v1409 = vpack.c.b16 %v1397, %v1396
    %v1410 = vpack.c.b16 %v1399, %v1398
    %v1411 = vpack.c.b16 %v1401, %v1400
    %v1412 = vpack.c.b16 %v1403, %v1402
    %v1413 = vpack.c.b16 %v1405, %v1404
    %1422 = vmatprep.subr.bf16.mxu0 0
    %1423 = vmatpush1.bf16.msra.mxu0 %v1406
    %1424 = vmatprep.subr.bf16.mxu0 0
    %1425 = vmatpush1.bf16.msra.mxu0 %v1407
    %1426 = vmatprep.subr.bf16.mxu0 0
    %1427 = vmatpush1.bf16.msra.mxu0 %v1408
    %1428 = vmatprep.subr.bf16.mxu0 0
    %1429 = vmatpush1.bf16.msra.mxu0 %v1409
    %1430 = vmatprep.subr.bf16.mxu0 0
    %1431 = vmatpush1.bf16.msra.mxu0 %v1410
    %1432 = vmatprep.subr.bf16.mxu0 0
    %1433 = vmatpush1.bf16.msra.mxu0 %v1411
    %1434 = vmatprep.subr.bf16.mxu0 0
    %1435 = vmatpush1.bf16.msra.mxu0 %v1412
    %1436 = vmatprep.subr.bf16.mxu0 0
    %1437 = vmatpush1.bf16.msra.mxu0 %v1413
    %1438 = vmatprep.subr.bf16.mxu0 0
    %1439 = vmatpush1.bf16.msra.mxu0 0
    %1440 = vmatprep.subr.bf16.mxu0 0
    %1441 = vmatpush1.bf16.msra.mxu0 0
    %1442 = vmatprep.subr.bf16.mxu0 0
    %1443 = vmatpush1.bf16.msra.mxu0 0
    %1444 = vmatprep.subr.bf16.mxu0 0
    %1445 = vmatpush1.bf16.msra.mxu0 0
    %1446 = vmatprep.subr.bf16.mxu0 0
    %1447 = vmatpush1.bf16.msra.mxu0 0
    %1448 = vmatprep.subr.bf16.mxu0 0
    %1449 = vmatpush1.bf16.msra.mxu0 0
    %1450 = vmatprep.subr.bf16.mxu0 0
    %1451 = vmatpush1.bf16.msra.mxu0 0
    %1452 = vmatprep.subr.bf16.mxu0 0
    %1453 = vmatpush1.bf16.msra.mxu0 0
    %1454 = vmatprep.mubr.bf16.mxu0 0
    %1455 = vmatmul.mubr.bf16.gmra.mrb[0].mxu0 %v1146
    %v1456 = vpop.f32.mrb[0].mxu0
    %v1457 = vadd.f32 0.0, %v1456
    %v1458 = vpop.f32.mrb[0].mxu0
    %v1459 = vpop.f32.mrb[0].mxu0
    %v1460 = vadd.f32 0.0, %v1459
    %v1461 = vpop.f32.mrb[0].mxu0
    %1462 = vdwg.mxu0
    %s1463 = scalar_lea.vmem %s6, 16
    %v1464 = vld [vmem:[%s1463] sm:$0xf]
    %v1465 = vld [vmem:[%s1463 + $0x4] sm:$0xf]
    %v1466 = vld [vmem:[%s1463 + $0x8] sm:$0xf]
    %v1467 = vld [vmem:[%s1463 + $0xc] sm:$0xf]
    %v1468 = vpack.c.bf16 %v1460, %v1457
    %v1473 = vunpack.c.l.b16 %v1464
    %v1474 = vunpack.c.l.b16 %v1465
    %v1475 = vunpack.c.l.b16 %v1466
    %v1476 = vunpack.c.l.b16 %v1467
    %v1477 = vpack.c.b16 %v1474, %v1473
    %v1478 = vpack.c.b16 %v1476, %v1475
    %v1480 = vsel %vm1297, %v1477, 0
    %v1483 = vsel %vm1297, %v1478, 0
    %1485 = vmatprep.subr.bf16.mxu0 0
    %1486 = vmatpush1.bf16.msra.mxu0 %v1468
    %1487 = vmatprep.subr.bf16.mxu0 0
    %1488 = vmatpush1.bf16.msra.mxu0 0
    %1489 = vmatprep.subr.bf16.mxu0 0
    %1490 = vmatpush1.bf16.msra.mxu0 0
    %1491 = vmatprep.subr.bf16.mxu0 0
    %1492 = vmatpush1.bf16.msra.mxu0 0
    %1493 = vmatprep.subr.bf16.mxu0 0
    %1494 = vmatpush1.bf16.msra.mxu0 0
    %1495 = vmatprep.subr.bf16.mxu0 0
    %1496 = vmatpush1.bf16.msra.mxu0 0
    %1497 = vmatprep.subr.bf16.mxu0 0
    %1498 = vmatpush1.bf16.msra.mxu0 0
    %1499 = vmatprep.subr.bf16.mxu0 0
    %1500 = vmatpush1.bf16.msra.mxu0 0
    %1501 = vmatprep.subr.bf16.mxu0 0
    %1502 = vmatpush1.bf16.msra.mxu0 0
    %1503 = vmatprep.subr.bf16.mxu0 0
    %1504 = vmatpush1.bf16.msra.mxu0 0
    %1505 = vmatprep.subr.bf16.mxu0 0
    %1506 = vmatpush1.bf16.msra.mxu0 0
    %1507 = vmatprep.subr.bf16.mxu0 0
    %1508 = vmatpush1.bf16.msra.mxu0 0
    %1509 = vmatprep.subr.bf16.mxu0 0
    %1510 = vmatpush1.bf16.msra.mxu0 0
    %1511 = vmatprep.subr.bf16.mxu0 0
    %1512 = vmatpush1.bf16.msra.mxu0 0
    %1513 = vmatprep.subr.bf16.mxu0 0
    %1514 = vmatpush1.bf16.msra.mxu0 0
    %1515 = vmatprep.subr.bf16.mxu0 0
    %1516 = vmatpush1.bf16.msra.mxu0 0
    %1517 = vmatprep.mubr.bf16.mxu0 0
    %1518 = vmatmul.mubr.bf16.gmra.mrb[0].mxu0 %v1480
    %v1519 = vpop.f32.mrb[0].mxu0
    %v1520 = vadd.f32 0.0, %v1519
    %v1521 = vpop.f32.mrb[0].mxu0
    %v1522 = vpop.f32.mrb[0].mxu0
    %v1523 = vadd.f32 0.0, %v1522
    %v1524 = vpop.f32.mrb[0].mxu0
    %1525 = vmatprep.mubr.bf16.mxu0 0
    %1526 = vmatmul.mubr.bf16.gmra.mrb[0].mxu0 %v1483
    %v1527 = vpop.f32.mrb[0].mxu0
    %v1528 = vadd.f32 0.0, %v1527
    %v1529 = vpop.f32.mrb[0].mxu0
    %v1530 = vpop.f32.mrb[0].mxu0
    %v1531 = vadd.f32 0.0, %v1530
    %v1532 = vpop.f32.mrb[0].mxu0
    %1533 = vdwg.mxu0
    %v1534 = vadd.f32 %v1353, %v1520
    %v1535 = vadd.f32 %v1354, %v1523
    %v1536 = vadd.f32 %v1355, %v1528
    %v1537 = vadd.f32 %v1356, %v1531
    %s1538 = scalar_lea.vmem [#allocation6], 320
    %v1539 = vld [vmem:[%s1538] sm:$0xf]
    %v1540 = vld [vmem:[%s1538 + $0x4] sm:$0xf]
    %v1541 = vld [vmem:[%s1538 + $0x8] sm:$0xf]
    %v1542 = vld [vmem:[%s1538 + $0xc] sm:$0xf]
    %v1543 = vld [vmem:[%s1538 + $0x10] sm:$0xf]
    %v1544 = vld [vmem:[%s1538 + $0x14] sm:$0xf]
    %v1545 = vld [vmem:[%s1538 + $0x18] sm:$0xf]
    %v1546 = vld [vmem:[%s1538 + $0x1c] sm:$0xf]
    %v1547 = vld [vmem:[%s1538 + $0x20] sm:$0xf]
    %v1548 = vld [vmem:[%s1538 + $0x24] sm:$0xf]
    %v1549 = vld [vmem:[%s1538 + $0x28] sm:$0xf]
    %v1550 = vld [vmem:[%s1538 + $0x2c] sm:$0xf]
    %v1551 = vld [vmem:[%s1538 + $0x30] sm:$0xf]
    %v1552 = vld [vmem:[%s1538 + $0x34] sm:$0xf]
    %v1553 = vld [vmem:[%s1538 + $0x38] sm:$0xf]
    %v1554 = vld [vmem:[%s1538 + $0x3c] sm:$0xf]
    %v1571 = vunpack.c.l.b16 %v1539
    %v1572 = vunpack.c.l.b16 %v1540
    %v1573 = vunpack.c.l.b16 %v1541
    %v1574 = vunpack.c.l.b16 %v1542
    %v1575 = vunpack.c.l.b16 %v1543
    %v1576 = vunpack.c.l.b16 %v1544
    %v1577 = vunpack.c.l.b16 %v1545
    %v1578 = vunpack.c.l.b16 %v1546
    %v1579 = vunpack.c.l.b16 %v1547
    %v1580 = vunpack.c.l.b16 %v1548
    %v1581 = vunpack.c.l.b16 %v1549
    %v1582 = vunpack.c.l.b16 %v1550
    %v1583 = vunpack.c.l.b16 %v1551
    %v1584 = vunpack.c.l.b16 %v1552
    %v1585 = vunpack.c.l.b16 %v1553
    %v1586 = vunpack.c.l.b16 %v1554
    %v1587 = vpack.c.b16 %v1572, %v1571
    %v1588 = vpack.c.b16 %v1574, %v1573
    %v1589 = vpack.c.b16 %v1576, %v1575
    %v1590 = vpack.c.b16 %v1578, %v1577
    %v1591 = vpack.c.b16 %v1580, %v1579
    %v1592 = vpack.c.b16 %v1582, %v1581
    %v1593 = vpack.c.b16 %v1584, %v1583
    %v1594 = vpack.c.b16 %v1586, %v1585
    %1603 = vmatprep.subr.bf16.mxu0 0
    %1604 = vmatpush1.bf16.msra.mxu0 %v1587
    %1605 = vmatprep.subr.bf16.mxu0 0
    %1606 = vmatpush1.bf16.msra.mxu0 %v1588
    %1607 = vmatprep.subr.bf16.mxu0 0
    %1608 = vmatpush1.bf16.msra.mxu0 %v1589
    %1609 = vmatprep.subr.bf16.mxu0 0
    %1610 = vmatpush1.bf16.msra.mxu0 %v1590
    %1611 = vmatprep.subr.bf16.mxu0 0
    %1612 = vmatpush1.bf16.msra.mxu0 %v1591
    %1613 = vmatprep.subr.bf16.mxu0 0
    %1614 = vmatpush1.bf16.msra.mxu0 %v1592
    %1615 = vmatprep.subr.bf16.mxu0 0
    %1616 = vmatpush1.bf16.msra.mxu0 %v1593
    %1617 = vmatprep.subr.bf16.mxu0 0
    %1618 = vmatpush1.bf16.msra.mxu0 %v1594
    %1619 = vmatprep.subr.bf16.mxu0 0
    %1620 = vmatpush1.bf16.msra.mxu0 0
    %1621 = vmatprep.subr.bf16.mxu0 0
    %1622 = vmatpush1.bf16.msra.mxu0 0
    %1623 = vmatprep.subr.bf16.mxu0 0
    %1624 = vmatpush1.bf16.msra.mxu0 0
    %1625 = vmatprep.subr.bf16.mxu0 0
    %1626 = vmatpush1.bf16.msra.mxu0 0
    %1627 = vmatprep.subr.bf16.mxu0 0
    %1628 = vmatpush1.bf16.msra.mxu0 0
    %1629 = vmatprep.subr.bf16.mxu0 0
    %1630 = vmatpush1.bf16.msra.mxu0 0
    %1631 = vmatprep.subr.bf16.mxu0 0
    %1632 = vmatpush1.bf16.msra.mxu0 0
    %1633 = vmatprep.subr.bf16.mxu0 0
    %1634 = vmatpush1.bf16.msra.mxu0 0
    %1635 = vmatprep.mubr.bf16.mxu0 0
    %1636 = vmatmul.mubr.bf16.gmra.mrb[0].mxu0 %v1146
    %v1637 = vpop.f32.mrb[0].mxu0
    %v1638 = vadd.f32 0.0, %v1637
    %v1639 = vpop.f32.mrb[0].mxu0
    %v1640 = vpop.f32.mrb[0].mxu0
    %v1641 = vadd.f32 0.0, %v1640
    %v1642 = vpop.f32.mrb[0].mxu0
    %1643 = vdwg.mxu0
    %s1644 = scalar_lea.vmem %s6, 32
    %v1645 = vld [vmem:[%s1644] sm:$0xf]
    %v1646 = vld [vmem:[%s1644 + $0x4] sm:$0xf]
    %v1647 = vld [vmem:[%s1644 + $0x8] sm:$0xf]
    %v1648 = vld [vmem:[%s1644 + $0xc] sm:$0xf]
    %v1649 = vpack.c.bf16 %v1641, %v1638
    %v1654 = vunpack.c.l.b16 %v1645
    %v1655 = vunpack.c.l.b16 %v1646
    %v1656 = vunpack.c.l.b16 %v1647
    %v1657 = vunpack.c.l.b16 %v1648
    %v1658 = vpack.c.b16 %v1655, %v1654
    %v1659 = vpack.c.b16 %v1657, %v1656
    %v1661 = vsel %vm1297, %v1658, 0
    %v1664 = vsel %vm1297, %v1659, 0
    %1666 = vmatprep.subr.bf16.mxu0 0
    %1667 = vmatpush1.bf16.msra.mxu0 %v1649
    %1668 = vmatprep.subr.bf16.mxu0 0
    %1669 = vmatpush1.bf16.msra.mxu0 0
    %1670 = vmatprep.subr.bf16.mxu0 0
    %1671 = vmatpush1.bf16.msra.mxu0 0
    %1672 = vmatprep.subr.bf16.mxu0 0
    %1673 = vmatpush1.bf16.msra.mxu0 0
    %1674 = vmatprep.subr.bf16.mxu0 0
    %1675 = vmatpush1.bf16.msra.mxu0 0
    %1676 = vmatprep.subr.bf16.mxu0 0
    %1677 = vmatpush1.bf16.msra.mxu0 0
    %1678 = vmatprep.subr.bf16.mxu0 0
    %1679 = vmatpush1.bf16.msra.mxu0 0
    %1680 = vmatprep.subr.bf16.mxu0 0
    %1681 = vmatpush1.bf16.msra.mxu0 0
    %1682 = vmatprep.subr.bf16.mxu0 0
    %1683 = vmatpush1.bf16.msra.mxu0 0
    %1684 = vmatprep.subr.bf16.mxu0 0
    %1685 = vmatpush1.bf16.msra.mxu0 0
    %1686 = vmatprep.subr.bf16.mxu0 0
    %1687 = vmatpush1.bf16.msra.mxu0 0
    %1688 = vmatprep.subr.bf16.mxu0 0
    %1689 = vmatpush1.bf16.msra.mxu0 0
    %1690 = vmatprep.subr.bf16.mxu0 0
    %1691 = vmatpush1.bf16.msra.mxu0 0
    %1692 = vmatprep.subr.bf16.mxu0 0
    %1693 = vmatpush1.bf16.msra.mxu0 0
    %1694 = vmatprep.subr.bf16.mxu0 0
    %1695 = vmatpush1.bf16.msra.mxu0 0
    %1696 = vmatprep.subr.bf16.mxu0 0
    %1697 = vmatpush1.bf16.msra.mxu0 0
    %1698 = vmatprep.mubr.bf16.mxu0 0
    %1699 = vmatmul.mubr.bf16.gmra.mrb[0].mxu0 %v1661
    %v1700 = vpop.f32.mrb[0].mxu0
    %v1701 = vadd.f32 0.0, %v1700
    %v1702 = vpop.f32.mrb[0].mxu0
    %v1703 = vpop.f32.mrb[0].mxu0
    %v1704 = vadd.f32 0.0, %v1703
    %v1705 = vpop.f32.mrb[0].mxu0
    %1706 = vmatprep.mubr.bf16.mxu0 0
    %1707 = vmatmul.mubr.bf16.gmra.mrb[0].mxu0 %v1664
    %v1708 = vpop.f32.mrb[0].mxu0
    %v1709 = vadd.f32 0.0, %v1708
    %v1710 = vpop.f32.mrb[0].mxu0
    %v1711 = vpop.f32.mrb[0].mxu0
    %v1712 = vadd.f32 0.0, %v1711
    %v1713 = vpop.f32.mrb[0].mxu0
    %1714 = vdwg.mxu0
    %v1715 = vadd.f32 %v1534, %v1701
    %v1716 = vadd.f32 %v1535, %v1704
    %v1717 = vadd.f32 %v1536, %v1709
    %v1718 = vadd.f32 %v1537, %v1712
    %s1719 = scalar_lea.vmem [#allocation6], 128
    %v1720 = vld [vmem:[%s1719] sm:$0xf]
    %v1721 = vld [vmem:[%s1719 + $0x4] sm:$0xf]
    %v1722 = vld [vmem:[%s1719 + $0x8] sm:$0xf]
    %v1723 = vld [vmem:[%s1719 + $0xc] sm:$0xf]
    %v1724 = vld [vmem:[%s1719 + $0x10] sm:$0xf]
    %v1725 = vld [vmem:[%s1719 + $0x14] sm:$0xf]
    %v1726 = vld [vmem:[%s1719 + $0x18] sm:$0xf]
    %v1727 = vld [vmem:[%s1719 + $0x1c] sm:$0xf]
    %v1728 = vld [vmem:[%s1719 + $0x20] sm:$0xf]
    %v1729 = vld [vmem:[%s1719 + $0x24] sm:$0xf]
    %v1730 = vld [vmem:[%s1719 + $0x28] sm:$0xf]
    %v1731 = vld [vmem:[%s1719 + $0x2c] sm:$0xf]
    %v1732 = vld [vmem:[%s1719 + $0x30] sm:$0xf]
    %v1733 = vld [vmem:[%s1719 + $0x34] sm:$0xf]
    %v1734 = vld [vmem:[%s1719 + $0x38] sm:$0xf]
    %v1735 = vld [vmem:[%s1719 + $0x3c] sm:$0xf]
    %v1752 = vunpack.c.l.b16 %v1720
    %v1753 = vunpack.c.l.b16 %v1721
    %v1754 = vunpack.c.l.b16 %v1722
    %v1755 = vunpack.c.l.b16 %v1723
    %v1756 = vunpack.c.l.b16 %v1724
    %v1757 = vunpack.c.l.b16 %v1725
    %v1758 = vunpack.c.l.b16 %v1726
    %v1759 = vunpack.c.l.b16 %v1727
    %v1760 = vunpack.c.l.b16 %v1728
    %v1761 = vunpack.c.l.b16 %v1729
    %v1762 = vunpack.c.l.b16 %v1730
    %v1763 = vunpack.c.l.b16 %v1731
    %v1764 = vunpack.c.l.b16 %v1732
    %v1765 = vunpack.c.l.b16 %v1733
    %v1766 = vunpack.c.l.b16 %v1734
    %v1767 = vunpack.c.l.b16 %v1735
    %v1768 = vpack.c.b16 %v1753, %v1752
    %v1769 = vpack.c.b16 %v1755, %v1754
    %v1770 = vpack.c.b16 %v1757, %v1756
    %v1771 = vpack.c.b16 %v1759, %v1758
    %v1772 = vpack.c.b16 %v1761, %v1760
    %v1773 = vpack.c.b16 %v1763, %v1762
    %v1774 = vpack.c.b16 %v1765, %v1764
    %v1775 = vpack.c.b16 %v1767, %v1766
    %1784 = vmatprep.subr.bf16.mxu0 0
    %1785 = vmatpush1.bf16.msra.mxu0 %v1768
    %1786 = vmatprep.subr.bf16.mxu0 0
    %1787 = vmatpush1.bf16.msra.mxu0 %v1769
    %1788 = vmatprep.subr.bf16.mxu0 0
    %1789 = vmatpush1.bf16.msra.mxu0 %v1770
    %1790 = vmatprep.subr.bf16.mxu0 0
    %1791 = vmatpush1.bf16.msra.mxu0 %v1771
    %1792 = vmatprep.subr.bf16.mxu0 0
    %1793 = vmatpush1.bf16.msra.mxu0 %v1772
    %1794 = vmatprep.subr.bf16.mxu0 0
    %1795 = vmatpush1.bf16.msra.mxu0 %v1773
    %1796 = vmatprep.subr.bf16.mxu0 0
    %1797 = vmatpush1.bf16.msra.mxu0 %v1774
    %1798 = vmatprep.subr.bf16.mxu0 0
    %1799 = vmatpush1.bf16.msra.mxu0 %v1775
    %1800 = vmatprep.subr.bf16.mxu0 0
    %1801 = vmatpush1.bf16.msra.mxu0 0
    %1802 = vmatprep.subr.bf16.mxu0 0
    %1803 = vmatpush1.bf16.msra.mxu0 0
    %1804 = vmatprep.subr.bf16.mxu0 0
    %1805 = vmatpush1.bf16.msra.mxu0 0
    %1806 = vmatprep.subr.bf16.mxu0 0
    %1807 = vmatpush1.bf16.msra.mxu0 0
    %1808 = vmatprep.subr.bf16.mxu0 0
    %1809 = vmatpush1.bf16.msra.mxu0 0
    %1810 = vmatprep.subr.bf16.mxu0 0
    %1811 = vmatpush1.bf16.msra.mxu0 0
    %1812 = vmatprep.subr.bf16.mxu0 0
    %1813 = vmatpush1.bf16.msra.mxu0 0
    %1814 = vmatprep.subr.bf16.mxu0 0
    %1815 = vmatpush1.bf16.msra.mxu0 0
    %1816 = vmatprep.mubr.bf16.mxu0 0
    %1817 = vmatmul.mubr.bf16.gmra.mrb[0].mxu0 %v1147
    %v1818 = vpop.f32.mrb[0].mxu0
    %v1819 = vadd.f32 0.0, %v1818
    %v1820 = vpop.f32.mrb[0].mxu0
    %v1821 = vpop.f32.mrb[0].mxu0
    %v1822 = vadd.f32 0.0, %v1821
    %v1823 = vpop.f32.mrb[0].mxu0
    %1824 = vdwg.mxu0
    %s1825 = scalar_lea.vmem %s6, 48
    %v1826 = vld [vmem:[%s1825] sm:$0xf]
    %v1827 = vld [vmem:[%s1825 + $0x4] sm:$0xf]
    %v1828 = vld [vmem:[%s1825 + $0x8] sm:$0xf]
    %v1829 = vld [vmem:[%s1825 + $0xc] sm:$0xf]
    %v1830 = vpack.c.bf16 %v1822, %v1819
    %v1835 = vunpack.c.l.b16 %v1826
    %v1836 = vunpack.c.l.b16 %v1827
    %v1837 = vunpack.c.l.b16 %v1828
    %v1838 = vunpack.c.l.b16 %v1829
    %v1839 = vpack.c.b16 %v1836, %v1835
    %v1840 = vpack.c.b16 %v1838, %v1837
    %v1842 = vsel %vm1297, %v1839, 0
    %v1845 = vsel %vm1297, %v1840, 0
    %1847 = vmatprep.subr.bf16.mxu0 0
    %1848 = vmatpush1.bf16.msra.mxu0 %v1830
    %1849 = vmatprep.subr.bf16.mxu0 0
    %1850 = vmatpush1.bf16.msra.mxu0 0
    %1851 = vmatprep.subr.bf16.mxu0 0
    %1852 = vmatpush1.bf16.msra.mxu0 0
    %1853 = vmatprep.subr.bf16.mxu0 0
    %1854 = vmatpush1.bf16.msra.mxu0 0
    %1855 = vmatprep.subr.bf16.mxu0 0
    %1856 = vmatpush1.bf16.msra.mxu0 0
    %1857 = vmatprep.subr.bf16.mxu0 0
    %1858 = vmatpush1.bf16.msra.mxu0 0
    %1859 = vmatprep.subr.bf16.mxu0 0
    %1860 = vmatpush1.bf16.msra.mxu0 0
    %1861 = vmatprep.subr.bf16.mxu0 0
    %1862 = vmatpush1.bf16.msra.mxu0 0
    %1863 = vmatprep.subr.bf16.mxu0 0
    %1864 = vmatpush1.bf16.msra.mxu0 0
    %1865 = vmatprep.subr.bf16.mxu0 0
    %1866 = vmatpush1.bf16.msra.mxu0 0
    %1867 = vmatprep.subr.bf16.mxu0 0
    %1868 = vmatpush1.bf16.msra.mxu0 0
    %1869 = vmatprep.subr.bf16.mxu0 0
    %1870 = vmatpush1.bf16.msra.mxu0 0
    %1871 = vmatprep.subr.bf16.mxu0 0
    %1872 = vmatpush1.bf16.msra.mxu0 0
    %1873 = vmatprep.subr.bf16.mxu0 0
    %1874 = vmatpush1.bf16.msra.mxu0 0
    %1875 = vmatprep.subr.bf16.mxu0 0
    %1876 = vmatpush1.bf16.msra.mxu0 0
    %1877 = vmatprep.subr.bf16.mxu0 0
    %1878 = vmatpush1.bf16.msra.mxu0 0
    %1879 = vmatprep.mubr.bf16.mxu0 0
    %1880 = vmatmul.mubr.bf16.gmra.mrb[0].mxu0 %v1842
    %v1881 = vpop.f32.mrb[0].mxu0
    %v1882 = vadd.f32 0.0, %v1881
    %v1883 = vpop.f32.mrb[0].mxu0
    %v1884 = vpop.f32.mrb[0].mxu0
    %v1885 = vadd.f32 0.0, %v1884
    %v1886 = vpop.f32.mrb[0].mxu0
    %1887 = vmatprep.mubr.bf16.mxu0 0
    %1888 = vmatmul.mubr.bf16.gmra.mrb[0].mxu0 %v1845
    %v1889 = vpop.f32.mrb[0].mxu0
    %v1890 = vadd.f32 0.0, %v1889
    %v1891 = vpop.f32.mrb[0].mxu0
    %v1892 = vpop.f32.mrb[0].mxu0
    %v1893 = vadd.f32 0.0, %v1892
    %v1894 = vpop.f32.mrb[0].mxu0
    %1895 = vdwg.mxu0
    %v1896 = vadd.f32 %v1715, %v1882
    %v1897 = vadd.f32 %v1716, %v1885
    %v1898 = vadd.f32 %v1717, %v1890
    %v1899 = vadd.f32 %v1718, %v1893
    %1900 = vmatprep.subr.bf16.mxu0 0
    %1901 = vmatpush1.bf16.msra.mxu0 %v1406
    %1902 = vmatprep.subr.bf16.mxu0 0
    %1903 = vmatpush1.bf16.msra.mxu0 %v1407
    %1904 = vmatprep.subr.bf16.mxu0 0
    %1905 = vmatpush1.bf16.msra.mxu0 %v1408
    %1906 = vmatprep.subr.bf16.mxu0 0
    %1907 = vmatpush1.bf16.msra.mxu0 %v1409
    %1908 = vmatprep.subr.bf16.mxu0 0
    %1909 = vmatpush1.bf16.msra.mxu0 %v1410
    %1910 = vmatprep.subr.bf16.mxu0 0
    %1911 = vmatpush1.bf16.msra.mxu0 %v1411
    %1912 = vmatprep.subr.bf16.mxu0 0
    %1913 = vmatpush1.bf16.msra.mxu0 %v1412
    %1914 = vmatprep.subr.bf16.mxu0 0
    %1915 = vmatpush1.bf16.msra.mxu0 %v1413
    %1916 = vmatprep.subr.bf16.mxu0 0
    %1917 = vmatpush1.bf16.msra.mxu0 0
    %1918 = vmatprep.subr.bf16.mxu0 0
    %1919 = vmatpush1.bf16.msra.mxu0 0
    %1920 = vmatprep.subr.bf16.mxu0 0
    %1921 = vmatpush1.bf16.msra.mxu0 0
    %1922 = vmatprep.subr.bf16.mxu0 0
    %1923 = vmatpush1.bf16.msra.mxu0 0
    %1924 = vmatprep.subr.bf16.mxu0 0
    %1925 = vmatpush1.bf16.msra.mxu0 0
    %1926 = vmatprep.subr.bf16.mxu0 0
    %1927 = vmatpush1.bf16.msra.mxu0 0
    %1928 = vmatprep.subr.bf16.mxu0 0
    %1929 = vmatpush1.bf16.msra.mxu0 0
    %1930 = vmatprep.subr.bf16.mxu0 0
    %1931 = vmatpush1.bf16.msra.mxu0 0
    %1932 = vmatprep.mubr.bf16.mxu0 0
    %1933 = vmatmul.mubr.bf16.gmra.mrb[0].mxu0 %v1147
    %v1934 = vpop.f32.mrb[0].mxu0
    %v1935 = vadd.f32 0.0, %v1934
    %v1936 = vpop.f32.mrb[0].mxu0
    %v1937 = vpop.f32.mrb[0].mxu0
    %v1938 = vadd.f32 0.0, %v1937
    %v1939 = vpop.f32.mrb[0].mxu0
    %1940 = vdwg.mxu0
    %s1941 = scalar_lea.vmem %s6, 64
    %v1942 = vld [vmem:[%s1941] sm:$0xf]
    %v1943 = vld [vmem:[%s1941 + $0x4] sm:$0xf]
    %v1944 = vld [vmem:[%s1941 + $0x8] sm:$0xf]
    %v1945 = vld [vmem:[%s1941 + $0xc] sm:$0xf]
    %v1946 = vpack.c.bf16 %v1938, %v1935
    %v1951 = vunpack.c.l.b16 %v1942
    %v1952 = vunpack.c.l.b16 %v1943
    %v1953 = vunpack.c.l.b16 %v1944
    %v1954 = vunpack.c.l.b16 %v1945
    %v1955 = vpack.c.b16 %v1952, %v1951
    %v1956 = vpack.c.b16 %v1954, %v1953
    %v1958 = vsel %vm1297, %v1955, 0
    %v1961 = vsel %vm1297, %v1956, 0
    %1963 = vmatprep.subr.bf16.mxu0 0
    %1964 = vmatpush1.bf16.msra.mxu0 %v1946
    %1965 = vmatprep.subr.bf16.mxu0 0
    %1966 = vmatpush1.bf16.msra.mxu0 0
    %1967 = vmatprep.subr.bf16.mxu0 0
    %1968 = vmatpush1.bf16.msra.mxu0 0
    %1969 = vmatprep.subr.bf16.mxu0 0
    %1970 = vmatpush1.bf16.msra.mxu0 0
    %1971 = vmatprep.subr.bf16.mxu0 0
    %1972 = vmatpush1.bf16.msra.mxu0 0
    %1973 = vmatprep.subr.bf16.mxu0 0
    %1974 = vmatpush1.bf16.msra.mxu0 0
    %1975 = vmatprep.subr.bf16.mxu0 0
    %1976 = vmatpush1.bf16.msra.mxu0 0
    %1977 = vmatprep.subr.bf16.mxu0 0
    %1978 = vmatpush1.bf16.msra.mxu0 0
    %1979 = vmatprep.subr.bf16.mxu0 0
    %1980 = vmatpush1.bf16.msra.mxu0 0
    %1981 = vmatprep.subr.bf16.mxu0 0
    %1982 = vmatpush1.bf16.msra.mxu0 0
    %1983 = vmatprep.subr.bf16.mxu0 0
    %1984 = vmatpush1.bf16.msra.mxu0 0
    %1985 = vmatprep.subr.bf16.mxu0 0
    %1986 = vmatpush1.bf16.msra.mxu0 0
    %1987 = vmatprep.subr.bf16.mxu0 0
    %1988 = vmatpush1.bf16.msra.mxu0 0
    %1989 = vmatprep.subr.bf16.mxu0 0
    %1990 = vmatpush1.bf16.msra.mxu0 0
    %1991 = vmatprep.subr.bf16.mxu0 0
    %1992 = vmatpush1.bf16.msra.mxu0 0
    %1993 = vmatprep.subr.bf16.mxu0 0
    %1994 = vmatpush1.bf16.msra.mxu0 0
    %1995 = vmatprep.mubr.bf16.mxu0 0
    %1996 = vmatmul.mubr.bf16.gmra.mrb[0].mxu0 %v1958
    %v1997 = vpop.f32.mrb[0].mxu0
    %v1998 = vadd.f32 0.0, %v1997
    %v1999 = vpop.f32.mrb[0].mxu0
    %v2000 = vpop.f32.mrb[0].mxu0
    %v2001 = vadd.f32 0.0, %v2000
    %v2002 = vpop.f32.mrb[0].mxu0
    %2003 = vmatprep.mubr.bf16.mxu0 0
    %2004 = vmatmul.mubr.bf16.gmra.mrb[0].mxu0 %v1961
    %v2005 = vpop.f32.mrb[0].mxu0
    %v2006 = vadd.f32 0.0, %v2005
    %v2007 = vpop.f32.mrb[0].mxu0
    %v2008 = vpop.f32.mrb[0].mxu0
    %v2009 = vadd.f32 0.0, %v2008
    %v2010 = vpop.f32.mrb[0].mxu0
    %2011 = vdwg.mxu0
    %v2012 = vadd.f32 %v1896, %v1998
    %v2013 = vadd.f32 %v1897, %v2001
    %v2014 = vadd.f32 %v1898, %v2006
    %v2015 = vadd.f32 %v1899, %v2009
    %s2016 = scalar_lea.vmem [#allocation6], 384
    %v2017 = vld [vmem:[%s2016] sm:$0xf]
    %v2018 = vld [vmem:[%s2016 + $0x4] sm:$0xf]
    %v2019 = vld [vmem:[%s2016 + $0x8] sm:$0xf]
    %v2020 = vld [vmem:[%s2016 + $0xc] sm:$0xf]
    %v2021 = vld [vmem:[%s2016 + $0x10] sm:$0xf]
    %v2022 = vld [vmem:[%s2016 + $0x14] sm:$0xf]
    %v2023 = vld [vmem:[%s2016 + $0x18] sm:$0xf]
    %v2024 = vld [vmem:[%s2016 + $0x1c] sm:$0xf]
    %v2025 = vld [vmem:[%s2016 + $0x20] sm:$0xf]
    %v2026 = vld [vmem:[%s2016 + $0x24] sm:$0xf]
    %v2027 = vld [vmem:[%s2016 + $0x28] sm:$0xf]
    %v2028 = vld [vmem:[%s2016 + $0x2c] sm:$0xf]
    %v2029 = vld [vmem:[%s2016 + $0x30] sm:$0xf]
    %v2030 = vld [vmem:[%s2016 + $0x34] sm:$0xf]
    %v2031 = vld [vmem:[%s2016 + $0x38] sm:$0xf]
    %v2032 = vld [vmem:[%s2016 + $0x3c] sm:$0xf]
    %v2049 = vunpack.c.l.b16 %v2017
    %v2050 = vunpack.c.l.b16 %v2018
    %v2051 = vunpack.c.l.b16 %v2019
    %v2052 = vunpack.c.l.b16 %v2020
    %v2053 = vunpack.c.l.b16 %v2021
    %v2054 = vunpack.c.l.b16 %v2022
    %v2055 = vunpack.c.l.b16 %v2023
    %v2056 = vunpack.c.l.b16 %v2024
    %v2057 = vunpack.c.l.b16 %v2025
    %v2058 = vunpack.c.l.b16 %v2026
    %v2059 = vunpack.c.l.b16 %v2027
    %v2060 = vunpack.c.l.b16 %v2028
    %v2061 = vunpack.c.l.b16 %v2029
    %v2062 = vunpack.c.l.b16 %v2030
    %v2063 = vunpack.c.l.b16 %v2031
    %v2064 = vunpack.c.l.b16 %v2032
    %v2065 = vpack.c.b16 %v2050, %v2049
    %v2066 = vpack.c.b16 %v2052, %v2051
    %v2067 = vpack.c.b16 %v2054, %v2053
    %v2068 = vpack.c.b16 %v2056, %v2055
    %v2069 = vpack.c.b16 %v2058, %v2057
    %v2070 = vpack.c.b16 %v2060, %v2059
    %v2071 = vpack.c.b16 %v2062, %v2061
    %v2072 = vpack.c.b16 %v2064, %v2063
    %2081 = vmatprep.subr.bf16.mxu0 0
    %2082 = vmatpush1.bf16.msra.mxu0 %v2065
    %2083 = vmatprep.subr.bf16.mxu0 0
    %2084 = vmatpush1.bf16.msra.mxu0 %v2066
    %2085 = vmatprep.subr.bf16.mxu0 0
    %2086 = vmatpush1.bf16.msra.mxu0 %v2067
    %2087 = vmatprep.subr.bf16.mxu0 0
    %2088 = vmatpush1.bf16.msra.mxu0 %v2068
    %2089 = vmatprep.subr.bf16.mxu0 0
    %2090 = vmatpush1.bf16.msra.mxu0 %v2069
    %2091 = vmatprep.subr.bf16.mxu0 0
    %2092 = vmatpush1.bf16.msra.mxu0 %v2070
    %2093 = vmatprep.subr.bf16.mxu0 0
    %2094 = vmatpush1.bf16.msra.mxu0 %v2071
    %2095 = vmatprep.subr.bf16.mxu0 0
    %2096 = vmatpush1.bf16.msra.mxu0 %v2072
    %2097 = vmatprep.subr.bf16.mxu0 0
    %2098 = vmatpush1.bf16.msra.mxu0 0
    %2099 = vmatprep.subr.bf16.mxu0 0
    %2100 = vmatpush1.bf16.msra.mxu0 0
    %2101 = vmatprep.subr.bf16.mxu0 0
    %2102 = vmatpush1.bf16.msra.mxu0 0
    %2103 = vmatprep.subr.bf16.mxu0 0
    %2104 = vmatpush1.bf16.msra.mxu0 0
    %2105 = vmatprep.subr.bf16.mxu0 0
    %2106 = vmatpush1.bf16.msra.mxu0 0
    %2107 = vmatprep.subr.bf16.mxu0 0
    %2108 = vmatpush1.bf16.msra.mxu0 0
    %2109 = vmatprep.subr.bf16.mxu0 0
    %2110 = vmatpush1.bf16.msra.mxu0 0
    %2111 = vmatprep.subr.bf16.mxu0 0
    %2112 = vmatpush1.bf16.msra.mxu0 0
    %2113 = vmatprep.mubr.bf16.mxu0 0
    %2114 = vmatmul.mubr.bf16.gmra.mrb[0].mxu0 %v1147
    %v2115 = vpop.f32.mrb[0].mxu0
    %v2116 = vadd.f32 0.0, %v2115
    %v2117 = vpop.f32.mrb[0].mxu0
    %v2118 = vpop.f32.mrb[0].mxu0
    %v2119 = vadd.f32 0.0, %v2118
    %v2120 = vpop.f32.mrb[0].mxu0
    %2121 = vdwg.mxu0
    %s2122 = scalar_lea.vmem %s6, 80
    %v2123 = vld [vmem:[%s2122] sm:$0xf]
    %v2124 = vld [vmem:[%s2122 + $0x4] sm:$0xf]
    %v2125 = vld [vmem:[%s2122 + $0x8] sm:$0xf]
    %v2126 = vld [vmem:[%s2122 + $0xc] sm:$0xf]
    %v2127 = vpack.c.bf16 %v2119, %v2116
    %v2132 = vunpack.c.l.b16 %v2123
    %v2133 = vunpack.c.l.b16 %v2124
    %v2134 = vunpack.c.l.b16 %v2125
    %v2135 = vunpack.c.l.b16 %v2126
    %v2136 = vpack.c.b16 %v2133, %v2132
    %v2137 = vpack.c.b16 %v2135, %v2134
    %v2139 = vsel %vm1297, %v2136, 0
    %v2142 = vsel %vm1297, %v2137, 0
    %2144 = vmatprep.subr.bf16.mxu0 0
    %2145 = vmatpush1.bf16.msra.mxu0 %v2127
    %2146 = vmatprep.subr.bf16.mxu0 0
    %2147 = vmatpush1.bf16.msra.mxu0 0
    %2148 = vmatprep.subr.bf16.mxu0 0
    %2149 = vmatpush1.bf16.msra.mxu0 0
    %2150 = vmatprep.subr.bf16.mxu0 0
    %2151 = vmatpush1.bf16.msra.mxu0 0
    %2152 = vmatprep.subr.bf16.mxu0 0
    %2153 = vmatpush1.bf16.msra.mxu0 0
    %2154 = vmatprep.subr.bf16.mxu0 0
    %2155 = vmatpush1.bf16.msra.mxu0 0
    %2156 = vmatprep.subr.bf16.mxu0 0
    %2157 = vmatpush1.bf16.msra.mxu0 0
    %2158 = vmatprep.subr.bf16.mxu0 0
    %2159 = vmatpush1.bf16.msra.mxu0 0
    %2160 = vmatprep.subr.bf16.mxu0 0
    %2161 = vmatpush1.bf16.msra.mxu0 0
    %2162 = vmatprep.subr.bf16.mxu0 0
    %2163 = vmatpush1.bf16.msra.mxu0 0
    %2164 = vmatprep.subr.bf16.mxu0 0
    %2165 = vmatpush1.bf16.msra.mxu0 0
    %2166 = vmatprep.subr.bf16.mxu0 0
    %2167 = vmatpush1.bf16.msra.mxu0 0
    %2168 = vmatprep.subr.bf16.mxu0 0
    %2169 = vmatpush1.bf16.msra.mxu0 0
    %2170 = vmatprep.subr.bf16.mxu0 0
    %2171 = vmatpush1.bf16.msra.mxu0 0
    %2172 = vmatprep.subr.bf16.mxu0 0
    %2173 = vmatpush1.bf16.msra.mxu0 0
    %2174 = vmatprep.subr.bf16.mxu0 0
    %2175 = vmatpush1.bf16.msra.mxu0 0
    %2176 = vmatprep.mubr.bf16.mxu0 0
    %2177 = vmatmul.mubr.bf16.gmra.mrb[0].mxu0 %v2139
    %v2178 = vpop.f32.mrb[0].mxu0
    %v2179 = vadd.f32 0.0, %v2178
    %v2180 = vpop.f32.mrb[0].mxu0
    %v2181 = vpop.f32.mrb[0].mxu0
    %v2182 = vadd.f32 0.0, %v2181
    %v2183 = vpop.f32.mrb[0].mxu0
    %2184 = vmatprep.mubr.bf16.mxu0 0
    %2185 = vmatmul.mubr.bf16.gmra.mrb[0].mxu0 %v2142
    %v2186 = vpop.f32.mrb[0].mxu0
    %v2187 = vadd.f32 0.0, %v2186
    %v2188 = vpop.f32.mrb[0].mxu0
    %v2189 = vpop.f32.mrb[0].mxu0
    %v2190 = vadd.f32 0.0, %v2189
    %v2191 = vpop.f32.mrb[0].mxu0
    %2192 = vdwg.mxu0
    %v2193 = vadd.f32 %v2012, %v2179
    %v2194 = vadd.f32 %v2013, %v2182
    %v2195 = vadd.f32 %v2014, %v2187
    %v2196 = vadd.f32 %v2015, %v2190
    %v2197 = vmax.f32 %v2193, 0.0
    %v2198 = vmax.f32 %v2194, 0.0
    %v2199 = vmax.f32 %v2195, 0.0
    %v2200 = vmax.f32 %v2196, 0.0
    %v2201 = vpack.c.bf16 %v2198, %v2197
    %v2202 = vpack.c.bf16 %v2200, %v2199
    %v2203 = vld [vmem:[#allocation6] sm:$0xf]
    %v2204 = vld [vmem:[#allocation6 + $0x4] sm:$0xf]
    %v2205 = vld [vmem:[#allocation6 + $0x8] sm:$0xf]
    %v2206 = vld [vmem:[#allocation6 + $0xc] sm:$0xf]
    %v2207 = vld [vmem:[#allocation6 + $0x10] sm:$0xf]
    %v2208 = vld [vmem:[#allocation6 + $0x14] sm:$0xf]
    %v2209 = vld [vmem:[#allocation6 + $0x18] sm:$0xf]
    %v2210 = vld [vmem:[#allocation6 + $0x1c] sm:$0xf]
    %v2211 = vld [vmem:[#allocation6 + $0x20] sm:$0xf]
    %v2212 = vld [vmem:[#allocation6 + $0x24] sm:$0xf]
    %v2213 = vld [vmem:[#allocation6 + $0x28] sm:$0xf]
    %v2214 = vld [vmem:[#allocation6 + $0x2c] sm:$0xf]
    %v2215 = vld [vmem:[#allocation6 + $0x30] sm:$0xf]
    %v2216 = vld [vmem:[#allocation6 + $0x34] sm:$0xf]
    %v2217 = vld [vmem:[#allocation6 + $0x38] sm:$0xf]
    %v2218 = vld [vmem:[#allocation6 + $0x3c] sm:$0xf]
    %v2235 = vunpack.c.l.b16 %v2203
    %v2236 = vunpack.c.l.b16 %v2204
    %v2237 = vunpack.c.l.b16 %v2205
    %v2238 = vunpack.c.l.b16 %v2206
    %v2239 = vunpack.c.l.b16 %v2207
    %v2240 = vunpack.c.l.b16 %v2208
    %v2241 = vunpack.c.l.b16 %v2209
    %v2242 = vunpack.c.l.b16 %v2210
    %v2243 = vunpack.c.l.b16 %v2211
    %v2244 = vunpack.c.l.b16 %v2212
    %v2245 = vunpack.c.l.b16 %v2213
    %v2246 = vunpack.c.l.b16 %v2214
    %v2247 = vunpack.c.l.b16 %v2215
    %v2248 = vunpack.c.l.b16 %v2216
    %v2249 = vunpack.c.l.b16 %v2217
    %v2250 = vunpack.c.l.b16 %v2218
    %v2251 = vpack.c.b16 %v2236, %v2235
    %v2252 = vpack.c.b16 %v2238, %v2237
    %v2253 = vpack.c.b16 %v2240, %v2239
    %v2254 = vpack.c.b16 %v2242, %v2241
    %v2255 = vpack.c.b16 %v2244, %v2243
    %v2256 = vpack.c.b16 %v2246, %v2245
    %v2257 = vpack.c.b16 %v2248, %v2247
    %v2258 = vpack.c.b16 %v2250, %v2249
    %2267 = vmatprep.subr.bf16.mxu0 0
    %2268 = vmatpush1.bf16.msra.mxu0 %v2251
    %2269 = vmatprep.subr.bf16.mxu0 0
    %2270 = vmatpush1.bf16.msra.mxu0 %v2252
    %2271 = vmatprep.subr.bf16.mxu0 0
    %2272 = vmatpush1.bf16.msra.mxu0 %v2253
    %2273 = vmatprep.subr.bf16.mxu0 0
    %2274 = vmatpush1.bf16.msra.mxu0 %v2254
    %2275 = vmatprep.subr.bf16.mxu0 0
    %2276 = vmatpush1.bf16.msra.mxu0 %v2255
    %2277 = vmatprep.subr.bf16.mxu0 0
    %2278 = vmatpush1.bf16.msra.mxu0 %v2256
    %2279 = vmatprep.subr.bf16.mxu0 0
    %2280 = vmatpush1.bf16.msra.mxu0 %v2257
    %2281 = vmatprep.subr.bf16.mxu0 0
    %2282 = vmatpush1.bf16.msra.mxu0 %v2258
    %2283 = vmatprep.subr.bf16.mxu0 0
    %2284 = vmatpush1.bf16.msra.mxu0 0
    %2285 = vmatprep.subr.bf16.mxu0 0
    %2286 = vmatpush1.bf16.msra.mxu0 0
    %2287 = vmatprep.subr.bf16.mxu0 0
    %2288 = vmatpush1.bf16.msra.mxu0 0
    %2289 = vmatprep.subr.bf16.mxu0 0
    %2290 = vmatpush1.bf16.msra.mxu0 0
    %2291 = vmatprep.subr.bf16.mxu0 0
    %2292 = vmatpush1.bf16.msra.mxu0 0
    %2293 = vmatprep.subr.bf16.mxu0 0
    %2294 = vmatpush1.bf16.msra.mxu0 0
    %2295 = vmatprep.subr.bf16.mxu0 0
    %2296 = vmatpush1.bf16.msra.mxu0 0
    %2297 = vmatprep.subr.bf16.mxu0 0
    %2298 = vmatpush1.bf16.msra.mxu0 0
    %2299 = vmatprep.mubr.bf16.mxu0 0
    %2300 = vmatmul.mubr.bf16.gmra.mrb[0].mxu0 %v2201
    %v2301 = vpop.f32.mrb[0].mxu0
    %v2302 = vadd.f32 0.0, %v2301
    %v2303 = vpop.f32.mrb[0].mxu0
    %v2304 = vpop.f32.mrb[0].mxu0
    %v2305 = vadd.f32 0.0, %v2304
    %v2306 = vpop.f32.mrb[0].mxu0
    %2307 = vmatprep.mubr.bf16.mxu0 0
    %2308 = vmatmul.mubr.bf16.gmra.mrb[0].mxu0 %v2202
    %v2309 = vpop.f32.mrb[0].mxu0
    %v2310 = vadd.f32 0.0, %v2309
    %v2311 = vpop.f32.mrb[0].mxu0
    %v2312 = vpop.f32.mrb[0].mxu0
    %v2313 = vadd.f32 0.0, %v2312
    %v2314 = vpop.f32.mrb[0].mxu0
    %2315 = vdwg.mxu0
    %v2316 = vld [vmem:[#allocation4] sm:$0xf]
    %v2317 = vld [vmem:[#allocation4 + $0x4] sm:$0xf]
    %v2318 = vld [vmem:[#allocation4 + $0x8] sm:$0xf]
    %v2319 = vld [vmem:[#allocation4 + $0xc] sm:$0xf]
    %v2320 = vpack.c.bf16 %v2305, %v2302
    %v2321 = vpack.c.bf16 %v2313, %v2310
    %s2322 = scalar_lea.vmem [#allocation6], 64
    %v2323 = vld [vmem:[%s2322] sm:$0xf]
    %v2324 = vld [vmem:[%s2322 + $0x4] sm:$0xf]
    %v2325 = vld [vmem:[%s2322 + $0x8] sm:$0xf]
    %v2326 = vld [vmem:[%s2322 + $0xc] sm:$0xf]
    %v2327 = vld [vmem:[%s2322 + $0x10] sm:$0xf]
    %v2328 = vld [vmem:[%s2322 + $0x14] sm:$0xf]
    %v2329 = vld [vmem:[%s2322 + $0x18] sm:$0xf]
    %v2330 = vld [vmem:[%s2322 + $0x1c] sm:$0xf]
    %v2331 = vld [vmem:[%s2322 + $0x20] sm:$0xf]
    %v2332 = vld [vmem:[%s2322 + $0x24] sm:$0xf]
    %v2333 = vld [vmem:[%s2322 + $0x28] sm:$0xf]
    %v2334 = vld [vmem:[%s2322 + $0x2c] sm:$0xf]
    %v2335 = vld [vmem:[%s2322 + $0x30] sm:$0xf]
    %v2336 = vld [vmem:[%s2322 + $0x34] sm:$0xf]
    %v2337 = vld [vmem:[%s2322 + $0x38] sm:$0xf]
    %v2338 = vld [vmem:[%s2322 + $0x3c] sm:$0xf]
    %v2355 = vunpack.c.l.b16 %v2323
    %v2356 = vunpack.c.l.b16 %v2324
    %v2357 = vunpack.c.l.b16 %v2325
    %v2358 = vunpack.c.l.b16 %v2326
    %v2359 = vunpack.c.l.b16 %v2327
    %v2360 = vunpack.c.l.b16 %v2328
    %v2361 = vunpack.c.l.b16 %v2329
    %v2362 = vunpack.c.l.b16 %v2330
    %v2363 = vunpack.c.l.b16 %v2331
    %v2364 = vunpack.c.l.b16 %v2332
    %v2365 = vunpack.c.l.b16 %v2333
    %v2366 = vunpack.c.l.b16 %v2334
    %v2367 = vunpack.c.l.b16 %v2335
    %v2368 = vunpack.c.l.b16 %v2336
    %v2369 = vunpack.c.l.b16 %v2337
    %v2370 = vunpack.c.l.b16 %v2338
    %v2371 = vpack.c.b16 %v2356, %v2355
    %v2372 = vpack.c.b16 %v2358, %v2357
    %v2373 = vpack.c.b16 %v2360, %v2359
    %v2374 = vpack.c.b16 %v2362, %v2361
    %v2375 = vpack.c.b16 %v2364, %v2363
    %v2376 = vpack.c.b16 %v2366, %v2365
    %v2377 = vpack.c.b16 %v2368, %v2367
    %v2378 = vpack.c.b16 %v2370, %v2369
    %2387 = vmatprep.subr.bf16.mxu0 0
    %2388 = vmatpush1.bf16.msra.mxu0 %v2371
    %2389 = vmatprep.subr.bf16.mxu0 0
    %2390 = vmatpush1.bf16.msra.mxu0 %v2372
    %2391 = vmatprep.subr.bf16.mxu0 0
    %2392 = vmatpush1.bf16.msra.mxu0 %v2373
    %2393 = vmatprep.subr.bf16.mxu0 0
    %2394 = vmatpush1.bf16.msra.mxu0 %v2374
    %2395 = vmatprep.subr.bf16.mxu0 0
    %2396 = vmatpush1.bf16.msra.mxu0 %v2375
    %2397 = vmatprep.subr.bf16.mxu0 0
    %2398 = vmatpush1.bf16.msra.mxu0 %v2376
    %2399 = vmatprep.subr.bf16.mxu0 0
    %2400 = vmatpush1.bf16.msra.mxu0 %v2377
    %2401 = vmatprep.subr.bf16.mxu0 0
    %2402 = vmatpush1.bf16.msra.mxu0 %v2378
    %2403 = vmatprep.subr.bf16.mxu0 0
    %2404 = vmatpush1.bf16.msra.mxu0 0
    %2405 = vmatprep.subr.bf16.mxu0 0
    %2406 = vmatpush1.bf16.msra.mxu0 0
    %2407 = vmatprep.subr.bf16.mxu0 0
    %2408 = vmatpush1.bf16.msra.mxu0 0
    %2409 = vmatprep.subr.bf16.mxu0 0
    %2410 = vmatpush1.bf16.msra.mxu0 0
    %2411 = vmatprep.subr.bf16.mxu0 0
    %2412 = vmatpush1.bf16.msra.mxu0 0
    %2413 = vmatprep.subr.bf16.mxu0 0
    %2414 = vmatpush1.bf16.msra.mxu0 0
    %2415 = vmatprep.subr.bf16.mxu0 0
    %2416 = vmatpush1.bf16.msra.mxu0 0
    %2417 = vmatprep.subr.bf16.mxu0 0
    %2418 = vmatpush1.bf16.msra.mxu0 0
    %2419 = vmatprep.mubr.bf16.mxu0 0
    %2420 = vmatmul.mubr.bf16.gmra.mrb[0].mxu0 %v2201
    %v2421 = vpop.f32.mrb[0].mxu0
    %v2422 = vadd.f32 0.0, %v2421
    %v2423 = vpop.f32.mrb[0].mxu0
    %v2424 = vpop.f32.mrb[0].mxu0
    %v2425 = vadd.f32 0.0, %v2424
    %v2426 = vpop.f32.mrb[0].mxu0
    %2427 = vmatprep.mubr.bf16.mxu0 0
    %2428 = vmatmul.mubr.bf16.gmra.mrb[0].mxu0 %v2202
    %v2429 = vpop.f32.mrb[0].mxu0
    %v2430 = vadd.f32 0.0, %v2429
    %v2431 = vpop.f32.mrb[0].mxu0
    %v2432 = vpop.f32.mrb[0].mxu0
    %v2433 = vadd.f32 0.0, %v2432
    %v2434 = vpop.f32.mrb[0].mxu0
    %2435 = vdwg.mxu0
    %s2436 = scalar_lea.vmem [#allocation4], 16
    %v2437 = vld [vmem:[%s2436] sm:$0xf]
    %v2438 = vld [vmem:[%s2436 + $0x4] sm:$0xf]
    %v2439 = vld [vmem:[%s2436 + $0x8] sm:$0xf]
    %v2440 = vld [vmem:[%s2436 + $0xc] sm:$0xf]
    %v2441 = vpack.c.bf16 %v2425, %v2422
    %v2442 = vpack.c.bf16 %v2433, %v2430
    %v2447 = vunpack.c.l.b16 %v2437
    %v2448 = vunpack.c.l.b16 %v2438
    %v2449 = vunpack.c.l.b16 %v2439
    %v2450 = vunpack.c.l.b16 %v2440
    %v2451 = vpack.c.b16 %v2448, %v2447
    %v2452 = vpack.c.b16 %v2450, %v2449
    %v2454 = vsel %vm219, %v2451, 0
    %v2457 = vsel %vm219, %v2452, 0
    %2459 = vmatprep.subr.bf16.mxu0 0
    %2460 = vmatpush1.bf16.msra.mxu0 %v2441
    %2461 = vmatprep.subr.bf16.mxu0 0
    %2462 = vmatpush1.bf16.msra.mxu0 %v2442
    %2463 = vmatprep.subr.bf16.mxu0 0
    %2464 = vmatpush1.bf16.msra.mxu0 0
    %2465 = vmatprep.subr.bf16.mxu0 0
    %2466 = vmatpush1.bf16.msra.mxu0 0
    %2467 = vmatprep.subr.bf16.mxu0 0
    %2468 = vmatpush1.bf16.msra.mxu0 0
    %2469 = vmatprep.subr.bf16.mxu0 0
    %2470 = vmatpush1.bf16.msra.mxu0 0
    %2471 = vmatprep.subr.bf16.mxu0 0
    %2472 = vmatpush1.bf16.msra.mxu0 0
    %2473 = vmatprep.subr.bf16.mxu0 0
    %2474 = vmatpush1.bf16.msra.mxu0 0
    %2475 = vmatprep.subr.bf16.mxu0 0
    %2476 = vmatpush1.bf16.msra.mxu0 0
    %2477 = vmatprep.subr.bf16.mxu0 0
    %2478 = vmatpush1.bf16.msra.mxu0 0
    %2479 = vmatprep.subr.bf16.mxu0 0
    %2480 = vmatpush1.bf16.msra.mxu0 0
    %2481 = vmatprep.subr.bf16.mxu0 0
    %2482 = vmatpush1.bf16.msra.mxu0 0
    %2483 = vmatprep.subr.bf16.mxu0 0
    %2484 = vmatpush1.bf16.msra.mxu0 0
    %2485 = vmatprep.subr.bf16.mxu0 0
    %2486 = vmatpush1.bf16.msra.mxu0 0
    %2487 = vmatprep.subr.bf16.mxu0 0
    %2488 = vmatpush1.bf16.msra.mxu0 0
    %2489 = vmatprep.subr.bf16.mxu0 0
    %2490 = vmatpush1.bf16.msra.mxu0 0
    %2491 = vmatprep.mubr.bf16.mxu0 0
    %2492 = vmatmul.mubr.bf16.gmra.mrb[0].mxu0 %v2454
    %v2493 = vpop.f32.mrb[0].mxu0
    %v2494 = vadd.f32 0.0, %v2493
    %v2495 = vpop.f32.mrb[0].mxu0
    %v2496 = vpop.f32.mrb[0].mxu0
    %v2497 = vadd.f32 0.0, %v2496
    %v2498 = vpop.f32.mrb[0].mxu0
    %2499 = vmatprep.mubr.bf16.mxu0 0
    %2500 = vmatmul.mubr.bf16.gmra.mrb[0].mxu0 %v2457
    %v2501 = vpop.f32.mrb[0].mxu0
    %v2502 = vadd.f32 0.0, %v2501
    %v2503 = vpop.f32.mrb[0].mxu0
    %v2504 = vpop.f32.mrb[0].mxu0
    %v2505 = vadd.f32 0.0, %v2504
    %v2506 = vpop.f32.mrb[0].mxu0
    %2507 = vdwg.mxu0
    %v2512 = vunpack.c.l.b16 %v2316
    %v2513 = vunpack.c.l.b16 %v2317
    %v2514 = vunpack.c.l.b16 %v2318
    %v2515 = vunpack.c.l.b16 %v2319
    %v2516 = vpack.c.b16 %v2513, %v2512
    %v2517 = vpack.c.b16 %v2515, %v2514
    %v2519 = vsel %vm219, %v2516, 0
    %v2522 = vsel %vm219, %v2517, 0
    %2524 = vmatprep.subr.bf16.mxu0 0
    %2525 = vmatpush1.bf16.msra.mxu0 %v2320
    %2526 = vmatprep.subr.bf16.mxu0 0
    %2527 = vmatpush1.bf16.msra.mxu0 %v2321
    %2528 = vmatprep.subr.bf16.mxu0 0
    %2529 = vmatpush1.bf16.msra.mxu0 0
    %2530 = vmatprep.subr.bf16.mxu0 0
    %2531 = vmatpush1.bf16.msra.mxu0 0
    %2532 = vmatprep.subr.bf16.mxu0 0
    %2533 = vmatpush1.bf16.msra.mxu0 0
    %2534 = vmatprep.subr.bf16.mxu0 0
    %2535 = vmatpush1.bf16.msra.mxu0 0
    %2536 = vmatprep.subr.bf16.mxu0 0
    %2537 = vmatpush1.bf16.msra.mxu0 0
    %2538 = vmatprep.subr.bf16.mxu0 0
    %2539 = vmatpush1.bf16.msra.mxu0 0
    %2540 = vmatprep.subr.bf16.mxu0 0
    %2541 = vmatpush1.bf16.msra.mxu0 0
    %2542 = vmatprep.subr.bf16.mxu0 0
    %2543 = vmatpush1.bf16.msra.mxu0 0
    %2544 = vmatprep.subr.bf16.mxu0 0
    %2545 = vmatpush1.bf16.msra.mxu0 0
    %2546 = vmatprep.subr.bf16.mxu0 0
    %2547 = vmatpush1.bf16.msra.mxu0 0
    %2548 = vmatprep.subr.bf16.mxu0 0
    %2549 = vmatpush1.bf16.msra.mxu0 0
    %2550 = vmatprep.subr.bf16.mxu0 0
    %2551 = vmatpush1.bf16.msra.mxu0 0
    %2552 = vmatprep.subr.bf16.mxu0 0
    %2553 = vmatpush1.bf16.msra.mxu0 0
    %2554 = vmatprep.subr.bf16.mxu0 0
    %2555 = vmatpush1.bf16.msra.mxu0 0
    %2556 = vmatprep.mubr.bf16.mxu0 0
    %2557 = vmatmul.mubr.bf16.gmra.mrb[0].mxu0 %v2519
    %v2558 = vpop.f32.mrb[0].mxu0
    %v2559 = vadd.f32 %v2494, %v2558
    %v2560 = vpop.f32.mrb[0].mxu0
    %v2561 = vpop.f32.mrb[0].mxu0
    %v2562 = vadd.f32 %v2497, %v2561
    %v2563 = vpop.f32.mrb[0].mxu0
    %2564 = vmatprep.mubr.bf16.mxu0 0
    %2565 = vmatmul.mubr.bf16.gmra.mrb[0].mxu0 %v2522
    %v2566 = vpop.f32.mrb[0].mxu0
    %v2567 = vadd.f32 %v2502, %v2566
    %v2568 = vpop.f32.mrb[0].mxu0
    %v2569 = vpop.f32.mrb[0].mxu0
    %v2570 = vadd.f32 %v2505, %v2569
    %v2571 = vpop.f32.mrb[0].mxu0
    %2572 = vdwg.mxu0
    %2573 = vmatprep.subr.bf16.mxu0 0
    %2574 = vmatpush1.bf16.msra.mxu0 %v1768
    %2575 = vmatprep.subr.bf16.mxu0 0
    %2576 = vmatpush1.bf16.msra.mxu0 %v1769
    %2577 = vmatprep.subr.bf16.mxu0 0
    %2578 = vmatpush1.bf16.msra.mxu0 %v1770
    %2579 = vmatprep.subr.bf16.mxu0 0
    %2580 = vmatpush1.bf16.msra.mxu0 %v1771
    %2581 = vmatprep.subr.bf16.mxu0 0
    %2582 = vmatpush1.bf16.msra.mxu0 %v1772
    %2583 = vmatprep.subr.bf16.mxu0 0
    %2584 = vmatpush1.bf16.msra.mxu0 %v1773
    %2585 = vmatprep.subr.bf16.mxu0 0
    %2586 = vmatpush1.bf16.msra.mxu0 %v1774
    %2587 = vmatprep.subr.bf16.mxu0 0
    %2588 = vmatpush1.bf16.msra.mxu0 %v1775
    %2589 = vmatprep.subr.bf16.mxu0 0
    %2590 = vmatpush1.bf16.msra.mxu0 0
    %2591 = vmatprep.subr.bf16.mxu0 0
    %2592 = vmatpush1.bf16.msra.mxu0 0
    %2593 = vmatprep.subr.bf16.mxu0 0
    %2594 = vmatpush1.bf16.msra.mxu0 0
    %2595 = vmatprep.subr.bf16.mxu0 0
    %2596 = vmatpush1.bf16.msra.mxu0 0
    %2597 = vmatprep.subr.bf16.mxu0 0
    %2598 = vmatpush1.bf16.msra.mxu0 0
    %2599 = vmatprep.subr.bf16.mxu0 0
    %2600 = vmatpush1.bf16.msra.mxu0 0
    %2601 = vmatprep.subr.bf16.mxu0 0
    %2602 = vmatpush1.bf16.msra.mxu0 0
    %2603 = vmatprep.subr.bf16.mxu0 0
    %2604 = vmatpush1.bf16.msra.mxu0 0
    %2605 = vmatprep.mubr.bf16.mxu0 0
    %2606 = vmatmul.mubr.bf16.gmra.mrb[0].mxu0 %v2201
    %v2607 = vpop.f32.mrb[0].mxu0
    %v2608 = vadd.f32 0.0, %v2607
    %v2609 = vpop.f32.mrb[0].mxu0
    %v2610 = vpop.f32.mrb[0].mxu0
    %v2611 = vadd.f32 0.0, %v2610
    %v2612 = vpop.f32.mrb[0].mxu0
    %2613 = vmatprep.mubr.bf16.mxu0 0
    %2614 = vmatmul.mubr.bf16.gmra.mrb[0].mxu0 %v2202
    %v2615 = vpop.f32.mrb[0].mxu0
    %v2616 = vadd.f32 0.0, %v2615
    %v2617 = vpop.f32.mrb[0].mxu0
    %v2618 = vpop.f32.mrb[0].mxu0
    %v2619 = vadd.f32 0.0, %v2618
    %v2620 = vpop.f32.mrb[0].mxu0
    %2621 = vdwg.mxu0
    %s2622 = scalar_lea.vmem [#allocation4], 32
    %v2623 = vld [vmem:[%s2622] sm:$0xf]
    %v2624 = vld [vmem:[%s2622 + $0x4] sm:$0xf]
    %v2625 = vld [vmem:[%s2622 + $0x8] sm:$0xf]
    %v2626 = vld [vmem:[%s2622 + $0xc] sm:$0xf]
    %v2627 = vpack.c.bf16 %v2611, %v2608
    %v2628 = vpack.c.bf16 %v2619, %v2616
    %v2633 = vunpack.c.l.b16 %v2623
    %v2634 = vunpack.c.l.b16 %v2624
    %v2635 = vunpack.c.l.b16 %v2625
    %v2636 = vunpack.c.l.b16 %v2626
    %v2637 = vpack.c.b16 %v2634, %v2633
    %v2638 = vpack.c.b16 %v2636, %v2635
    %v2640 = vsel %vm219, %v2637, 0
    %v2643 = vsel %vm219, %v2638, 0
    %2645 = vmatprep.subr.bf16.mxu0 0
    %2646 = vmatpush1.bf16.msra.mxu0 %v2627
    %2647 = vmatprep.subr.bf16.mxu0 0
    %2648 = vmatpush1.bf16.msra.mxu0 %v2628
    %2649 = vmatprep.subr.bf16.mxu0 0
    %2650 = vmatpush1.bf16.msra.mxu0 0
    %2651 = vmatprep.subr.bf16.mxu0 0
    %2652 = vmatpush1.bf16.msra.mxu0 0
    %2653 = vmatprep.subr.bf16.mxu0 0
    %2654 = vmatpush1.bf16.msra.mxu0 0
    %2655 = vmatprep.subr.bf16.mxu0 0
    %2656 = vmatpush1.bf16.msra.mxu0 0
    %2657 = vmatprep.subr.bf16.mxu0 0
    %2658 = vmatpush1.bf16.msra.mxu0 0
    %2659 = vmatprep.subr.bf16.mxu0 0
    %2660 = vmatpush1.bf16.msra.mxu0 0
    %2661 = vmatprep.subr.bf16.mxu0 0
    %2662 = vmatpush1.bf16.msra.mxu0 0
    %2663 = vmatprep.subr.bf16.mxu0 0
    %2664 = vmatpush1.bf16.msra.mxu0 0
    %2665 = vmatprep.subr.bf16.mxu0 0
    %2666 = vmatpush1.bf16.msra.mxu0 0
    %2667 = vmatprep.subr.bf16.mxu0 0
    %2668 = vmatpush1.bf16.msra.mxu0 0
    %2669 = vmatprep.subr.bf16.mxu0 0
    %2670 = vmatpush1.bf16.msra.mxu0 0
    %2671 = vmatprep.subr.bf16.mxu0 0
    %2672 = vmatpush1.bf16.msra.mxu0 0
    %2673 = vmatprep.subr.bf16.mxu0 0
    %2674 = vmatpush1.bf16.msra.mxu0 0
    %2675 = vmatprep.subr.bf16.mxu0 0
    %2676 = vmatpush1.bf16.msra.mxu0 0
    %2677 = vmatprep.mubr.bf16.mxu0 0
    %2678 = vmatmul.mubr.bf16.gmra.mrb[0].mxu0 %v2640
    %v2679 = vpop.f32.mrb[0].mxu0
    %v2680 = vadd.f32 0.0, %v2679
    %v2681 = vpop.f32.mrb[0].mxu0
    %v2682 = vpop.f32.mrb[0].mxu0
    %v2683 = vadd.f32 0.0, %v2682
    %v2684 = vpop.f32.mrb[0].mxu0
    %2685 = vmatprep.mubr.bf16.mxu0 0
    %2686 = vmatmul.mubr.bf16.gmra.mrb[0].mxu0 %v2643
    %v2687 = vpop.f32.mrb[0].mxu0
    %v2688 = vadd.f32 0.0, %v2687
    %v2689 = vpop.f32.mrb[0].mxu0
    %v2690 = vpop.f32.mrb[0].mxu0
    %v2691 = vadd.f32 0.0, %v2690
    %v2692 = vpop.f32.mrb[0].mxu0
    %2693 = vdwg.mxu0
    %v2694 = vadd.f32 %v2559, %v2680
    %v2695 = vadd.f32 %v2562, %v2683
    %v2696 = vadd.f32 %v2567, %v2688
    %v2697 = vadd.f32 %v2570, %v2691
    %2698 = vmatprep.subr.bf16.mxu0 0
    %2699 = vmatpush1.bf16.msra.mxu0 %v1225
    %2700 = vmatprep.subr.bf16.mxu0 0
    %2701 = vmatpush1.bf16.msra.mxu0 %v1226
    %2702 = vmatprep.subr.bf16.mxu0 0
    %2703 = vmatpush1.bf16.msra.mxu0 %v1227
    %2704 = vmatprep.subr.bf16.mxu0 0
    %2705 = vmatpush1.bf16.msra.mxu0 %v1228
    %2706 = vmatprep.subr.bf16.mxu0 0
    %2707 = vmatpush1.bf16.msra.mxu0 %v1229
    %2708 = vmatprep.subr.bf16.mxu0 0
    %2709 = vmatpush1.bf16.msra.mxu0 %v1230
    %2710 = vmatprep.subr.bf16.mxu0 0
    %2711 = vmatpush1.bf16.msra.mxu0 %v1231
    %2712 = vmatprep.subr.bf16.mxu0 0
    %2713 = vmatpush1.bf16.msra.mxu0 %v1232
    %2714 = vmatprep.subr.bf16.mxu0 0
    %2715 = vmatpush1.bf16.msra.mxu0 0
    %2716 = vmatprep.subr.bf16.mxu0 0
    %2717 = vmatpush1.bf16.msra.mxu0 0
    %2718 = vmatprep.subr.bf16.mxu0 0
    %2719 = vmatpush1.bf16.msra.mxu0 0
    %2720 = vmatprep.subr.bf16.mxu0 0
    %2721 = vmatpush1.bf16.msra.mxu0 0
    %2722 = vmatprep.subr.bf16.mxu0 0
    %2723 = vmatpush1.bf16.msra.mxu0 0
    %2724 = vmatprep.subr.bf16.mxu0 0
    %2725 = vmatpush1.bf16.msra.mxu0 0
    %2726 = vmatprep.subr.bf16.mxu0 0
    %2727 = vmatpush1.bf16.msra.mxu0 0
    %2728 = vmatprep.subr.bf16.mxu0 0
    %2729 = vmatpush1.bf16.msra.mxu0 0
    %2730 = vmatprep.mubr.bf16.mxu0 0
    %2731 = vmatmul.mubr.bf16.gmra.mrb[0].mxu0 %v2201
    %v2732 = vpop.f32.mrb[0].mxu0
    %v2733 = vadd.f32 0.0, %v2732
    %v2734 = vpop.f32.mrb[0].mxu0
    %v2735 = vpop.f32.mrb[0].mxu0
    %v2736 = vadd.f32 0.0, %v2735
    %v2737 = vpop.f32.mrb[0].mxu0
    %2738 = vmatprep.mubr.bf16.mxu0 0
    %2739 = vmatmul.mubr.bf16.gmra.mrb[0].mxu0 %v2202
    %v2740 = vpop.f32.mrb[0].mxu0
    %v2741 = vadd.f32 0.0, %v2740
    %v2742 = vpop.f32.mrb[0].mxu0
    %v2743 = vpop.f32.mrb[0].mxu0
    %v2744 = vadd.f32 0.0, %v2743
    %v2745 = vpop.f32.mrb[0].mxu0
    %2746 = vdwg.mxu0
    %s2747 = scalar_lea.vmem [#allocation4], 48
    %v2748 = vld [vmem:[%s2747] sm:$0xf]
    %v2749 = vld [vmem:[%s2747 + $0x4] sm:$0xf]
    %v2750 = vld [vmem:[%s2747 + $0x8] sm:$0xf]
    %v2751 = vld [vmem:[%s2747 + $0xc] sm:$0xf]
    %v2752 = vpack.c.bf16 %v2736, %v2733
    %v2753 = vpack.c.bf16 %v2744, %v2741
    %v2758 = vunpack.c.l.b16 %v2748
    %v2759 = vunpack.c.l.b16 %v2749
    %v2760 = vunpack.c.l.b16 %v2750
    %v2761 = vunpack.c.l.b16 %v2751
    %v2762 = vpack.c.b16 %v2759, %v2758
    %v2763 = vpack.c.b16 %v2761, %v2760
    %v2765 = vsel %vm219, %v2762, 0
    %v2768 = vsel %vm219, %v2763, 0
    %2770 = vmatprep.subr.bf16.mxu0 0
    %2771 = vmatpush1.bf16.msra.mxu0 %v2752
    %2772 = vmatprep.subr.bf16.mxu0 0
    %2773 = vmatpush1.bf16.msra.mxu0 %v2753
    %2774 = vmatprep.subr.bf16.mxu0 0
    %2775 = vmatpush1.bf16.msra.mxu0 0
    %2776 = vmatprep.subr.bf16.mxu0 0
    %2777 = vmatpush1.bf16.msra.mxu0 0
    %2778 = vmatprep.subr.bf16.mxu0 0
    %2779 = vmatpush1.bf16.msra.mxu0 0
    %2780 = vmatprep.subr.bf16.mxu0 0
    %2781 = vmatpush1.bf16.msra.mxu0 0
    %2782 = vmatprep.subr.bf16.mxu0 0
    %2783 = vmatpush1.bf16.msra.mxu0 0
    %2784 = vmatprep.subr.bf16.mxu0 0
    %2785 = vmatpush1.bf16.msra.mxu0 0
    %2786 = vmatprep.subr.bf16.mxu0 0
    %2787 = vmatpush1.bf16.msra.mxu0 0
    %2788 = vmatprep.subr.bf16.mxu0 0
    %2789 = vmatpush1.bf16.msra.mxu0 0
    %2790 = vmatprep.subr.bf16.mxu0 0
    %2791 = vmatpush1.bf16.msra.mxu0 0
    %2792 = vmatprep.subr.bf16.mxu0 0
    %2793 = vmatpush1.bf16.msra.mxu0 0
    %2794 = vmatprep.subr.bf16.mxu0 0
    %2795 = vmatpush1.bf16.msra.mxu0 0
    %2796 = vmatprep.subr.bf16.mxu0 0
    %2797 = vmatpush1.bf16.msra.mxu0 0
    %2798 = vmatprep.subr.bf16.mxu0 0
    %2799 = vmatpush1.bf16.msra.mxu0 0
    %2800 = vmatprep.subr.bf16.mxu0 0
    %2801 = vmatpush1.bf16.msra.mxu0 0
    %2802 = vmatprep.mubr.bf16.mxu0 0
    %2803 = vmatmul.mubr.bf16.gmra.mrb[0].mxu0 %v2765
    %v2804 = vpop.f32.mrb[0].mxu0
    %v2805 = vadd.f32 0.0, %v2804
    %v2806 = vpop.f32.mrb[0].mxu0
    %v2807 = vpop.f32.mrb[0].mxu0
    %v2808 = vadd.f32 0.0, %v2807
    %v2809 = vpop.f32.mrb[0].mxu0
    %2810 = vmatprep.mubr.bf16.mxu0 0
    %2811 = vmatmul.mubr.bf16.gmra.mrb[0].mxu0 %v2768
    %v2812 = vpop.f32.mrb[0].mxu0
    %v2813 = vadd.f32 0.0, %v2812
    %v2814 = vpop.f32.mrb[0].mxu0
    %v2815 = vpop.f32.mrb[0].mxu0
    %v2816 = vadd.f32 0.0, %v2815
    %v2817 = vpop.f32.mrb[0].mxu0
    %2818 = vdwg.mxu0
    %v2819 = vadd.f32 %v2694, %v2805
    %v2820 = vadd.f32 %v2695, %v2808
    %v2821 = vadd.f32 %v2696, %v2813
    %v2822 = vadd.f32 %v2697, %v2816
    %2823 = vmatprep.subr.bf16.mxu0 0
    %2824 = vmatpush1.bf16.msra.mxu0 %v1406
    %2825 = vmatprep.subr.bf16.mxu0 0
    %2826 = vmatpush1.bf16.msra.mxu0 %v1407
    %2827 = vmatprep.subr.bf16.mxu0 0
    %2828 = vmatpush1.bf16.msra.mxu0 %v1408
    %2829 = vmatprep.subr.bf16.mxu0 0
    %2830 = vmatpush1.bf16.msra.mxu0 %v1409
    %2831 = vmatprep.subr.bf16.mxu0 0
    %2832 = vmatpush1.bf16.msra.mxu0 %v1410
    %2833 = vmatprep.subr.bf16.mxu0 0
    %2834 = vmatpush1.bf16.msra.mxu0 %v1411
    %2835 = vmatprep.subr.bf16.mxu0 0
    %2836 = vmatpush1.bf16.msra.mxu0 %v1412
    %2837 = vmatprep.subr.bf16.mxu0 0
    %2838 = vmatpush1.bf16.msra.mxu0 %v1413
    %2839 = vmatprep.subr.bf16.mxu0 0
    %2840 = vmatpush1.bf16.msra.mxu0 0
    %2841 = vmatprep.subr.bf16.mxu0 0
    %2842 = vmatpush1.bf16.msra.mxu0 0
    %2843 = vmatprep.subr.bf16.mxu0 0
    %2844 = vmatpush1.bf16.msra.mxu0 0
    %2845 = vmatprep.subr.bf16.mxu0 0
    %2846 = vmatpush1.bf16.msra.mxu0 0
    %2847 = vmatprep.subr.bf16.mxu0 0
    %2848 = vmatpush1.bf16.msra.mxu0 0
    %2849 = vmatprep.subr.bf16.mxu0 0
    %2850 = vmatpush1.bf16.msra.mxu0 0
    %2851 = vmatprep.subr.bf16.mxu0 0
    %2852 = vmatpush1.bf16.msra.mxu0 0
    %2853 = vmatprep.subr.bf16.mxu0 0
    %2854 = vmatpush1.bf16.msra.mxu0 0
    %2855 = vmatprep.mubr.bf16.mxu0 0
    %2856 = vmatmul.mubr.bf16.gmra.mrb[0].mxu0 %v2201
    %v2857 = vpop.f32.mrb[0].mxu0
    %v2858 = vadd.f32 0.0, %v2857
    %v2859 = vpop.f32.mrb[0].mxu0
    %v2860 = vpop.f32.mrb[0].mxu0
    %v2861 = vadd.f32 0.0, %v2860
    %v2862 = vpop.f32.mrb[0].mxu0
    %2863 = vmatprep.mubr.bf16.mxu0 0
    %2864 = vmatmul.mubr.bf16.gmra.mrb[0].mxu0 %v2202
    %v2865 = vpop.f32.mrb[0].mxu0
    %v2866 = vadd.f32 0.0, %v2865
    %v2867 = vpop.f32.mrb[0].mxu0
    %v2868 = vpop.f32.mrb[0].mxu0
    %v2869 = vadd.f32 0.0, %v2868
    %v2870 = vpop.f32.mrb[0].mxu0
    %2871 = vdwg.mxu0
    %s2872 = scalar_lea.vmem [#allocation4], 64
    %v2873 = vld [vmem:[%s2872] sm:$0xf]
    %v2874 = vld [vmem:[%s2872 + $0x4] sm:$0xf]
    %v2875 = vld [vmem:[%s2872 + $0x8] sm:$0xf]
    %v2876 = vld [vmem:[%s2872 + $0xc] sm:$0xf]
    %v2877 = vpack.c.bf16 %v2861, %v2858
    %v2878 = vpack.c.bf16 %v2869, %v2866
    %v2883 = vunpack.c.l.b16 %v2873
    %v2884 = vunpack.c.l.b16 %v2874
    %v2885 = vunpack.c.l.b16 %v2875
    %v2886 = vunpack.c.l.b16 %v2876
    %v2887 = vpack.c.b16 %v2884, %v2883
    %v2888 = vpack.c.b16 %v2886, %v2885
    %v2890 = vsel %vm219, %v2887, 0
    %v2893 = vsel %vm219, %v2888, 0
    %2895 = vmatprep.subr.bf16.mxu0 0
    %2896 = vmatpush1.bf16.msra.mxu0 %v2877
    %2897 = vmatprep.subr.bf16.mxu0 0
    %2898 = vmatpush1.bf16.msra.mxu0 %v2878
    %2899 = vmatprep.subr.bf16.mxu0 0
    %2900 = vmatpush1.bf16.msra.mxu0 0
    %2901 = vmatprep.subr.bf16.mxu0 0
    %2902 = vmatpush1.bf16.msra.mxu0 0
    %2903 = vmatprep.subr.bf16.mxu0 0
    %2904 = vmatpush1.bf16.msra.mxu0 0
    %2905 = vmatprep.subr.bf16.mxu0 0
    %2906 = vmatpush1.bf16.msra.mxu0 0
    %2907 = vmatprep.subr.bf16.mxu0 0
    %2908 = vmatpush1.bf16.msra.mxu0 0
    %2909 = vmatprep.subr.bf16.mxu0 0
    %2910 = vmatpush1.bf16.msra.mxu0 0
    %2911 = vmatprep.subr.bf16.mxu0 0
    %2912 = vmatpush1.bf16.msra.mxu0 0
    %2913 = vmatprep.subr.bf16.mxu0 0
    %2914 = vmatpush1.bf16.msra.mxu0 0
    %2915 = vmatprep.subr.bf16.mxu0 0
    %2916 = vmatpush1.bf16.msra.mxu0 0
    %2917 = vmatprep.subr.bf16.mxu0 0
    %2918 = vmatpush1.bf16.msra.mxu0 0
    %2919 = vmatprep.subr.bf16.mxu0 0
    %2920 = vmatpush1.bf16.msra.mxu0 0
    %2921 = vmatprep.subr.bf16.mxu0 0
    %2922 = vmatpush1.bf16.msra.mxu0 0
    %2923 = vmatprep.subr.bf16.mxu0 0
    %2924 = vmatpush1.bf16.msra.mxu0 0
    %2925 = vmatprep.subr.bf16.mxu0 0
    %2926 = vmatpush1.bf16.msra.mxu0 0
    %2927 = vmatprep.mubr.bf16.mxu0 0
    %2928 = vmatmul.mubr.bf16.gmra.mrb[0].mxu0 %v2890
    %v2929 = vpop.f32.mrb[0].mxu0
    %v2930 = vadd.f32 0.0, %v2929
    %v2931 = vpop.f32.mrb[0].mxu0
    %v2932 = vpop.f32.mrb[0].mxu0
    %v2933 = vadd.f32 0.0, %v2932
    %v2934 = vpop.f32.mrb[0].mxu0
    %2935 = vmatprep.mubr.bf16.mxu0 0
    %2936 = vmatmul.mubr.bf16.gmra.mrb[0].mxu0 %v2893
    %v2937 = vpop.f32.mrb[0].mxu0
    %v2938 = vadd.f32 0.0, %v2937
    %v2939 = vpop.f32.mrb[0].mxu0
    %v2940 = vpop.f32.mrb[0].mxu0
    %v2941 = vadd.f32 0.0, %v2940
    %v2942 = vpop.f32.mrb[0].mxu0
    %2943 = vdwg.mxu0
    %v2944 = vadd.f32 %v2819, %v2930
    %v2945 = vadd.f32 %v2820, %v2933
    %v2946 = vadd.f32 %v2821, %v2938
    %v2947 = vadd.f32 %v2822, %v2941
    %2948 = vmatprep.subr.bf16.mxu0 0
    %2949 = vmatpush1.bf16.msra.mxu0 %v1587
    %2950 = vmatprep.subr.bf16.mxu0 0
    %2951 = vmatpush1.bf16.msra.mxu0 %v1588
    %2952 = vmatprep.subr.bf16.mxu0 0
    %2953 = vmatpush1.bf16.msra.mxu0 %v1589
    %2954 = vmatprep.subr.bf16.mxu0 0
    %2955 = vmatpush1.bf16.msra.mxu0 %v1590
    %2956 = vmatprep.subr.bf16.mxu0 0
    %2957 = vmatpush1.bf16.msra.mxu0 %v1591
    %2958 = vmatprep.subr.bf16.mxu0 0
    %2959 = vmatpush1.bf16.msra.mxu0 %v1592
    %2960 = vmatprep.subr.bf16.mxu0 0
    %2961 = vmatpush1.bf16.msra.mxu0 %v1593
    %2962 = vmatprep.subr.bf16.mxu0 0
    %2963 = vmatpush1.bf16.msra.mxu0 %v1594
    %2964 = vmatprep.subr.bf16.mxu0 0
    %2965 = vmatpush1.bf16.msra.mxu0 0
    %2966 = vmatprep.subr.bf16.mxu0 0
    %2967 = vmatpush1.bf16.msra.mxu0 0
    %2968 = vmatprep.subr.bf16.mxu0 0
    %2969 = vmatpush1.bf16.msra.mxu0 0
    %2970 = vmatprep.subr.bf16.mxu0 0
    %2971 = vmatpush1.bf16.msra.mxu0 0
    %2972 = vmatprep.subr.bf16.mxu0 0
    %2973 = vmatpush1.bf16.msra.mxu0 0
    %2974 = vmatprep.subr.bf16.mxu0 0
    %2975 = vmatpush1.bf16.msra.mxu0 0
    %2976 = vmatprep.subr.bf16.mxu0 0
    %2977 = vmatpush1.bf16.msra.mxu0 0
    %2978 = vmatprep.subr.bf16.mxu0 0
    %2979 = vmatpush1.bf16.msra.mxu0 0
    %2980 = vmatprep.mubr.bf16.mxu0 0
    %2981 = vmatmul.mubr.bf16.gmra.mrb[0].mxu0 %v2201
    %v2982 = vpop.f32.mrb[0].mxu0
    %v2983 = vadd.f32 0.0, %v2982
    %v2984 = vpop.f32.mrb[0].mxu0
    %v2985 = vpop.f32.mrb[0].mxu0
    %v2986 = vadd.f32 0.0, %v2985
    %v2987 = vpop.f32.mrb[0].mxu0
    %2988 = vmatprep.mubr.bf16.mxu0 0
    %2989 = vmatmul.mubr.bf16.gmra.mrb[0].mxu0 %v2202
    %v2990 = vpop.f32.mrb[0].mxu0
    %v2991 = vadd.f32 0.0, %v2990
    %v2992 = vpop.f32.mrb[0].mxu0
    %v2993 = vpop.f32.mrb[0].mxu0
    %v2994 = vadd.f32 0.0, %v2993
    %v2995 = vpop.f32.mrb[0].mxu0
    %2996 = vdwg.mxu0
    %s2997 = scalar_lea.vmem [#allocation4], 80
    %v2998 = vld [vmem:[%s2997] sm:$0xf]
    %v2999 = vld [vmem:[%s2997 + $0x4] sm:$0xf]
    %v3000 = vld [vmem:[%s2997 + $0x8] sm:$0xf]
    %v3001 = vld [vmem:[%s2997 + $0xc] sm:$0xf]
    %v3002 = vpack.c.bf16 %v2986, %v2983
    %v3003 = vpack.c.bf16 %v2994, %v2991
    %v3008 = vunpack.c.l.b16 %v2998
    %v3009 = vunpack.c.l.b16 %v2999
    %v3010 = vunpack.c.l.b16 %v3000
    %v3011 = vunpack.c.l.b16 %v3001
    %v3012 = vpack.c.b16 %v3009, %v3008
    %v3013 = vpack.c.b16 %v3011, %v3010
    %v3015 = vsel %vm219, %v3012, 0
    %v3018 = vsel %vm219, %v3013, 0
    %3020 = vmatprep.subr.bf16.mxu0 0
    %3021 = vmatpush1.bf16.msra.mxu0 %v3002
    %3022 = vmatprep.subr.bf16.mxu0 0
    %3023 = vmatpush1.bf16.msra.mxu0 %v3003
    %3024 = vmatprep.subr.bf16.mxu0 0
    %3025 = vmatpush1.bf16.msra.mxu0 0
    %3026 = vmatprep.subr.bf16.mxu0 0
    %3027 = vmatpush1.bf16.msra.mxu0 0
    %3028 = vmatprep.subr.bf16.mxu0 0
    %3029 = vmatpush1.bf16.msra.mxu0 0
    %3030 = vmatprep.subr.bf16.mxu0 0
    %3031 = vmatpush1.bf16.msra.mxu0 0
    %3032 = vmatprep.subr.bf16.mxu0 0
    %3033 = vmatpush1.bf16.msra.mxu0 0
    %3034 = vmatprep.subr.bf16.mxu0 0
    %3035 = vmatpush1.bf16.msra.mxu0 0
    %3036 = vmatprep.subr.bf16.mxu0 0
    %3037 = vmatpush1.bf16.msra.mxu0 0
    %3038 = vmatprep.subr.bf16.mxu0 0
    %3039 = vmatpush1.bf16.msra.mxu0 0
    %3040 = vmatprep.subr.bf16.mxu0 0
    %3041 = vmatpush1.bf16.msra.mxu0 0
    %3042 = vmatprep.subr.bf16.mxu0 0
    %3043 = vmatpush1.bf16.msra.mxu0 0
    %3044 = vmatprep.subr.bf16.mxu0 0
    %3045 = vmatpush1.bf16.msra.mxu0 0
    %3046 = vmatprep.subr.bf16.mxu0 0
    %3047 = vmatpush1.bf16.msra.mxu0 0
    %3048 = vmatprep.subr.bf16.mxu0 0
    %3049 = vmatpush1.bf16.msra.mxu0 0
    %3050 = vmatprep.subr.bf16.mxu0 0
    %3051 = vmatpush1.bf16.msra.mxu0 0
    %3052 = vmatprep.mubr.bf16.mxu0 0
    %3053 = vmatmul.mubr.bf16.gmra.mrb[0].mxu0 %v3015
    %v3054 = vpop.f32.mrb[0].mxu0
    %v3055 = vadd.f32 0.0, %v3054
    %v3056 = vpop.f32.mrb[0].mxu0
    %v3057 = vpop.f32.mrb[0].mxu0
    %v3058 = vadd.f32 0.0, %v3057
    %v3059 = vpop.f32.mrb[0].mxu0
    %3060 = vmatprep.mubr.bf16.mxu0 0
    %3061 = vmatmul.mubr.bf16.gmra.mrb[0].mxu0 %v3018
    %v3062 = vpop.f32.mrb[0].mxu0
    %v3063 = vadd.f32 0.0, %v3062
    %v3064 = vpop.f32.mrb[0].mxu0
    %v3065 = vpop.f32.mrb[0].mxu0
    %v3066 = vadd.f32 0.0, %v3065
    %v3067 = vpop.f32.mrb[0].mxu0
    %3068 = vdwg.mxu0
    %v3069 = vadd.f32 %v2944, %v3055
    %v3070 = vadd.f32 %v2945, %v3058
    %v3071 = vadd.f32 %v2946, %v3063
    %v3072 = vadd.f32 %v2947, %v3066
    %3073 = vmatprep.subr.bf16.mxu0 0
    %3074 = vmatpush1.bf16.msra.mxu0 %v2065
    %3075 = vmatprep.subr.bf16.mxu0 0
    %3076 = vmatpush1.bf16.msra.mxu0 %v2066
    %3077 = vmatprep.subr.bf16.mxu0 0
    %3078 = vmatpush1.bf16.msra.mxu0 %v2067
    %3079 = vmatprep.subr.bf16.mxu0 0
    %3080 = vmatpush1.bf16.msra.mxu0 %v2068
    %3081 = vmatprep.subr.bf16.mxu0 0
    %3082 = vmatpush1.bf16.msra.mxu0 %v2069
    %3083 = vmatprep.subr.bf16.mxu0 0
    %3084 = vmatpush1.bf16.msra.mxu0 %v2070
    %3085 = vmatprep.subr.bf16.mxu0 0
    %3086 = vmatpush1.bf16.msra.mxu0 %v2071
    %3087 = vmatprep.subr.bf16.mxu0 0
    %3088 = vmatpush1.bf16.msra.mxu0 %v2072
    %3089 = vmatprep.subr.bf16.mxu0 0
    %3090 = vmatpush1.bf16.msra.mxu0 0
    %3091 = vmatprep.subr.bf16.mxu0 0
    %3092 = vmatpush1.bf16.msra.mxu0 0
    %3093 = vmatprep.subr.bf16.mxu0 0
    %3094 = vmatpush1.bf16.msra.mxu0 0
    %3095 = vmatprep.subr.bf16.mxu0 0
    %3096 = vmatpush1.bf16.msra.mxu0 0
    %3097 = vmatprep.subr.bf16.mxu0 0
    %3098 = vmatpush1.bf16.msra.mxu0 0
    %3099 = vmatprep.subr.bf16.mxu0 0
    %3100 = vmatpush1.bf16.msra.mxu0 0
    %3101 = vmatprep.subr.bf16.mxu0 0
    %3102 = vmatpush1.bf16.msra.mxu0 0
    %3103 = vmatprep.subr.bf16.mxu0 0
    %3104 = vmatpush1.bf16.msra.mxu0 0
    %3105 = vmatprep.mubr.bf16.mxu0 0
    %3106 = vmatmul.mubr.bf16.gmra.mrb[0].mxu0 %v2201
    %v3107 = vpop.f32.mrb[0].mxu0
    %v3108 = vadd.f32 0.0, %v3107
    %v3109 = vpop.f32.mrb[0].mxu0
    %v3110 = vpop.f32.mrb[0].mxu0
    %v3111 = vadd.f32 0.0, %v3110
    %v3112 = vpop.f32.mrb[0].mxu0
    %3113 = vmatprep.mubr.bf16.mxu0 0
    %3114 = vmatmul.mubr.bf16.gmra.mrb[0].mxu0 %v2202
    %v3115 = vpop.f32.mrb[0].mxu0
    %v3116 = vadd.f32 0.0, %v3115
    %v3117 = vpop.f32.mrb[0].mxu0
    %v3118 = vpop.f32.mrb[0].mxu0
    %v3119 = vadd.f32 0.0, %v3118
    %v3120 = vpop.f32.mrb[0].mxu0
    %3121 = vdwg.mxu0
    %s3122 = scalar_lea.vmem [#allocation4], 96
    %v3123 = vld [vmem:[%s3122] sm:$0xf]
    %v3124 = vld [vmem:[%s3122 + $0x4] sm:$0xf]
    %v3125 = vld [vmem:[%s3122 + $0x8] sm:$0xf]
    %v3126 = vld [vmem:[%s3122 + $0xc] sm:$0xf]
    %v3127 = vpack.c.bf16 %v3111, %v3108
    %v3128 = vpack.c.bf16 %v3119, %v3116
    %v3133 = vunpack.c.l.b16 %v3123
    %v3134 = vunpack.c.l.b16 %v3124
    %v3135 = vunpack.c.l.b16 %v3125
    %v3136 = vunpack.c.l.b16 %v3126
    %v3137 = vpack.c.b16 %v3134, %v3133
    %v3138 = vpack.c.b16 %v3136, %v3135
    %v3140 = vsel %vm219, %v3137, 0
    %v3143 = vsel %vm219, %v3138, 0
    %3145 = vmatprep.subr.bf16.mxu0 0
    %3146 = vmatpush1.bf16.msra.mxu0 %v3127
    %3147 = vmatprep.subr.bf16.mxu0 0
    %3148 = vmatpush1.bf16.msra.mxu0 %v3128
    %3149 = vmatprep.subr.bf16.mxu0 0
    %3150 = vmatpush1.bf16.msra.mxu0 0
    %3151 = vmatprep.subr.bf16.mxu0 0
    %3152 = vmatpush1.bf16.msra.mxu0 0
    %3153 = vmatprep.subr.bf16.mxu0 0
    %3154 = vmatpush1.bf16.msra.mxu0 0
    %3155 = vmatprep.subr.bf16.mxu0 0
    %3156 = vmatpush1.bf16.msra.mxu0 0
    %3157 = vmatprep.subr.bf16.mxu0 0
    %3158 = vmatpush1.bf16.msra.mxu0 0
    %3159 = vmatprep.subr.bf16.mxu0 0
    %3160 = vmatpush1.bf16.msra.mxu0 0
    %3161 = vmatprep.subr.bf16.mxu0 0
    %3162 = vmatpush1.bf16.msra.mxu0 0
    %3163 = vmatprep.subr.bf16.mxu0 0
    %3164 = vmatpush1.bf16.msra.mxu0 0
    %3165 = vmatprep.subr.bf16.mxu0 0
    %3166 = vmatpush1.bf16.msra.mxu0 0
    %3167 = vmatprep.subr.bf16.mxu0 0
    %3168 = vmatpush1.bf16.msra.mxu0 0
    %3169 = vmatprep.subr.bf16.mxu0 0
    %3170 = vmatpush1.bf16.msra.mxu0 0
    %3171 = vmatprep.subr.bf16.mxu0 0
    %3172 = vmatpush1.bf16.msra.mxu0 0
    %3173 = vmatprep.subr.bf16.mxu0 0
    %3174 = vmatpush1.bf16.msra.mxu0 0
    %3175 = vmatprep.subr.bf16.mxu0 0
    %3176 = vmatpush1.bf16.msra.mxu0 0
    %3177 = vmatprep.mubr.bf16.mxu0 0
    %3178 = vmatmul.mubr.bf16.gmra.mrb[0].mxu0 %v3140
    %v3179 = vpop.f32.mrb[0].mxu0
    %v3180 = vadd.f32 0.0, %v3179
    %v3181 = vpop.f32.mrb[0].mxu0
    %v3182 = vpop.f32.mrb[0].mxu0
    %v3183 = vadd.f32 0.0, %v3182
    %v3184 = vpop.f32.mrb[0].mxu0
    %3185 = vmatprep.mubr.bf16.mxu0 0
    %3186 = vmatmul.mubr.bf16.gmra.mrb[0].mxu0 %v3143
    %v3187 = vpop.f32.mrb[0].mxu0
    %v3188 = vadd.f32 0.0, %v3187
    %v3189 = vpop.f32.mrb[0].mxu0
    %v3190 = vpop.f32.mrb[0].mxu0
    %v3191 = vadd.f32 0.0, %v3190
    %v3192 = vpop.f32.mrb[0].mxu0
    %3193 = vdwg.mxu0
    %v3194 = vadd.f32 %v3069, %v3180
    %v3195 = vadd.f32 %v3070, %v3183
    %v3196 = vadd.f32 %v3071, %v3188
    %v3197 = vadd.f32 %v3072, %v3191
    %s3198 = scalar_lea.vmem [#allocation6], 448
    %v3199 = vld [vmem:[%s3198] sm:$0xf]
    %v3200 = vld [vmem:[%s3198 + $0x4] sm:$0xf]
    %v3201 = vld [vmem:[%s3198 + $0x8] sm:$0xf]
    %v3202 = vld [vmem:[%s3198 + $0xc] sm:$0xf]
    %v3203 = vld [vmem:[%s3198 + $0x10] sm:$0xf]
    %v3204 = vld [vmem:[%s3198 + $0x14] sm:$0xf]
    %v3205 = vld [vmem:[%s3198 + $0x18] sm:$0xf]
    %v3206 = vld [vmem:[%s3198 + $0x1c] sm:$0xf]
    %v3207 = vld [vmem:[%s3198 + $0x20] sm:$0xf]
    %v3208 = vld [vmem:[%s3198 + $0x24] sm:$0xf]
    %v3209 = vld [vmem:[%s3198 + $0x28] sm:$0xf]
    %v3210 = vld [vmem:[%s3198 + $0x2c] sm:$0xf]
    %v3211 = vld [vmem:[%s3198 + $0x30] sm:$0xf]
    %v3212 = vld [vmem:[%s3198 + $0x34] sm:$0xf]
    %v3213 = vld [vmem:[%s3198 + $0x38] sm:$0xf]
    %v3214 = vld [vmem:[%s3198 + $0x3c] sm:$0xf]
    %v3231 = vunpack.c.l.b16 %v3199
    %v3232 = vunpack.c.l.b16 %v3200
    %v3233 = vunpack.c.l.b16 %v3201
    %v3234 = vunpack.c.l.b16 %v3202
    %v3235 = vunpack.c.l.b16 %v3203
    %v3236 = vunpack.c.l.b16 %v3204
    %v3237 = vunpack.c.l.b16 %v3205
    %v3238 = vunpack.c.l.b16 %v3206
    %v3239 = vunpack.c.l.b16 %v3207
    %v3240 = vunpack.c.l.b16 %v3208
    %v3241 = vunpack.c.l.b16 %v3209
    %v3242 = vunpack.c.l.b16 %v3210
    %v3243 = vunpack.c.l.b16 %v3211
    %v3244 = vunpack.c.l.b16 %v3212
    %v3245 = vunpack.c.l.b16 %v3213
    %v3246 = vunpack.c.l.b16 %v3214
    %v3247 = vpack.c.b16 %v3232, %v3231
    %v3248 = vpack.c.b16 %v3234, %v3233
    %v3249 = vpack.c.b16 %v3236, %v3235
    %v3250 = vpack.c.b16 %v3238, %v3237
    %v3251 = vpack.c.b16 %v3240, %v3239
    %v3252 = vpack.c.b16 %v3242, %v3241
    %v3253 = vpack.c.b16 %v3244, %v3243
    %v3254 = vpack.c.b16 %v3246, %v3245
    %3263 = vmatprep.subr.bf16.mxu0 0
    %3264 = vmatpush1.bf16.msra.mxu0 %v3247
    %3265 = vmatprep.subr.bf16.mxu0 0
    %3266 = vmatpush1.bf16.msra.mxu0 %v3248
    %3267 = vmatprep.subr.bf16.mxu0 0
    %3268 = vmatpush1.bf16.msra.mxu0 %v3249
    %3269 = vmatprep.subr.bf16.mxu0 0
    %3270 = vmatpush1.bf16.msra.mxu0 %v3250
    %3271 = vmatprep.subr.bf16.mxu0 0
    %3272 = vmatpush1.bf16.msra.mxu0 %v3251
    %3273 = vmatprep.subr.bf16.mxu0 0
    %3274 = vmatpush1.bf16.msra.mxu0 %v3252
    %3275 = vmatprep.subr.bf16.mxu0 0
    %3276 = vmatpush1.bf16.msra.mxu0 %v3253
    %3277 = vmatprep.subr.bf16.mxu0 0
    %3278 = vmatpush1.bf16.msra.mxu0 %v3254
    %3279 = vmatprep.subr.bf16.mxu0 0
    %3280 = vmatpush1.bf16.msra.mxu0 0
    %3281 = vmatprep.subr.bf16.mxu0 0
    %3282 = vmatpush1.bf16.msra.mxu0 0
    %3283 = vmatprep.subr.bf16.mxu0 0
    %3284 = vmatpush1.bf16.msra.mxu0 0
    %3285 = vmatprep.subr.bf16.mxu0 0
    %3286 = vmatpush1.bf16.msra.mxu0 0
    %3287 = vmatprep.subr.bf16.mxu0 0
    %3288 = vmatpush1.bf16.msra.mxu0 0
    %3289 = vmatprep.subr.bf16.mxu0 0
    %3290 = vmatpush1.bf16.msra.mxu0 0
    %3291 = vmatprep.subr.bf16.mxu0 0
    %3292 = vmatpush1.bf16.msra.mxu0 0
    %3293 = vmatprep.subr.bf16.mxu0 0
    %3294 = vmatpush1.bf16.msra.mxu0 0
    %3295 = vmatprep.mubr.bf16.mxu0 0
    %3296 = vmatmul.mubr.bf16.gmra.mrb[0].mxu0 %v2201
    %v3297 = vpop.f32.mrb[0].mxu0
    %v3298 = vadd.f32 0.0, %v3297
    %v3299 = vpop.f32.mrb[0].mxu0
    %v3300 = vpop.f32.mrb[0].mxu0
    %v3301 = vadd.f32 0.0, %v3300
    %v3302 = vpop.f32.mrb[0].mxu0
    %3303 = vmatprep.mubr.bf16.mxu0 0
    %3304 = vmatmul.mubr.bf16.gmra.mrb[0].mxu0 %v2202
    %v3305 = vpop.f32.mrb[0].mxu0
    %v3306 = vadd.f32 0.0, %v3305
    %v3307 = vpop.f32.mrb[0].mxu0
    %v3308 = vpop.f32.mrb[0].mxu0
    %v3309 = vadd.f32 0.0, %v3308
    %v3310 = vpop.f32.mrb[0].mxu0
    %3311 = vdwg.mxu0
    %s3312 = scalar_lea.vmem [#allocation4], 112
    %v3313 = vld [vmem:[%s3312] sm:$0xf]
    %v3314 = vld [vmem:[%s3312 + $0x4] sm:$0xf]
    %v3315 = vld [vmem:[%s3312 + $0x8] sm:$0xf]
    %v3316 = vld [vmem:[%s3312 + $0xc] sm:$0xf]
    %v3317 = vpack.c.bf16 %v3301, %v3298
    %v3318 = vpack.c.bf16 %v3309, %v3306
    %v3323 = vunpack.c.l.b16 %v3313
    %v3324 = vunpack.c.l.b16 %v3314
    %v3325 = vunpack.c.l.b16 %v3315
    %v3326 = vunpack.c.l.b16 %v3316
    %v3327 = vpack.c.b16 %v3324, %v3323
    %v3328 = vpack.c.b16 %v3326, %v3325
    %v3330 = vsel %vm219, %v3327, 0
    %v3333 = vsel %vm219, %v3328, 0
    %3335 = vmatprep.subr.bf16.mxu0 0
    %3336 = vmatpush1.bf16.msra.mxu0 %v3317
    %3337 = vmatprep.subr.bf16.mxu0 0
    %3338 = vmatpush1.bf16.msra.mxu0 %v3318
    %3339 = vmatprep.subr.bf16.mxu0 0
    %3340 = vmatpush1.bf16.msra.mxu0 0
    %3341 = vmatprep.subr.bf16.mxu0 0
    %3342 = vmatpush1.bf16.msra.mxu0 0
    %3343 = vmatprep.subr.bf16.mxu0 0
    %3344 = vmatpush1.bf16.msra.mxu0 0
    %3345 = vmatprep.subr.bf16.mxu0 0
    %3346 = vmatpush1.bf16.msra.mxu0 0
    %3347 = vmatprep.subr.bf16.mxu0 0
    %3348 = vmatpush1.bf16.msra.mxu0 0
    %3349 = vmatprep.subr.bf16.mxu0 0
    %3350 = vmatpush1.bf16.msra.mxu0 0
    %3351 = vmatprep.subr.bf16.mxu0 0
    %3352 = vmatpush1.bf16.msra.mxu0 0
    %3353 = vmatprep.subr.bf16.mxu0 0
    %3354 = vmatpush1.bf16.msra.mxu0 0
    %3355 = vmatprep.subr.bf16.mxu0 0
    %3356 = vmatpush1.bf16.msra.mxu0 0
    %3357 = vmatprep.subr.bf16.mxu0 0
    %3358 = vmatpush1.bf16.msra.mxu0 0
    %3359 = vmatprep.subr.bf16.mxu0 0
    %3360 = vmatpush1.bf16.msra.mxu0 0
    %3361 = vmatprep.subr.bf16.mxu0 0
    %3362 = vmatpush1.bf16.msra.mxu0 0
    %3363 = vmatprep.subr.bf16.mxu0 0
    %3364 = vmatpush1.bf16.msra.mxu0 0
    %3365 = vmatprep.subr.bf16.mxu0 0
    %3366 = vmatpush1.bf16.msra.mxu0 0
    %3367 = vmatprep.mubr.bf16.mxu0 0
    %3368 = vmatmul.mubr.bf16.gmra.mrb[0].mxu0 %v3330
    %v3369 = vpop.f32.mrb[0].mxu0
    %v3370 = vadd.f32 0.0, %v3369
    %v3371 = vpop.f32.mrb[0].mxu0
    %v3372 = vpop.f32.mrb[0].mxu0
    %v3373 = vadd.f32 0.0, %v3372
    %v3374 = vpop.f32.mrb[0].mxu0
    %3375 = vmatprep.mubr.bf16.mxu0 0
    %3376 = vmatmul.mubr.bf16.gmra.mrb[0].mxu0 %v3333
    %v3377 = vpop.f32.mrb[0].mxu0
    %v3378 = vadd.f32 0.0, %v3377
    %v3379 = vpop.f32.mrb[0].mxu0
    %v3380 = vpop.f32.mrb[0].mxu0
    %v3381 = vadd.f32 0.0, %v3380
    %v3382 = vpop.f32.mrb[0].mxu0
    %3383 = vdwg.mxu0
    %v3384 = vadd.f32 %v3194, %v3370
    %v3385 = vadd.f32 %v3195, %v3373
    %v3386 = vadd.f32 %v3196, %v3378
    %v3387 = vadd.f32 %v3197, %v3381
    %s3388 = scalar_lea.vmem [#allocation6], 512
    %v3389 = vld [vmem:[%s3388] sm:$0xf]
    %v3390 = vld [vmem:[%s3388 + $0x4] sm:$0xf]
    %v3391 = vld [vmem:[%s3388 + $0x8] sm:$0xf]
    %v3392 = vld [vmem:[%s3388 + $0xc] sm:$0xf]
    %v3393 = vld [vmem:[%s3388 + $0x10] sm:$0xf]
    %v3394 = vld [vmem:[%s3388 + $0x14] sm:$0xf]
    %v3395 = vld [vmem:[%s3388 + $0x18] sm:$0xf]
    %v3396 = vld [vmem:[%s3388 + $0x1c] sm:$0xf]
    %v3397 = vld [vmem:[%s3388 + $0x20] sm:$0xf]
    %v3398 = vld [vmem:[%s3388 + $0x24] sm:$0xf]
    %v3399 = vld [vmem:[%s3388 + $0x28] sm:$0xf]
    %v3400 = vld [vmem:[%s3388 + $0x2c] sm:$0xf]
    %v3401 = vld [vmem:[%s3388 + $0x30] sm:$0xf]
    %v3402 = vld [vmem:[%s3388 + $0x34] sm:$0xf]
    %v3403 = vld [vmem:[%s3388 + $0x38] sm:$0xf]
    %v3404 = vld [vmem:[%s3388 + $0x3c] sm:$0xf]
    %v3421 = vunpack.c.l.b16 %v3389
    %v3422 = vunpack.c.l.b16 %v3390
    %v3423 = vunpack.c.l.b16 %v3391
    %v3424 = vunpack.c.l.b16 %v3392
    %v3425 = vunpack.c.l.b16 %v3393
    %v3426 = vunpack.c.l.b16 %v3394
    %v3427 = vunpack.c.l.b16 %v3395
    %v3428 = vunpack.c.l.b16 %v3396
    %v3429 = vunpack.c.l.b16 %v3397
    %v3430 = vunpack.c.l.b16 %v3398
    %v3431 = vunpack.c.l.b16 %v3399
    %v3432 = vunpack.c.l.b16 %v3400
    %v3433 = vunpack.c.l.b16 %v3401
    %v3434 = vunpack.c.l.b16 %v3402
    %v3435 = vunpack.c.l.b16 %v3403
    %v3436 = vunpack.c.l.b16 %v3404
    %v3437 = vpack.c.b16 %v3422, %v3421
    %v3438 = vpack.c.b16 %v3424, %v3423
    %v3439 = vpack.c.b16 %v3426, %v3425
    %v3440 = vpack.c.b16 %v3428, %v3427
    %v3441 = vpack.c.b16 %v3430, %v3429
    %v3442 = vpack.c.b16 %v3432, %v3431
    %v3443 = vpack.c.b16 %v3434, %v3433
    %v3444 = vpack.c.b16 %v3436, %v3435
    %3453 = vmatprep.subr.bf16.mxu0 0
    %3454 = vmatpush1.bf16.msra.mxu0 %v3437
    %3455 = vmatprep.subr.bf16.mxu0 0
    %3456 = vmatpush1.bf16.msra.mxu0 %v3438
    %3457 = vmatprep.subr.bf16.mxu0 0
    %3458 = vmatpush1.bf16.msra.mxu0 %v3439
    %3459 = vmatprep.subr.bf16.mxu0 0
    %3460 = vmatpush1.bf16.msra.mxu0 %v3440
    %3461 = vmatprep.subr.bf16.mxu0 0
    %3462 = vmatpush1.bf16.msra.mxu0 %v3441
    %3463 = vmatprep.subr.bf16.mxu0 0
    %3464 = vmatpush1.bf16.msra.mxu0 %v3442
    %3465 = vmatprep.subr.bf16.mxu0 0
    %3466 = vmatpush1.bf16.msra.mxu0 %v3443
    %3467 = vmatprep.subr.bf16.mxu0 0
    %3468 = vmatpush1.bf16.msra.mxu0 %v3444
    %3469 = vmatprep.subr.bf16.mxu0 0
    %3470 = vmatpush1.bf16.msra.mxu0 0
    %3471 = vmatprep.subr.bf16.mxu0 0
    %3472 = vmatpush1.bf16.msra.mxu0 0
    %3473 = vmatprep.subr.bf16.mxu0 0
    %3474 = vmatpush1.bf16.msra.mxu0 0
    %3475 = vmatprep.subr.bf16.mxu0 0
    %3476 = vmatpush1.bf16.msra.mxu0 0
    %3477 = vmatprep.subr.bf16.mxu0 0
    %3478 = vmatpush1.bf16.msra.mxu0 0
    %3479 = vmatprep.subr.bf16.mxu0 0
    %3480 = vmatpush1.bf16.msra.mxu0 0
    %3481 = vmatprep.subr.bf16.mxu0 0
    %3482 = vmatpush1.bf16.msra.mxu0 0
    %3483 = vmatprep.subr.bf16.mxu0 0
    %3484 = vmatpush1.bf16.msra.mxu0 0
    %3485 = vmatprep.mubr.bf16.mxu0 0
    %3486 = vmatmul.mubr.bf16.gmra.mrb[0].mxu0 %v2201
    %v3487 = vpop.f32.mrb[0].mxu0
    %v3488 = vadd.f32 0.0, %v3487
    %v3489 = vpop.f32.mrb[0].mxu0
    %v3490 = vpop.f32.mrb[0].mxu0
    %v3491 = vadd.f32 0.0, %v3490
    %v3492 = vpop.f32.mrb[0].mxu0
    %3493 = vmatprep.mubr.bf16.mxu0 0
    %3494 = vmatmul.mubr.bf16.gmra.mrb[0].mxu0 %v2202
    %v3495 = vpop.f32.mrb[0].mxu0
    %v3496 = vadd.f32 0.0, %v3495
    %v3497 = vpop.f32.mrb[0].mxu0
    %v3498 = vpop.f32.mrb[0].mxu0
    %v3499 = vadd.f32 0.0, %v3498
    %v3500 = vpop.f32.mrb[0].mxu0
    %3501 = vdwg.mxu0
    %s3502 = scalar_lea.vmem [#allocation4], 128
    %v3503 = vld [vmem:[%s3502] sm:$0xf]
    %v3504 = vld [vmem:[%s3502 + $0x4] sm:$0xf]
    %v3505 = vld [vmem:[%s3502 + $0x8] sm:$0xf]
    %v3506 = vld [vmem:[%s3502 + $0xc] sm:$0xf]
    %v3507 = vpack.c.bf16 %v3491, %v3488
    %v3508 = vpack.c.bf16 %v3499, %v3496
    %v3513 = vunpack.c.l.b16 %v3503
    %v3514 = vunpack.c.l.b16 %v3504
    %v3515 = vunpack.c.l.b16 %v3505
    %v3516 = vunpack.c.l.b16 %v3506
    %v3517 = vpack.c.b16 %v3514, %v3513
    %v3518 = vpack.c.b16 %v3516, %v3515
    %v3520 = vsel %vm219, %v3517, 0
    %v3523 = vsel %vm219, %v3518, 0
    %3525 = vmatprep.subr.bf16.mxu0 0
    %3526 = vmatpush1.bf16.msra.mxu0 %v3507
    %3527 = vmatprep.subr.bf16.mxu0 0
    %3528 = vmatpush1.bf16.msra.mxu0 %v3508
    %3529 = vmatprep.subr.bf16.mxu0 0
    %3530 = vmatpush1.bf16.msra.mxu0 0
    %3531 = vmatprep.subr.bf16.mxu0 0
    %3532 = vmatpush1.bf16.msra.mxu0 0
    %3533 = vmatprep.subr.bf16.mxu0 0
    %3534 = vmatpush1.bf16.msra.mxu0 0
    %3535 = vmatprep.subr.bf16.mxu0 0
    %3536 = vmatpush1.bf16.msra.mxu0 0
    %3537 = vmatprep.subr.bf16.mxu0 0
    %3538 = vmatpush1.bf16.msra.mxu0 0
    %3539 = vmatprep.subr.bf16.mxu0 0
    %3540 = vmatpush1.bf16.msra.mxu0 0
    %3541 = vmatprep.subr.bf16.mxu0 0
    %3542 = vmatpush1.bf16.msra.mxu0 0
    %3543 = vmatprep.subr.bf16.mxu0 0
    %3544 = vmatpush1.bf16.msra.mxu0 0
    %3545 = vmatprep.subr.bf16.mxu0 0
    %3546 = vmatpush1.bf16.msra.mxu0 0
    %3547 = vmatprep.subr.bf16.mxu0 0
    %3548 = vmatpush1.bf16.msra.mxu0 0
    %3549 = vmatprep.subr.bf16.mxu0 0
    %3550 = vmatpush1.bf16.msra.mxu0 0
    %3551 = vmatprep.subr.bf16.mxu0 0
    %3552 = vmatpush1.bf16.msra.mxu0 0
    %3553 = vmatprep.subr.bf16.mxu0 0
    %3554 = vmatpush1.bf16.msra.mxu0 0
    %3555 = vmatprep.subr.bf16.mxu0 0
    %3556 = vmatpush1.bf16.msra.mxu0 0
    %3557 = vmatprep.mubr.bf16.mxu0 0
    %3558 = vmatmul.mubr.bf16.gmra.mrb[0].mxu0 %v3520
    %v3559 = vpop.f32.mrb[0].mxu0
    %v3560 = vadd.f32 0.0, %v3559
    %v3561 = vpop.f32.mrb[0].mxu0
    %v3562 = vpop.f32.mrb[0].mxu0
    %v3563 = vadd.f32 0.0, %v3562
    %v3564 = vpop.f32.mrb[0].mxu0
    %3565 = vmatprep.mubr.bf16.mxu0 0
    %3566 = vmatmul.mubr.bf16.gmra.mrb[0].mxu0 %v3523
    %v3567 = vpop.f32.mrb[0].mxu0
    %v3568 = vadd.f32 0.0, %v3567
    %v3569 = vpop.f32.mrb[0].mxu0
    %v3570 = vpop.f32.mrb[0].mxu0
    %v3571 = vadd.f32 0.0, %v3570
    %v3572 = vpop.f32.mrb[0].mxu0
    %3573 = vdwg.mxu0
    %v3574 = vadd.f32 %v3384, %v3560
    %v3575 = vadd.f32 %v3385, %v3563
    %v3576 = vadd.f32 %v3386, %v3568
    %v3577 = vadd.f32 %v3387, %v3571
    %v3578 = vld [vmem:[%s9] sm:$0xff]
    %v3579 = vld [vmem:[%s9 + $0x8] sm:$0xff]
    %v3580 = vld [vmem:[%s9 + $0x10] sm:$0xff]
    %v3581 = vld [vmem:[%s9 + $0x18] sm:$0xff]
    %3583 = vset.pattern.permute.xlu0 0
    %3584 = vperm.xlu0 %3583, %v3578
    %v3585 = vpop.permute.xlu0 %3584
    %3588 = vset.pattern.permute.xlu0 0
    %3589 = vperm.xlu0 %3588, %v3579
    %v3590 = vpop.permute.xlu0 %3589
    %3593 = vset.pattern.permute.xlu0 0
    %3594 = vperm.xlu0 %3593, %v3580
    %v3595 = vpop.permute.xlu0 %3594
    %3598 = vset.pattern.permute.xlu0 0
    %3599 = vperm.xlu0 %3598, %v3581
    %v3600 = vpop.permute.xlu0 %3599
    %v3602 = vadd.f32 %v3574, %v3585
    %v3603 = vadd.f32 %v3575, %v3590
    %v3604 = vadd.f32 %v3576, %v3595
    %v3605 = vadd.f32 %v3577, %v3600
    %3606 = vst [vmem:[%s11] sm:$0xff] %v3602
    %3607 = vst [vmem:[%s11 + $0x8] sm:$0xff] %v3603
    %3608 = vst [vmem:[%s11 + $0x10] sm:$0xff] %v3604
    %3609 = vst [vmem:[%s11 + $0x18] sm:$0xff] %v3605
    // Predicated region
    $region58: #{seq_gtcn_forward.1} parent=1 // pred_check
      _
    $region59: #{seq_gtcn_forward.1} parent=1 // pred_check_branch
      %3611 = sbr.rel (0) target = $region61
    $region60: #{seq_gtcn_forward.1} parent=1 // pred_region
      _
    $region61: #{seq_gtcn_forward.1} parent=1 // pred_fallthru
      _
    // Predicated region
    $region62: #{seq_gtcn_forward.1} parent=1 // pred_check
      _
    $region63: #{seq_gtcn_forward.1} parent=1 // pred_check_branch
      %3613 = sbr.rel (0) target = $region65
    $region64: #{seq_gtcn_forward.1} parent=1 // pred_region
      _
    $region65: #{seq_gtcn_forward.1} parent=1 // pred_fallthru
      _
    %3614 = vsyncpa [#allocation3], 1
    %3615 = vsyncpa [#allocation5], 1

</llo_original>
